<compile_context>
chip_gen: v7x
topology: tpu7x:2x2x1
jax: 0.10.0
libtpu: 0.0.40
codegen_flags: <defaults>
</compile_context>

<pallas_src>
import math

import jax
import jax.numpy as jnp
from jax.experimental import pallas as pl
from jax.experimental.pallas import tpu as pltpu

INPUT_SIZE = (1, 12, 10)
HIDDEN_SIZES = [200, 100, 50]
OUTPUT_SIZE = 1

LANE = 128     # TPU lane width
NARROW = 128   # padded width for layers with din, dout <= 128
WIDE = 256     # padded width for the 200-wide layers


def _round_up(n, m):
    return (n + m - 1) // m * m


def _pad_width(d):
    return _round_up(max(d, 1), LANE)


def build_layer_plan():
    """Per-pair sizes / ReLU flags and a flat per-Linear-layer slab plan."""
    sizes = [math.prod(INPUT_SIZE)] + list(HIDDEN_SIZES) + [OUTPUT_SIZE]
    pairs = list(zip(sizes[:-1], sizes[1:]))

    relu_flags = []
    use_relu = True
    for _din, dout in pairs:
        if dout == OUTPUT_SIZE:
            use_relu = False  # torch code mutates `activation` -> sticky Identity
        relu_flags.append(use_relu)

    # Layer order per pair: ResidualBlock.fc1, ResidualBlock.fc2, LinearBlock.fc
    dims = []
    for din, dout in pairs:
        dims += [(din, din), (din, din), (din, dout)]

    plan = []
    n_narrow = n_wide = 0
    for idx, (din, dout) in enumerate(dims):
        pin, pout = _pad_width(din), _pad_width(dout)
        assert max(pin, pout) in (NARROW, WIDE), "unsupported layer width"
        if max(pin, pout) == NARROW:
            plan.append(dict(slab="narrow", slot=n_narrow, pin=pin, pout=pout,
                             bias=idx, din=din, dout=dout))
            n_narrow += 1
        else:
            plan.append(dict(slab="wide", slot=n_wide, pin=pin, pout=pout,
                             bias=idx, din=din, dout=dout))
            n_wide += 1
    return pairs, relu_flags, plan, n_narrow, n_wide


def init_params(key):
    """torch.nn.Linear-style init (uniform +-1/sqrt(fan_in)).

    Returns a flat list of (w (din, dout) f32, b (dout,) f32) in layer order:
    per pair [res.fc1, res.fc2, lin.fc].
    """
    pairs, _, _, _, _ = build_layer_plan()
    layers = []

    def linear(k, fan_in, fan_out):
        kw, kb = jax.random.split(k)
        bound = 1.0 / math.sqrt(fan_in)
        w = jax.random.uniform(kw, (fan_in, fan_out), jnp.float32, -bound, bound)
        b = jax.random.uniform(kb, (fan_out,), jnp.float32, -bound, bound)
        return w, b

    for din, dout in pairs:
        key, k1, k2, k3 = jax.random.split(key, 4)
        layers.append(linear(k1, din, din))   # ResidualBlock.fc1
        layers.append(linear(k2, din, din))   # ResidualBlock.fc2
        layers.append(linear(k3, din, dout))  # LinearBlock.fc
    return layers


def pack_params(layers):
    """Pack transposed (dout, din) weights into narrow/wide bf16 slabs.

    The kernel computes y = w^T @ h with the batch in the lane dimension, so
    weights are stored pre-transposed.  Biases are stored as (L, WIDE, 1) f32
    columns (lane-0 broadcast source in the kernel).  All padding is exact zero.
    """
    _, _, plan, n_narrow, n_wide = build_layer_plan()
    num_layers = len(layers)
    w_narrow = jnp.zeros((n_narrow, NARROW, NARROW), jnp.float32)
    w_wide = jnp.zeros((n_wide, WIDE, WIDE), jnp.float32)
    b_slab = jnp.zeros((num_layers, WIDE, 1), jnp.float32)
    for desc, (w, b) in zip(plan, layers):
        din, dout = w.shape
        wt = w.T                                        # (dout, din)
        if desc["slab"] == "narrow":
            w_narrow = w_narrow.at[desc["slot"], :dout, :din].set(wt)
        else:
            w_wide = w_wide.at[desc["slot"], :dout, :din].set(wt)
        b_slab = b_slab.at[desc["bias"], :dout, 0].set(b)
    return w_narrow.astype(jnp.bfloat16), w_wide.astype(jnp.bfloat16), b_slab


def make_resnet_kernel(relu_flags, plan):
    num_pairs = len(relu_flags)

    def kernel(x_ref, wn_ref, ww_ref, b_ref, out_ref):
        def dense(desc, v, relu):
            slab = wn_ref if desc["slab"] == "narrow" else ww_ref
            # Static slices: only the needed padded window of the slab element.
            w = slab[desc["slot"], :desc["pout"], :desc["pin"]]      # bf16
            bias = b_ref[desc["bias"], :desc["pout"], :]             # (pout, 1) f32
            y = jnp.dot(w, v.astype(jnp.bfloat16),
                        preferred_element_type=jnp.float32)
            y = y + bias                                             # lane broadcast
            return jnp.maximum(y, 0.0) if relu else y

        h_bf = x_ref[...]                    # (IN_PAD, tb) bf16, padded rows zero
        h = h_bf.astype(jnp.float32)         # f32 residual carrier (v5e-safe)

        for p in range(num_pairs):           # static unroll: 12 layers
            relu = relu_flags[p]
            d1, d2, d3 = plan[3 * p], plan[3 * p + 1], plan[3 * p + 2]
            # ResidualBlock: y = act(fc2(act(fc1(h)))); h = y + h
            src = h_bf if p == 0 else h      # skip redundant f32->bf16 cast at layer 0
            y = dense(d1, src, relu)
            y = dense(d2, y, relu)
            h = y + h
            # LinearBlock: h = act(fc(h))   (may change the carried width)
            h = dense(d3, h, relu)

        # Logit lives in row 0 (all other padded rows are exact zeros).
        z = h[0:1, :]                        # (1, tb)
        out_ref[...] = 1.0 / (1.0 + jnp.exp(-z))   # exact sigmoid

    return kernel


def _choose_tile(batch, tb_req):
    """Lane-aligned batch tile; prefer >= 2 grid steps when the batch allows."""
    tb = max(LANE, _round_up(min(tb_req, _round_up(batch, LANE)), LANE))
    if batch > LANE and _round_up(batch, tb) // tb < 2:
        tb = max(LANE, _round_up((batch + 1) // 2, LANE))
    return tb


def resnet_forward(x, w_narrow, w_wide, b_slab, *, tb=512):
    """x: (B, 1, 12, 10) float32 -> (B,) float32, matching ResNet.forward."""
    _, relu_flags, plan, _, _ = build_layer_plan()
    B = x.shape[0]
    d_in = math.prod(INPUT_SIZE)
    in_pad = _pad_width(d_in)

    tb = _choose_tile(B, tb)
    b_pad = _round_up(B, tb)
    grid = (b_pad // tb,)

    # Transposed, bf16, lane-padded input: features in sublanes, batch in lanes.
    xf = x.reshape(B, -1).astype(jnp.bfloat16)                       # (B, 120)
    xT = jnp.zeros((in_pad, b_pad), jnp.bfloat16).at[:d_in, :B].set(xf.T)

    # Advisory cost hint so XLA schedules around this short custom call.
    flops = 2 * b_pad * sum(d["pin"] * d["pout"] for d in plan)
    bytes_accessed = (xT.size * 2 + w_narrow.size * 2 + w_wide.size * 2
                      + b_slab.size * 4 + b_pad * 4)
    cost = pl.CostEstimate(flops=flops, transcendentals=b_pad,
                           bytes_accessed=bytes_accessed)

    out = pl.pallas_call(
        make_resnet_kernel(relu_flags, plan),
        out_shape=jax.ShapeDtypeStruct((1, b_pad), jnp.float32),
        grid=grid,
        in_specs=[
            # batch tile of activations (lane dim), double-buffered across steps
            pl.BlockSpec((in_pad, tb), lambda i: (0, i)),
            # weight / bias slabs: constant block index -> one DMA, VMEM-resident
            pl.BlockSpec(w_narrow.shape, lambda i: (0, 0, 0)),
            pl.BlockSpec(w_wide.shape, lambda i: (0, 0, 0)),
            pl.BlockSpec(b_slab.shape, lambda i: (0, 0, 0)),
        ],
        # lane-dense packed logits: one f32 row, ~128x less store traffic
        out_specs=pl.BlockSpec((1, tb), lambda i: (0, i)),
        compiler_params=pltpu.CompilerParams(
            dimension_semantics=("parallel",)),
        cost_estimate=cost,
    )(xT, w_narrow, w_wide, b_slab)
    return out[0, :B]


def reference_forward_matched(x, layers):
    """Pure-JAX reference doing the kernel's bf16-input / bf16-matmul math."""
    _, relu_flags, _, _, _ = build_layer_plan()
    B = x.shape[0]
    h = x.reshape(B, -1).astype(jnp.bfloat16).astype(jnp.float32)

    for p, relu in enumerate(relu_flags):
        def lin(v, wb):
            w, b = wb
            y = jnp.dot(v.astype(jnp.bfloat16), w.astype(jnp.bfloat16),
                        preferred_element_type=jnp.float32) + b[None, :]
            return jnp.maximum(y, 0.0) if relu else y

        y = lin(h, layers[3 * p + 0])
        y = lin(y, layers[3 * p + 1])
        h = y + h
        h = lin(h, layers[3 * p + 2])

    z = h[:, 0]
    return 1.0 / (1.0 + jnp.exp(-z))


def reference_forward_f32(x, layers):
    """Full-precision reference with the original torch-module semantics."""
    _, relu_flags, _, _, _ = build_layer_plan()
    h = x.reshape(x.shape[0], -1).astype(jnp.float32)
    for p, relu in enumerate(relu_flags):
        act = (lambda v: jnp.maximum(v, 0.0)) if relu else (lambda v: v)
        (w1, b1), (w2, b2), (w3, b3) = layers[3 * p:3 * p + 3]
        y = act(h @ w1 + b1)
        y = act(y @ w2 + b2)
        h = y + h
        h = act(h @ w3 + b3)
    return jax.nn.sigmoid(h[:, 0])


if __name__ == "__main__":
    key = jax.random.PRNGKey(0)
    kx, kp = jax.random.split(key)

    B = 300  # not a multiple of the batch tile -> exercises padding + 2-step grid
    x = jax.random.normal(kx, (B, *INPUT_SIZE), dtype=jnp.float32)
    layers = init_params(kp)
    w_narrow, w_wide, b_slab = pack_params(layers)

    out = jax.block_until_ready(resnet_forward(x, w_narrow, w_wide, b_slab, tb=512))
    ref = jax.block_until_ready(reference_forward_matched(x, layers))
    ref_f32 = jax.block_until_ready(reference_forward_f32(x, layers))

    assert out.shape == (B,), f"bad shape {out.shape}"
    assert jnp.allclose(out, ref, atol=2e-3), "kernel != bf16-matched reference"
    assert jnp.allclose(out, ref_f32, atol=5e-2), "kernel drifted from f32 reference"
    print("KERNEL_OK")
</pallas_src>

<mosaic_0001>
module attributes {stable_mosaic.version = 11 : i64} {
  func.func @kernel(%arg0: i32, %arg1: memref<128x256xbf16, #tpu.memory_space<vmem>>, %arg2: memref<8x128x128xbf16, #tpu.memory_space<vmem>>, %arg3: memref<4x256x256xbf16, #tpu.memory_space<vmem>>, %arg4: memref<12x256x1xf32, #tpu.memory_space<vmem>>, %arg5: memref<1x256xf32, #tpu.memory_space<vmem>>) attributes {dimension_semantics = [#tpu.dimension_semantics<parallel>], iteration_bounds = array<i64: 2>, scalar_prefetch = 0 : i64, scratch_operands = 0 : i64, tpu.core_type = #tpu.core_type<tc>, window_params = [{transform_indices = @transform_0, window_bounds = array<i64: 128, 256>}, {pipeline_mode = #tpu.pipeline_mode<synchronous>, transform_indices = @transform_1, window_bounds = array<i64: 8, 128, 128>}, {pipeline_mode = #tpu.pipeline_mode<synchronous>, transform_indices = @transform_2, window_bounds = array<i64: 4, 256, 256>}, {pipeline_mode = #tpu.pipeline_mode<synchronous>, transform_indices = @transform_3, window_bounds = array<i64: 12, 256, 1>}, {transform_indices = @transform_4, window_bounds = array<i64: 1, 256>}]} {
    %c0 = arith.constant 0 : index
    %c0_0 = arith.constant 0 : index
    %0 = vector.load %arg1[%c0, %c0_0] : memref<128x256xbf16, #tpu.memory_space<vmem>>, vector<128x256xbf16>
    %1 = arith.extf %0 : vector<128x256xbf16> to vector<128x256xf32>
    %c0_1 = arith.constant 0 : index
    %c0_2 = arith.constant 0 : index
    %c0_3 = arith.constant 0 : index
    %2 = vector.load %arg2[%c0_1, %c0_2, %c0_3] : memref<8x128x128xbf16, #tpu.memory_space<vmem>>, vector<1x128x128xbf16>
    %3 = vector.shape_cast %2 : vector<1x128x128xbf16> to vector<128x128xbf16>
    %c0_4 = arith.constant 0 : index
    %c0_5 = arith.constant 0 : index
    %c0_6 = arith.constant 0 : index
    %4 = vector.load %arg4[%c0_4, %c0_5, %c0_6] : memref<12x256x1xf32, #tpu.memory_space<vmem>>, vector<1x128x1xf32>
    %5 = vector.shape_cast %4 : vector<1x128x1xf32> to vector<128x1xf32>
    %cst = arith.constant dense<0.000000e+00> : vector<128x256xf32>
    %6 = tpu.matmul %3, %0, %cst {dimension_numbers = #tpu.dot_dimension_numbers<[1], [0], [0], [1], [0, 0, 1, 1], [], []>} : vector<128x128xbf16>, vector<128x256xbf16>, vector<128x256xf32> -> vector<128x256xf32>
    %7 = vector.broadcast %5 : vector<128x1xf32> to vector<128x256xf32>
    %8 = arith.addf %6, %7 : vector<128x256xf32>
    %cst_7 = arith.constant 0.000000e+00 : f32
    %9 = vector.broadcast %cst_7 : f32 to vector<128x256xf32>
    %10 = arith.maximumf %8, %9 : vector<128x256xf32>
    %c1 = arith.constant 1 : index
    %c0_8 = arith.constant 0 : index
    %c0_9 = arith.constant 0 : index
    %11 = vector.load %arg2[%c1, %c0_8, %c0_9] : memref<8x128x128xbf16, #tpu.memory_space<vmem>>, vector<1x128x128xbf16>
    %12 = vector.shape_cast %11 : vector<1x128x128xbf16> to vector<128x128xbf16>
    %c1_10 = arith.constant 1 : index
    %c0_11 = arith.constant 0 : index
    %c0_12 = arith.constant 0 : index
    %13 = vector.load %arg4[%c1_10, %c0_11, %c0_12] : memref<12x256x1xf32, #tpu.memory_space<vmem>>, vector<1x128x1xf32>
    %14 = vector.shape_cast %13 : vector<1x128x1xf32> to vector<128x1xf32>
    %15 = arith.truncf %10 : vector<128x256xf32> to vector<128x256xbf16>
    %cst_13 = arith.constant dense<0.000000e+00> : vector<128x256xf32>
    %16 = tpu.matmul %12, %15, %cst_13 {dimension_numbers = #tpu.dot_dimension_numbers<[1], [0], [0], [1], [0, 0, 1, 1], [], []>} : vector<128x128xbf16>, vector<128x256xbf16>, vector<128x256xf32> -> vector<128x256xf32>
    %17 = vector.broadcast %14 : vector<128x1xf32> to vector<128x256xf32>
    %18 = arith.addf %16, %17 : vector<128x256xf32>
    %cst_14 = arith.constant 0.000000e+00 : f32
    %19 = vector.broadcast %cst_14 : f32 to vector<128x256xf32>
    %20 = arith.maximumf %18, %19 : vector<128x256xf32>
    %21 = arith.addf %20, %1 : vector<128x256xf32>
    %c0_15 = arith.constant 0 : index
    %c0_16 = arith.constant 0 : index
    %c0_17 = arith.constant 0 : index
    %22 = vector.load %arg3[%c0_15, %c0_16, %c0_17] : memref<4x256x256xbf16, #tpu.memory_space<vmem>>, vector<1x256x128xbf16>
    %23 = vector.shape_cast %22 : vector<1x256x128xbf16> to vector<256x128xbf16>
    %c2 = arith.constant 2 : index
    %c0_18 = arith.constant 0 : index
    %c0_19 = arith.constant 0 : index
    %24 = vector.load %arg4[%c2, %c0_18, %c0_19] : memref<12x256x1xf32, #tpu.memory_space<vmem>>, vector<1x256x1xf32>
    %25 = vector.shape_cast %24 : vector<1x256x1xf32> to vector<256x1xf32>
    %26 = arith.truncf %21 : vector<128x256xf32> to vector<128x256xbf16>
    %cst_20 = arith.constant dense<0.000000e+00> : vector<256x256xf32>
    %27 = tpu.matmul %23, %26, %cst_20 {dimension_numbers = #tpu.dot_dimension_numbers<[1], [0], [0], [1], [0, 0, 1, 1], [], []>} : vector<256x128xbf16>, vector<128x256xbf16>, vector<256x256xf32> -> vector<256x256xf32>
    %28 = vector.broadcast %25 : vector<256x1xf32> to vector<256x256xf32>
    %29 = arith.addf %27, %28 : vector<256x256xf32>
    %cst_21 = arith.constant 0.000000e+00 : f32
    %30 = vector.broadcast %cst_21 : f32 to vector<256x256xf32>
    %31 = arith.maximumf %29, %30 : vector<256x256xf32>
    %c1_22 = arith.constant 1 : index
    %c0_23 = arith.constant 0 : index
    %c0_24 = arith.constant 0 : index
    %32 = vector.load %arg3[%c1_22, %c0_23, %c0_24] : memref<4x256x256xbf16, #tpu.memory_space<vmem>>, vector<1x256x256xbf16>
    %33 = vector.shape_cast %32 : vector<1x256x256xbf16> to vector<256x256xbf16>
    %c3 = arith.constant 3 : index
    %c0_25 = arith.constant 0 : index
    %c0_26 = arith.constant 0 : index
    %34 = vector.load %arg4[%c3, %c0_25, %c0_26] : memref<12x256x1xf32, #tpu.memory_space<vmem>>, vector<1x256x1xf32>
    %35 = vector.shape_cast %34 : vector<1x256x1xf32> to vector<256x1xf32>
    %36 = arith.truncf %31 : vector<256x256xf32> to vector<256x256xbf16>
    %cst_27 = arith.constant dense<0.000000e+00> : vector<256x256xf32>
    %37 = tpu.matmul %33, %36, %cst_27 {dimension_numbers = #tpu.dot_dimension_numbers<[1], [0], [0], [1], [0, 0, 1, 1], [], []>} : vector<256x256xbf16>, vector<256x256xbf16>, vector<256x256xf32> -> vector<256x256xf32>
    %38 = vector.broadcast %35 : vector<256x1xf32> to vector<256x256xf32>
    %39 = arith.addf %37, %38 : vector<256x256xf32>
    %cst_28 = arith.constant 0.000000e+00 : f32
    %40 = vector.broadcast %cst_28 : f32 to vector<256x256xf32>
    %41 = arith.maximumf %39, %40 : vector<256x256xf32>
    %c2_29 = arith.constant 2 : index
    %c0_30 = arith.constant 0 : index
    %c0_31 = arith.constant 0 : index
    %42 = vector.load %arg3[%c2_29, %c0_30, %c0_31] : memref<4x256x256xbf16, #tpu.memory_space<vmem>>, vector<1x256x256xbf16>
    %43 = vector.shape_cast %42 : vector<1x256x256xbf16> to vector<256x256xbf16>
    %c4 = arith.constant 4 : index
    %c0_32 = arith.constant 0 : index
    %c0_33 = arith.constant 0 : index
    %44 = vector.load %arg4[%c4, %c0_32, %c0_33] : memref<12x256x1xf32, #tpu.memory_space<vmem>>, vector<1x256x1xf32>
    %45 = vector.shape_cast %44 : vector<1x256x1xf32> to vector<256x1xf32>
    %46 = arith.truncf %41 : vector<256x256xf32> to vector<256x256xbf16>
    %cst_34 = arith.constant dense<0.000000e+00> : vector<256x256xf32>
    %47 = tpu.matmul %43, %46, %cst_34 {dimension_numbers = #tpu.dot_dimension_numbers<[1], [0], [0], [1], [0, 0, 1, 1], [], []>} : vector<256x256xbf16>, vector<256x256xbf16>, vector<256x256xf32> -> vector<256x256xf32>
    %48 = vector.broadcast %45 : vector<256x1xf32> to vector<256x256xf32>
    %49 = arith.addf %47, %48 : vector<256x256xf32>
    %cst_35 = arith.constant 0.000000e+00 : f32
    %50 = vector.broadcast %cst_35 : f32 to vector<256x256xf32>
    %51 = arith.maximumf %49, %50 : vector<256x256xf32>
    %52 = arith.addf %51, %31 : vector<256x256xf32>
    %c3_36 = arith.constant 3 : index
    %c0_37 = arith.constant 0 : index
    %c0_38 = arith.constant 0 : index
    %53 = vector.load %arg3[%c3_36, %c0_37, %c0_38] : memref<4x256x256xbf16, #tpu.memory_space<vmem>>, vector<1x128x256xbf16>
    %54 = vector.shape_cast %53 : vector<1x128x256xbf16> to vector<128x256xbf16>
    %c5 = arith.constant 5 : index
    %c0_39 = arith.constant 0 : index
    %c0_40 = arith.constant 0 : index
    %55 = vector.load %arg4[%c5, %c0_39, %c0_40] : memref<12x256x1xf32, #tpu.memory_space<vmem>>, vector<1x128x1xf32>
    %56 = vector.shape_cast %55 : vector<1x128x1xf32> to vector<128x1xf32>
    %57 = arith.truncf %52 : vector<256x256xf32> to vector<256x256xbf16>
    %cst_41 = arith.constant dense<0.000000e+00> : vector<128x256xf32>
    %58 = tpu.matmul %54, %57, %cst_41 {dimension_numbers = #tpu.dot_dimension_numbers<[1], [0], [0], [1], [0, 0, 1, 1], [], []>} : vector<128x256xbf16>, vector<256x256xbf16>, vector<128x256xf32> -> vector<128x256xf32>
    %59 = vector.broadcast %56 : vector<128x1xf32> to vector<128x256xf32>
    %60 = arith.addf %58, %59 : vector<128x256xf32>
    %cst_42 = arith.constant 0.000000e+00 : f32
    %61 = vector.broadcast %cst_42 : f32 to vector<128x256xf32>
    %62 = arith.maximumf %60, %61 : vector<128x256xf32>
    %c2_43 = arith.constant 2 : index
    %c0_44 = arith.constant 0 : index
    %c0_45 = arith.constant 0 : index
    %63 = vector.load %arg2[%c2_43, %c0_44, %c0_45] : memref<8x128x128xbf16, #tpu.memory_space<vmem>>, vector<1x128x128xbf16>
    %64 = vector.shape_cast %63 : vector<1x128x128xbf16> to vector<128x128xbf16>
    %c6 = arith.constant 6 : index
    %c0_46 = arith.constant 0 : index
    %c0_47 = arith.constant 0 : index
    %65 = vector.load %arg4[%c6, %c0_46, %c0_47] : memref<12x256x1xf32, #tpu.memory_space<vmem>>, vector<1x128x1xf32>
    %66 = vector.shape_cast %65 : vector<1x128x1xf32> to vector<128x1xf32>
    %67 = arith.truncf %62 : vector<128x256xf32> to vector<128x256xbf16>
    %cst_48 = arith.constant dense<0.000000e+00> : vector<128x256xf32>
    %68 = tpu.matmul %64, %67, %cst_48 {dimension_numbers = #tpu.dot_dimension_numbers<[1], [0], [0], [1], [0, 0, 1, 1], [], []>} : vector<128x128xbf16>, vector<128x256xbf16>, vector<128x256xf32> -> vector<128x256xf32>
    %69 = vector.broadcast %66 : vector<128x1xf32> to vector<128x256xf32>
    %70 = arith.addf %68, %69 : vector<128x256xf32>
    %cst_49 = arith.constant 0.000000e+00 : f32
    %71 = vector.broadcast %cst_49 : f32 to vector<128x256xf32>
    %72 = arith.maximumf %70, %71 : vector<128x256xf32>
    %c3_50 = arith.constant 3 : index
    %c0_51 = arith.constant 0 : index
    %c0_52 = arith.constant 0 : index
    %73 = vector.load %arg2[%c3_50, %c0_51, %c0_52] : memref<8x128x128xbf16, #tpu.memory_space<vmem>>, vector<1x128x128xbf16>
    %74 = vector.shape_cast %73 : vector<1x128x128xbf16> to vector<128x128xbf16>
    %c7 = arith.constant 7 : index
    %c0_53 = arith.constant 0 : index
    %c0_54 = arith.constant 0 : index
    %75 = vector.load %arg4[%c7, %c0_53, %c0_54] : memref<12x256x1xf32, #tpu.memory_space<vmem>>, vector<1x128x1xf32>
    %76 = vector.shape_cast %75 : vector<1x128x1xf32> to vector<128x1xf32>
    %77 = arith.truncf %72 : vector<128x256xf32> to vector<128x256xbf16>
    %cst_55 = arith.constant dense<0.000000e+00> : vector<128x256xf32>
    %78 = tpu.matmul %74, %77, %cst_55 {dimension_numbers = #tpu.dot_dimension_numbers<[1], [0], [0], [1], [0, 0, 1, 1], [], []>} : vector<128x128xbf16>, vector<128x256xbf16>, vector<128x256xf32> -> vector<128x256xf32>
    %79 = vector.broadcast %76 : vector<128x1xf32> to vector<128x256xf32>
    %80 = arith.addf %78, %79 : vector<128x256xf32>
    %cst_56 = arith.constant 0.000000e+00 : f32
    %81 = vector.broadcast %cst_56 : f32 to vector<128x256xf32>
    %82 = arith.maximumf %80, %81 : vector<128x256xf32>
    %83 = arith.addf %82, %62 : vector<128x256xf32>
    %c4_57 = arith.constant 4 : index
    %c0_58 = arith.constant 0 : index
    %c0_59 = arith.constant 0 : index
    %84 = vector.load %arg2[%c4_57, %c0_58, %c0_59] : memref<8x128x128xbf16, #tpu.memory_space<vmem>>, vector<1x128x128xbf16>
    %85 = vector.shape_cast %84 : vector<1x128x128xbf16> to vector<128x128xbf16>
    %c8 = arith.constant 8 : index
    %c0_60 = arith.constant 0 : index
    %c0_61 = arith.constant 0 : index
    %86 = vector.load %arg4[%c8, %c0_60, %c0_61] : memref<12x256x1xf32, #tpu.memory_space<vmem>>, vector<1x128x1xf32>
    %87 = vector.shape_cast %86 : vector<1x128x1xf32> to vector<128x1xf32>
    %88 = arith.truncf %83 : vector<128x256xf32> to vector<128x256xbf16>
    %cst_62 = arith.constant dense<0.000000e+00> : vector<128x256xf32>
    %89 = tpu.matmul %85, %88, %cst_62 {dimension_numbers = #tpu.dot_dimension_numbers<[1], [0], [0], [1], [0, 0, 1, 1], [], []>} : vector<128x128xbf16>, vector<128x256xbf16>, vector<128x256xf32> -> vector<128x256xf32>
    %90 = vector.broadcast %87 : vector<128x1xf32> to vector<128x256xf32>
    %91 = arith.addf %89, %90 : vector<128x256xf32>
    %cst_63 = arith.constant 0.000000e+00 : f32
    %92 = vector.broadcast %cst_63 : f32 to vector<128x256xf32>
    %93 = arith.maximumf %91, %92 : vector<128x256xf32>
    %c5_64 = arith.constant 5 : index
    %c0_65 = arith.constant 0 : index
    %c0_66 = arith.constant 0 : index
    %94 = vector.load %arg2[%c5_64, %c0_65, %c0_66] : memref<8x128x128xbf16, #tpu.memory_space<vmem>>, vector<1x128x128xbf16>
    %95 = vector.shape_cast %94 : vector<1x128x128xbf16> to vector<128x128xbf16>
    %c9 = arith.constant 9 : index
    %c0_67 = arith.constant 0 : index
    %c0_68 = arith.constant 0 : index
    %96 = vector.load %arg4[%c9, %c0_67, %c0_68] : memref<12x256x1xf32, #tpu.memory_space<vmem>>, vector<1x128x1xf32>
    %97 = vector.shape_cast %96 : vector<1x128x1xf32> to vector<128x1xf32>
    %98 = arith.truncf %93 : vector<128x256xf32> to vector<128x256xbf16>
    %cst_69 = arith.constant dense<0.000000e+00> : vector<128x256xf32>
    %99 = tpu.matmul %95, %98, %cst_69 {dimension_numbers = #tpu.dot_dimension_numbers<[1], [0], [0], [1], [0, 0, 1, 1], [], []>} : vector<128x128xbf16>, vector<128x256xbf16>, vector<128x256xf32> -> vector<128x256xf32>
    %100 = vector.broadcast %97 : vector<128x1xf32> to vector<128x256xf32>
    %101 = arith.addf %99, %100 : vector<128x256xf32>
    %c6_70 = arith.constant 6 : index
    %c0_71 = arith.constant 0 : index
    %c0_72 = arith.constant 0 : index
    %102 = vector.load %arg2[%c6_70, %c0_71, %c0_72] : memref<8x128x128xbf16, #tpu.memory_space<vmem>>, vector<1x128x128xbf16>
    %103 = vector.shape_cast %102 : vector<1x128x128xbf16> to vector<128x128xbf16>
    %c10 = arith.constant 10 : index
    %c0_73 = arith.constant 0 : index
    %c0_74 = arith.constant 0 : index
    %104 = vector.load %arg4[%c10, %c0_73, %c0_74] : memref<12x256x1xf32, #tpu.memory_space<vmem>>, vector<1x128x1xf32>
    %105 = vector.shape_cast %104 : vector<1x128x1xf32> to vector<128x1xf32>
    %106 = arith.truncf %101 : vector<128x256xf32> to vector<128x256xbf16>
    %cst_75 = arith.constant dense<0.000000e+00> : vector<128x256xf32>
    %107 = tpu.matmul %103, %106, %cst_75 {dimension_numbers = #tpu.dot_dimension_numbers<[1], [0], [0], [1], [0, 0, 1, 1], [], []>} : vector<128x128xbf16>, vector<128x256xbf16>, vector<128x256xf32> -> vector<128x256xf32>
    %108 = vector.broadcast %105 : vector<128x1xf32> to vector<128x256xf32>
    %109 = arith.addf %107, %108 : vector<128x256xf32>
    %110 = arith.addf %109, %93 : vector<128x256xf32>
    %c7_76 = arith.constant 7 : index
    %c0_77 = arith.constant 0 : index
    %c0_78 = arith.constant 0 : index
    %111 = vector.load %arg2[%c7_76, %c0_77, %c0_78] : memref<8x128x128xbf16, #tpu.memory_space<vmem>>, vector<1x128x128xbf16>
    %112 = vector.shape_cast %111 : vector<1x128x128xbf16> to vector<128x128xbf16>
    %c11 = arith.constant 11 : index
    %c0_79 = arith.constant 0 : index
    %c0_80 = arith.constant 0 : index
    %113 = vector.load %arg4[%c11, %c0_79, %c0_80] : memref<12x256x1xf32, #tpu.memory_space<vmem>>, vector<1x128x1xf32>
    %114 = vector.shape_cast %113 : vector<1x128x1xf32> to vector<128x1xf32>
    %115 = arith.truncf %110 : vector<128x256xf32> to vector<128x256xbf16>
    %cst_81 = arith.constant dense<0.000000e+00> : vector<128x256xf32>
    %116 = tpu.matmul %112, %115, %cst_81 {dimension_numbers = #tpu.dot_dimension_numbers<[1], [0], [0], [1], [0, 0, 1, 1], [], []>} : vector<128x128xbf16>, vector<128x256xbf16>, vector<128x256xf32> -> vector<128x256xf32>
    %117 = vector.broadcast %114 : vector<128x1xf32> to vector<128x256xf32>
    %118 = arith.addf %116, %117 : vector<128x256xf32>
    %119 = vector.extract_strided_slice %118 {offsets = [0, 0], sizes = [1, 256], strides = [1, 1]} : vector<128x256xf32> to vector<1x256xf32>
    %cst_82 = arith.constant 0.000000e+00 : f32
    %120 = vector.broadcast %cst_82 : f32 to vector<1x256xf32>
    %121 = arith.subf %120, %119 : vector<1x256xf32>
    %122 = math.exp %121 : vector<1x256xf32>
    %cst_83 = arith.constant 1.000000e+00 : f32
    %123 = vector.broadcast %cst_83 : f32 to vector<1x256xf32>
    %124 = arith.addf %123, %122 : vector<1x256xf32>
    %cst_84 = arith.constant 1.000000e+00 : f32
    %125 = vector.broadcast %cst_84 : f32 to vector<1x256xf32>
    %126 = arith.divf %125, %124 : vector<1x256xf32>
    %c0_85 = arith.constant 0 : index
    %c0_86 = arith.constant 0 : index
    %127 = vector.load %arg5[%c0_85, %c0_86] : memref<1x256xf32, #tpu.memory_space<vmem>>, vector<1x256xf32>
    tpu.vector_store %arg5[%c0_85, %c0_86], %126 {strides = array<i32>} : memref<1x256xf32, #tpu.memory_space<vmem>>, vector<1x256xf32>,
    return
  }
  func.func @transform_0(%arg0: i32) -> (i32, i32) {
    %c0_i32 = arith.constant 0 : i32
    %c0_i32_0 = arith.constant 0 : i32
    return %c0_i32, %arg0 : i32, i32
  }
  func.func @transform_1(%arg0: i32) -> (i32, i32, i32) {
    %c0_i32 = arith.constant 0 : i32
    %c0_i32_0 = arith.constant 0 : i32
    %c0_i32_1 = arith.constant 0 : i32
    %c0_i32_2 = arith.constant 0 : i32
    return %c0_i32, %c0_i32_0, %c0_i32_1 : i32, i32, i32
  }
  func.func @transform_2(%arg0: i32) -> (i32, i32, i32) {
    %c0_i32 = arith.constant 0 : i32
    %c0_i32_0 = arith.constant 0 : i32
    %c0_i32_1 = arith.constant 0 : i32
    %c0_i32_2 = arith.constant 0 : i32
    return %c0_i32, %c0_i32_0, %c0_i32_1 : i32, i32, i32
  }
  func.func @transform_3(%arg0: i32) -> (i32, i32, i32) {
    %c0_i32 = arith.constant 0 : i32
    %c0_i32_0 = arith.constant 0 : i32
    %c0_i32_1 = arith.constant 0 : i32
    %c0_i32_2 = arith.constant 0 : i32
    return %c0_i32, %c0_i32_0, %c0_i32_1 : i32, i32, i32
  }
  func.func @transform_4(%arg0: i32) -> (i32, i32) {
    %c0_i32 = arith.constant 0 : i32
    %c0_i32_0 = arith.constant 0 : i32
    return %c0_i32, %arg0 : i32, i32
  }
}

</mosaic_0001>

<llo_original>
// kernel: tpu_custom_call.1
$region0: #{tpu_custom_call.1}
  #allocation0 [shape = 'u32[]', space=smem, size = 0x4, offset = 0x4, fixed_abs, tag = 'smem constant byte address 0x4 - core index']
  #allocation1 [shape = 'u32[144,128]{1,0:T(1,128)}', space=vmem, size = 0x12000, scoped, tag = 'internal scratch']
  %s0 = inlined_call_operand.vmem [shape: bf16[128,512], index: 0, kind: input, shape index: {}]
  %s1 = inlined_call_operand.vmem [shape: bf16[8,128,128], index: 1, kind: input, shape index: {}]
  %s2 = inlined_call_operand.vmem [shape: bf16[4,256,256], index: 2, kind: input, shape index: {}]
  %s3 = inlined_call_operand.vmem [shape: f32[12,256,1], index: 3, kind: input, shape index: {}]
  %s4 = inlined_call_operand.hbm [shape: f32[1,512], index: 4, kind: output, shape index: {}]
  %s5 = sld [smem:[#allocation0]]
  $region87: #{tpu_custom_call.1} parent=0
    _
  %s7 = ssub.s32 1, %s5
  %s8 = scalar_select 0, %s7, %s5
  $region1: #{tpu_custom_call.1} parent=0
    #allocation2 [shape = 'u8[131072]{0}', space=vmem, size = 0x20000, scoped, tag = 'input window, operand 0']
    #allocation3 [shape = 'u8[2048]{0}', space=vmem, size = 0x800, scoped, tag = 'output window, operand 0']
    #allocation4 [shape = 's32[2]{0}', space=sflag, size = 0x8, scoped, tag = 'scoped memory for tpu_custom_call.1']
    %9 = vsyncpa [#allocation4], 0
    %s10 = scalar_lea.sflag [#allocation4], 1
    %11 = vsyncpa %s10, 0
    loop: start=0, step=1, limit=4
    $region2: #{tpu_custom_call.1} parent=1 // loop_pre_header
      _
    $region3: #{tpu_custom_call.1} parent=1 // loop_header
      %s13 = sphi 0, %s17
      %p14 = scmp.ge.s32.totalorder %s13, 4
      %s23 = sphi 0, %s25
      %s26 = sphi 0, %s23
      %s27 = sphi 0, %s26
      %s43 = sphi 0, %s27
      %s47 = sphi 0, %s47
      %s49 = sphi 0, %s47
      %s50 = sphi 0, %s49
      %s64 = sphi 0, %s50
      %s68 = sphi 0, %s68
      %s70 = sphi 0, %s68
      %s71 = sphi 0, %s70
      %s85 = sphi 0, %s71
      %s89 = sphi 0, %s89
      %s91 = sphi 0, %s89
      %s92 = sphi 0, %s91
      %s106 = sphi 0, %s92
      %s112 = sphi 0, %s114
      %s115 = sphi 0, %s112
      %s116 = sphi 0, %s115
      %s132 = sphi 0, %s116
    $region4: #{tpu_custom_call.1} parent=1 // loop_header_branch
      %16 = sbr.rel (%p14) target = $region8
    $region5: #{tpu_custom_call.1} parent=1 // loop_body
      %s18 = ssub.s32 %s13, 1
      %s19 = ssub.s32 %s13, 2
      %s20 = sadd.s32 %s13, 1
      %s21 = ssub.s32 %s13, %s20
      %p22 = scmp.eq.s32.totalorder %s21, 0
      %s24 = sadd.s32 %s23, 1
      %s25 = scalar_select %p22, %s23, %s24
      %p28 = pneg %p22
      %p29 = scmp.eq.s32.totalorder %s13, 1
      %p30 = por %p28, %p29
      %p31 = scmp.ne.s32.totalorder %s23, %s26
      %p32 = scmp.eq.s32.totalorder %s13, 0
      %p33 = por %p31, %p32
      %p34 = scmp.ne.s32.totalorder %s23, %s26
      %p35 = scmp.eq.s32.totalorder %s18, 1
      %p36 = por %p34, %p35
      %p37 = scmp.ne.s32.totalorder %s26, %s27
      %p38 = scmp.eq.s32.totalorder %s18, 0
      %p39 = por %p37, %p38
      %p40 = scmp.ne.s32.totalorder %s26, %s27
      %p41 = scmp.eq.s32.totalorder %s19, 1
      %p42 = por %p40, %p41
      %p44 = scmp.ne.s32.totalorder %s27, %s43
      %p45 = scmp.eq.s32.totalorder %s19, 0
      %p46 = por %p44, %p45
      %s48 = sadd.s32 %s47, 1
      %p51 = scmp.eq.s32.totalorder %s13, 1
      %p52 = scmp.ne.s32.totalorder %s47, %s49
      %p53 = scmp.eq.s32.totalorder %s13, 0
      %p54 = por %p52, %p53
      %p55 = scmp.ne.s32.totalorder %s47, %s49
      %p56 = scmp.eq.s32.totalorder %s18, 1
      %p57 = por %p55, %p56
      %p58 = scmp.ne.s32.totalorder %s49, %s50
      %p59 = scmp.eq.s32.totalorder %s18, 0
      %p60 = por %p58, %p59
      %p61 = scmp.ne.s32.totalorder %s49, %s50
      %p62 = scmp.eq.s32.totalorder %s19, 1
      %p63 = por %p61, %p62
      %p65 = scmp.ne.s32.totalorder %s50, %s64
      %p66 = scmp.eq.s32.totalorder %s19, 0
      %p67 = por %p65, %p66
      %s69 = sadd.s32 %s68, 1
      %p72 = scmp.eq.s32.totalorder %s13, 1
      %p73 = scmp.ne.s32.totalorder %s68, %s70
      %p74 = scmp.eq.s32.totalorder %s13, 0
      %p75 = por %p73, %p74
      %p76 = scmp.ne.s32.totalorder %s68, %s70
      %p77 = scmp.eq.s32.totalorder %s18, 1
      %p78 = por %p76, %p77
      %p79 = scmp.ne.s32.totalorder %s70, %s71
      %p80 = scmp.eq.s32.totalorder %s18, 0
      %p81 = por %p79, %p80
      %p82 = scmp.ne.s32.totalorder %s70, %s71
      %p83 = scmp.eq.s32.totalorder %s19, 1
      %p84 = por %p82, %p83
      %p86 = scmp.ne.s32.totalorder %s71, %s85
      %p87 = scmp.eq.s32.totalorder %s19, 0
      %p88 = por %p86, %p87
      %s90 = sadd.s32 %s89, 1
      %p93 = scmp.eq.s32.totalorder %s13, 1
      %p94 = scmp.ne.s32.totalorder %s89, %s91
      %p95 = scmp.eq.s32.totalorder %s13, 0
      %p96 = por %p94, %p95
      %p97 = scmp.ne.s32.totalorder %s89, %s91
      %p98 = scmp.eq.s32.totalorder %s18, 1
      %p99 = por %p97, %p98
      %p100 = scmp.ne.s32.totalorder %s91, %s92
      %p101 = scmp.eq.s32.totalorder %s18, 0
      %p102 = por %p100, %p101
      %p103 = scmp.ne.s32.totalorder %s91, %s92
      %p104 = scmp.eq.s32.totalorder %s19, 1
      %p105 = por %p103, %p104
      %p107 = scmp.ne.s32.totalorder %s92, %s106
      %p108 = scmp.eq.s32.totalorder %s19, 0
      %p109 = por %p107, %p108
      %s110 = ssub.s32 %s13, %s20
      %p111 = scmp.eq.s32.totalorder %s110, 0
      %s113 = sadd.s32 %s112, 1
      %s114 = scalar_select %p111, %s112, %s113
      %p117 = pneg %p111
      %p118 = scmp.eq.s32.totalorder %s13, 1
      %p119 = por %p117, %p118
      %p120 = scmp.ne.s32.totalorder %s112, %s115
      %p121 = scmp.eq.s32.totalorder %s13, 0
      %p122 = por %p120, %p121
      %p123 = scmp.ne.s32.totalorder %s112, %s115
      %p124 = scmp.eq.s32.totalorder %s18, 1
      %p125 = por %p123, %p124
      %p126 = scmp.ne.s32.totalorder %s115, %s116
      %p127 = scmp.eq.s32.totalorder %s18, 0
      %p128 = por %p126, %p127
      %p129 = scmp.ne.s32.totalorder %s115, %s116
      %p130 = scmp.eq.s32.totalorder %s19, 1
      %p131 = por %p129, %p130
      %p133 = scmp.ne.s32.totalorder %s116, %s132
      %p134 = scmp.eq.s32.totalorder %s19, 0
      %p135 = por %p133, %p134
      %p136 = scmp.le.s32.totalorder 1, %s13
      %p137 = scmp.lt.s32.totalorder %s13, 3
      %p138 = pnand %p136, %p137
      %p139 = pneg %p138
      // Predicated region
      $region9: #{tpu_custom_call.1} parent=5 // pred_check
        _
      $region10: #{tpu_custom_call.1} parent=5 // pred_check_branch
        %141 = sbr.rel (%p138) target = $region12
      $region11: #{tpu_custom_call.1} parent=5 // pred_region
        %s142 = ssub.s32 %s13, 1
        // Predicated region
        $region13: #{tpu_custom_call.1} parent=11 // pred_check
          %p143 = pneg %p60
        $region14: #{tpu_custom_call.1} parent=11 // pred_check_branch
          %145 = sbr.rel (%p143) target = $region16
        $region15: #{tpu_custom_call.1} parent=11 // pred_region
          _
        $region16: #{tpu_custom_call.1} parent=11 // pred_fallthru
          _
        // Predicated region
        $region17: #{tpu_custom_call.1} parent=11 // pred_check
          %p146 = pneg %p81
        $region18: #{tpu_custom_call.1} parent=11 // pred_check_branch
          %148 = sbr.rel (%p146) target = $region20
        $region19: #{tpu_custom_call.1} parent=11 // pred_region
          _
        $region20: #{tpu_custom_call.1} parent=11 // pred_fallthru
          _
        // Predicated region
        $region21: #{tpu_custom_call.1} parent=11 // pred_check
          %p149 = pneg %p102
        $region22: #{tpu_custom_call.1} parent=11 // pred_check_branch
          %151 = sbr.rel (%p149) target = $region24
        $region23: #{tpu_custom_call.1} parent=11 // pred_region
          _
        $region24: #{tpu_custom_call.1} parent=11 // pred_fallthru
          _
      $region12: #{tpu_custom_call.1} parent=5 // pred_fallthru
        _
      %p152 = scmp.lt.s32.totalorder %s13, 2
      // Predicated region
      $region25: #{tpu_custom_call.1} parent=5 // pred_check
        %p153 = pneg %p152
      $region26: #{tpu_custom_call.1} parent=5 // pred_check_branch
        %155 = sbr.rel (%p153) target = $region28
      $region27: #{tpu_custom_call.1} parent=5 // pred_region
        // Predicated region
        $region29: #{tpu_custom_call.1} parent=27 // pred_check
          %p156 = pneg %p33
        $region30: #{tpu_custom_call.1} parent=27 // pred_check_branch
          %158 = sbr.rel (%p156) target = $region32
        $region31: #{tpu_custom_call.1} parent=27 // pred_region
          %s159 = sand.u32 %s23, 1
          %s160 = sand.u32 %s23, 1
          %s161 = smul.addr %s160, 128
          %s162 = scalar_lea.vmem [#allocation2], %s161
          %s163 = smul.u32 2, %s13
          %s164 = smul.addr %s163, 4
          %s165 = scalar_lea.vmem %s0, %s164
          // Predicated region
          $region33: #{tpu_custom_call.1} parent=31 // pred_check
            _
          $region34: #{tpu_custom_call.1} parent=31 // pred_check_branch
            %167 = sbr.rel (0) target = $region36
          $region35: #{tpu_custom_call.1} parent=31 // pred_region
            // Predicated region
            $region37: #{tpu_custom_call.1} parent=35 // pred_check
              _
            $region38: #{tpu_custom_call.1} parent=35 // pred_check_branch
              %169 = sbr.rel (0) target = $region40
            $region39: #{tpu_custom_call.1} parent=35 // pred_region
              // Predicated region
              $region52: #{tpu_custom_call.1} parent=39 // pred_check
                _
              $region53: #{tpu_custom_call.1} parent=39 // pred_check_branch
                %214 = sbr.rel (0) target = $region55
              $region54: #{tpu_custom_call.1} parent=39 // pred_region
                loop: start=0, step=1, limit=1
                $region56: #{tpu_custom_call.1} parent=54 // loop_pre_header
                  _
                $region57: #{tpu_custom_call.1} parent=54 // loop_header
                  %s216 = sphi 0, %s220
                  %p217 = scmp.ge.s32.totalorder %s216, 1
                  %s221 = sphi %s165, %s165
                  %s222 = sphi %s162, %s162
                $region58: #{tpu_custom_call.1} parent=54 // loop_header_branch
                  %219 = sbr.rel (%p217) target = $region62
                $region59: #{tpu_custom_call.1} parent=54 // loop_body
                  %v223 = vld [vmem:[%s221] sm:$0xff]
                  %224 = vst [vmem:[%s222] sm:$0xff] %v223
                  %v225 = vld [vmem:[%s221 + $0x10] sm:$0xff]
                  %226 = vst [vmem:[%s222 + $0x8] sm:$0xff] %v225
                  %v227 = vld [vmem:[%s221 + $0x20] sm:$0xff]
                  %228 = vst [vmem:[%s222 + $0x10] sm:$0xff] %v227
                  %v229 = vld [vmem:[%s221 + $0x30] sm:$0xff]
                  %230 = vst [vmem:[%s222 + $0x18] sm:$0xff] %v229
                  %v231 = vld [vmem:[%s221 + $0x40] sm:$0xff]
                  %232 = vst [vmem:[%s222 + $0x20] sm:$0xff] %v231
                  %v233 = vld [vmem:[%s221 + $0x50] sm:$0xff]
                  %234 = vst [vmem:[%s222 + $0x28] sm:$0xff] %v233
                  %v235 = vld [vmem:[%s221 + $0x60] sm:$0xff]
                  %236 = vst [vmem:[%s222 + $0x30] sm:$0xff] %v235
                  %v237 = vld [vmem:[%s221 + $0x70] sm:$0xff]
                  %238 = vst [vmem:[%s222 + $0x38] sm:$0xff] %v237
                  %v239 = vld [vmem:[%s221 + $0x80] sm:$0xff]
                  %240 = vst [vmem:[%s222 + $0x40] sm:$0xff] %v239
                  %v241 = vld [vmem:[%s221 + $0x90] sm:$0xff]
                  %242 = vst [vmem:[%s222 + $0x48] sm:$0xff] %v241
                  %v243 = vld [vmem:[%s221 + $0xa0] sm:$0xff]
                  %244 = vst [vmem:[%s222 + $0x50] sm:$0xff] %v243
                  %v245 = vld [vmem:[%s221 + $0xb0] sm:$0xff]
                  %246 = vst [vmem:[%s222 + $0x58] sm:$0xff] %v245
                  %v247 = vld [vmem:[%s221 + $0xc0] sm:$0xff]
                  %248 = vst [vmem:[%s222 + $0x60] sm:$0xff] %v247
                  %v249 = vld [vmem:[%s221 + $0xd0] sm:$0xff]
                  %250 = vst [vmem:[%s222 + $0x68] sm:$0xff] %v249
                  %v251 = vld [vmem:[%s221 + $0xe0] sm:$0xff]
                  %252 = vst [vmem:[%s222 + $0x70] sm:$0xff] %v251
                  %v253 = vld [vmem:[%s221 + $0xf0] sm:$0xff]
                  %254 = vst [vmem:[%s222 + $0x78] sm:$0xff] %v253
                $region60: #{tpu_custom_call.1} parent=54 // loop_footer
                  %s220 = sadd.s32 1, %s216
                $region61: #{tpu_custom_call.1} parent=54 // loop_footer_branch
                  %215 = sbr.rel target = $region57
                $region62: #{tpu_custom_call.1} parent=54 // loop_exit
                  _
              $region55: #{tpu_custom_call.1} parent=39 // pred_fallthru
                _
              // Predicated region
              $region63: #{tpu_custom_call.1} parent=39 // pred_check
                _
              $region64: #{tpu_custom_call.1} parent=39 // pred_check_branch
                %256 = sbr.rel target = $region66
              $region65: #{tpu_custom_call.1} parent=39 // pred_region
                _
              $region66: #{tpu_custom_call.1} parent=39 // pred_fallthru
                _
            $region40: #{tpu_custom_call.1} parent=35 // pred_fallthru
              _
            // Predicated region
            $region41: #{tpu_custom_call.1} parent=35 // pred_check
              _
            $region42: #{tpu_custom_call.1} parent=35 // pred_check_branch
              %171 = sbr.rel target = $region44
            $region43: #{tpu_custom_call.1} parent=35 // pred_region
              loop: start=0, step=1, limit=1
              $region45: #{tpu_custom_call.1} parent=43 // loop_pre_header
                _
              $region46: #{tpu_custom_call.1} parent=43 // loop_header
                %s174 = sphi 0, %s178
                %p175 = scmp.ge.s32.totalorder %s174, 1
                %s179 = sphi %s165, %s165
                %s180 = sphi %s162, %s162
              $region47: #{tpu_custom_call.1} parent=43 // loop_header_branch
                %177 = sbr.rel (%p175) target = $region51
              $region48: #{tpu_custom_call.1} parent=43 // loop_body
                %v181 = vld [vmem:[%s179] sm:$0xff]
                %182 = vst [vmem:[%s180] sm:$0xff] %v181
                %v183 = vld [vmem:[%s179 + $0x10] sm:$0xff]
                %184 = vst [vmem:[%s180 + $0x8] sm:$0xff] %v183
                %v185 = vld [vmem:[%s179 + $0x20] sm:$0xff]
                %186 = vst [vmem:[%s180 + $0x10] sm:$0xff] %v185
                %v187 = vld [vmem:[%s179 + $0x30] sm:$0xff]
                %188 = vst [vmem:[%s180 + $0x18] sm:$0xff] %v187
                %v189 = vld [vmem:[%s179 + $0x40] sm:$0xff]
                %190 = vst [vmem:[%s180 + $0x20] sm:$0xff] %v189
                %v191 = vld [vmem:[%s179 + $0x50] sm:$0xff]
                %192 = vst [vmem:[%s180 + $0x28] sm:$0xff] %v191
                %v193 = vld [vmem:[%s179 + $0x60] sm:$0xff]
                %194 = vst [vmem:[%s180 + $0x30] sm:$0xff] %v193
                %v195 = vld [vmem:[%s179 + $0x70] sm:$0xff]
                %196 = vst [vmem:[%s180 + $0x38] sm:$0xff] %v195
                %v197 = vld [vmem:[%s179 + $0x80] sm:$0xff]
                %198 = vst [vmem:[%s180 + $0x40] sm:$0xff] %v197
                %v199 = vld [vmem:[%s179 + $0x90] sm:$0xff]
                %200 = vst [vmem:[%s180 + $0x48] sm:$0xff] %v199
                %v201 = vld [vmem:[%s179 + $0xa0] sm:$0xff]
                %202 = vst [vmem:[%s180 + $0x50] sm:$0xff] %v201
                %v203 = vld [vmem:[%s179 + $0xb0] sm:$0xff]
                %204 = vst [vmem:[%s180 + $0x58] sm:$0xff] %v203
                %v205 = vld [vmem:[%s179 + $0xc0] sm:$0xff]
                %206 = vst [vmem:[%s180 + $0x60] sm:$0xff] %v205
                %v207 = vld [vmem:[%s179 + $0xd0] sm:$0xff]
                %208 = vst [vmem:[%s180 + $0x68] sm:$0xff] %v207
                %v209 = vld [vmem:[%s179 + $0xe0] sm:$0xff]
                %210 = vst [vmem:[%s180 + $0x70] sm:$0xff] %v209
                %v211 = vld [vmem:[%s179 + $0xf0] sm:$0xff]
                %212 = vst [vmem:[%s180 + $0x78] sm:$0xff] %v211
              $region49: #{tpu_custom_call.1} parent=43 // loop_footer
                %s178 = sadd.s32 1, %s174
              $region50: #{tpu_custom_call.1} parent=43 // loop_footer_branch
                %173 = sbr.rel target = $region46
              $region51: #{tpu_custom_call.1} parent=43 // loop_exit
                _
            $region44: #{tpu_custom_call.1} parent=35 // pred_fallthru
              _
          $region36: #{tpu_custom_call.1} parent=31 // pred_fallthru
            _
          %257 = vnop
        $region32: #{tpu_custom_call.1} parent=27 // pred_fallthru
          _
      $region28: #{tpu_custom_call.1} parent=5 // pred_fallthru
        _
      %p258 = scmp.le.s32.totalorder 1, %s13
      %p259 = scmp.lt.s32.totalorder %s13, 3
      %p260 = pnand %p258, %p259
      %p261 = pneg %p260
      // Predicated region
      $region67: #{tpu_custom_call.1} parent=5 // pred_check
        _
      $region68: #{tpu_custom_call.1} parent=5 // pred_check_branch
        %263 = sbr.rel (%p260) target = $region70
      $region69: #{tpu_custom_call.1} parent=5 // pred_region
        %s264 = ssub.s32 %s13, 1
        %s265 = sand.u32 %s26, 1
        %s266 = sand.u32 %s26, 1
        %s267 = smul.addr %s266, 128
        %s268 = scalar_lea.vmem [#allocation2], %s267
        // Predicated region
        $region71: #{tpu_custom_call.1} parent=69 // pred_check
          %p269 = pneg %p39
        $region72: #{tpu_custom_call.1} parent=69 // pred_check_branch
          %271 = sbr.rel (%p269) target = $region74
        $region73: #{tpu_custom_call.1} parent=69 // pred_region
          _
        $region74: #{tpu_custom_call.1} parent=69 // pred_fallthru
          _
        %s272 = sand.u32 %s26, 1
        %s273 = sand.u32 %s26, 1
        %s274 = smul.addr %s273, 128
        %s275 = scalar_lea.vmem [#allocation2], %s274
        %p276 = pneg %p39
        %p277 = pneg %p36
        %p278 = pneg %p60
        %p279 = pneg %p57
        %p280 = pneg %p81
        %p281 = pneg %p78
        %p282 = pneg %p102
        %p283 = pneg %p99
        %p284 = pneg %p128
        %p285 = pneg %p125
        %s286 = sand.u32 %s115, 1
        %s287 = scalar_lea.sflag [#allocation4], %s286
        %s288 = sand.u32 %s115, 1
        %s289 = smul.addr %s288, 2
        %s290 = scalar_lea.vmem [#allocation3], %s289
        %s291 = smul.u32 2, %s18
        %s292 = smul.u32 2, %s18
        %v294 = vld [vmem:[%s268] sm:$0xff]
        %v295 = vld [vmem:[%s268 + $0x8] sm:$0xff]
        %v296 = vld [vmem:[%s268 + $0x10] sm:$0xff]
        %v297 = vld [vmem:[%s268 + $0x18] sm:$0xff]
        %v298 = vld [vmem:[%s268 + $0x20] sm:$0xff]
        %v299 = vld [vmem:[%s268 + $0x28] sm:$0xff]
        %v300 = vld [vmem:[%s268 + $0x30] sm:$0xff]
        %v301 = vld [vmem:[%s268 + $0x38] sm:$0xff]
        %v302 = vld [vmem:[%s268 + $0x40] sm:$0xff]
        %v303 = vld [vmem:[%s268 + $0x48] sm:$0xff]
        %v304 = vld [vmem:[%s268 + $0x50] sm:$0xff]
        %v305 = vld [vmem:[%s268 + $0x58] sm:$0xff]
        %v306 = vld [vmem:[%s268 + $0x60] sm:$0xff]
        %v307 = vld [vmem:[%s268 + $0x68] sm:$0xff]
        %v308 = vld [vmem:[%s268 + $0x70] sm:$0xff]
        %v309 = vld [vmem:[%s268 + $0x78] sm:$0xff]
        %v310 = vunpack.c.l.bf16 %v294
        %v311 = vunpack.c.h.bf16 %v294
        %v312 = vunpack.c.l.bf16 %v295
        %v313 = vunpack.c.h.bf16 %v295
        %v314 = vunpack.c.l.bf16 %v296
        %v315 = vunpack.c.h.bf16 %v296
        %v316 = vunpack.c.l.bf16 %v297
        %v317 = vunpack.c.h.bf16 %v297
        %v318 = vunpack.c.l.bf16 %v298
        %v319 = vunpack.c.h.bf16 %v298
        %v320 = vunpack.c.l.bf16 %v299
        %v321 = vunpack.c.h.bf16 %v299
        %v322 = vunpack.c.l.bf16 %v300
        %v323 = vunpack.c.h.bf16 %v300
        %v324 = vunpack.c.l.bf16 %v301
        %v325 = vunpack.c.h.bf16 %v301
        %v326 = vunpack.c.l.bf16 %v302
        %v327 = vunpack.c.h.bf16 %v302
        %v328 = vunpack.c.l.bf16 %v303
        %v329 = vunpack.c.h.bf16 %v303
        %v330 = vunpack.c.l.bf16 %v304
        %v331 = vunpack.c.h.bf16 %v304
        %v332 = vunpack.c.l.bf16 %v305
        %v333 = vunpack.c.h.bf16 %v305
        %v334 = vunpack.c.l.bf16 %v306
        %v335 = vunpack.c.h.bf16 %v306
        %v336 = vunpack.c.l.bf16 %v307
        %v337 = vunpack.c.h.bf16 %v307
        %v338 = vunpack.c.l.bf16 %v308
        %v339 = vunpack.c.h.bf16 %v308
        %v340 = vunpack.c.l.bf16 %v309
        %v341 = vunpack.c.h.bf16 %v309
        %v342 = vld [vmem:[%s1] sm:$0xf]
        %v343 = vld [vmem:[%s1 + $0x4] sm:$0xf]
        %v344 = vld [vmem:[%s1 + $0x8] sm:$0xf]
        %v345 = vld [vmem:[%s1 + $0xc] sm:$0xf]
        %v346 = vld [vmem:[%s1 + $0x10] sm:$0xf]
        %v347 = vld [vmem:[%s1 + $0x14] sm:$0xf]
        %v348 = vld [vmem:[%s1 + $0x18] sm:$0xf]
        %v349 = vld [vmem:[%s1 + $0x1c] sm:$0xf]
        %v350 = vld [vmem:[%s1 + $0x20] sm:$0xf]
        %v351 = vld [vmem:[%s1 + $0x24] sm:$0xf]
        %v352 = vld [vmem:[%s1 + $0x28] sm:$0xf]
        %v353 = vld [vmem:[%s1 + $0x2c] sm:$0xf]
        %v354 = vld [vmem:[%s1 + $0x30] sm:$0xf]
        %v355 = vld [vmem:[%s1 + $0x34] sm:$0xf]
        %v356 = vld [vmem:[%s1 + $0x38] sm:$0xf]
        %v357 = vld [vmem:[%s1 + $0x3c] sm:$0xf]
        %v358 = vld [vmem:[%s3] sm:$0xff]
        %v359 = vld [vmem:[%s3 + $0x8] sm:$0xff]
        %v360 = vld [vmem:[%s3 + $0x10] sm:$0xff]
        %v361 = vld [vmem:[%s3 + $0x18] sm:$0xff]
        %v362 = vld [vmem:[%s3 + $0x20] sm:$0xff]
        %v363 = vld [vmem:[%s3 + $0x28] sm:$0xff]
        %v364 = vld [vmem:[%s3 + $0x30] sm:$0xff]
        %v365 = vld [vmem:[%s3 + $0x38] sm:$0xff]
        %v366 = vld [vmem:[%s3 + $0x40] sm:$0xff]
        %v367 = vld [vmem:[%s3 + $0x48] sm:$0xff]
        %v368 = vld [vmem:[%s3 + $0x50] sm:$0xff]
        %v369 = vld [vmem:[%s3 + $0x58] sm:$0xff]
        %v370 = vld [vmem:[%s3 + $0x60] sm:$0xff]
        %v371 = vld [vmem:[%s3 + $0x68] sm:$0xff]
        %v372 = vld [vmem:[%s3 + $0x70] sm:$0xff]
        %v373 = vld [vmem:[%s3 + $0x78] sm:$0xff]
        %375 = vset.pattern.permute.xlu0 0
        %376 = vperm.xlu0 %375, %v358
        %v377 = vpop.permute.xlu0 %376
        %380 = vset.pattern.permute.xlu0 0
        %381 = vperm.xlu0 %380, %v359
        %v382 = vpop.permute.xlu0 %381
        %385 = vset.pattern.permute.xlu0 0
        %386 = vperm.xlu0 %385, %v360
        %v387 = vpop.permute.xlu0 %386
        %390 = vset.pattern.permute.xlu0 0
        %391 = vperm.xlu0 %390, %v361
        %v392 = vpop.permute.xlu0 %391
        %395 = vset.pattern.permute.xlu0 0
        %396 = vperm.xlu0 %395, %v362
        %v397 = vpop.permute.xlu0 %396
        %400 = vset.pattern.permute.xlu0 0
        %401 = vperm.xlu0 %400, %v363
        %v402 = vpop.permute.xlu0 %401
        %405 = vset.pattern.permute.xlu0 0
        %406 = vperm.xlu0 %405, %v364
        %v407 = vpop.permute.xlu0 %406
        %410 = vset.pattern.permute.xlu0 0
        %411 = vperm.xlu0 %410, %v365
        %v412 = vpop.permute.xlu0 %411
        %415 = vset.pattern.permute.xlu0 0
        %416 = vperm.xlu0 %415, %v366
        %v417 = vpop.permute.xlu0 %416
        %420 = vset.pattern.permute.xlu0 0
        %421 = vperm.xlu0 %420, %v367
        %v422 = vpop.permute.xlu0 %421
        %425 = vset.pattern.permute.xlu0 0
        %426 = vperm.xlu0 %425, %v368
        %v427 = vpop.permute.xlu0 %426
        %430 = vset.pattern.permute.xlu0 0
        %431 = vperm.xlu0 %430, %v369
        %v432 = vpop.permute.xlu0 %431
        %435 = vset.pattern.permute.xlu0 0
        %436 = vperm.xlu0 %435, %v370
        %v437 = vpop.permute.xlu0 %436
        %440 = vset.pattern.permute.xlu0 0
        %441 = vperm.xlu0 %440, %v371
        %v442 = vpop.permute.xlu0 %441
        %445 = vset.pattern.permute.xlu0 0
        %446 = vperm.xlu0 %445, %v372
        %v447 = vpop.permute.xlu0 %446
        %450 = vset.pattern.permute.xlu0 0
        %451 = vperm.xlu0 %450, %v373
        %v452 = vpop.permute.xlu0 %451
        %v470 = vunpack.c.l.b16 %v342
        %v471 = vunpack.c.l.b16 %v343
        %v472 = vunpack.c.l.b16 %v344
        %v473 = vunpack.c.l.b16 %v345
        %v474 = vunpack.c.l.b16 %v346
        %v475 = vunpack.c.l.b16 %v347
        %v476 = vunpack.c.l.b16 %v348
        %v477 = vunpack.c.l.b16 %v349
        %v478 = vunpack.c.l.b16 %v350
        %v479 = vunpack.c.l.b16 %v351
        %v480 = vunpack.c.l.b16 %v352
        %v481 = vunpack.c.l.b16 %v353
        %v482 = vunpack.c.l.b16 %v354
        %v483 = vunpack.c.l.b16 %v355
        %v484 = vunpack.c.l.b16 %v356
        %v485 = vunpack.c.l.b16 %v357
        %v486 = vpack.c.b16 %v471, %v470
        %v487 = vpack.c.b16 %v473, %v472
        %v488 = vpack.c.b16 %v475, %v474
        %v489 = vpack.c.b16 %v477, %v476
        %v490 = vpack.c.b16 %v479, %v478
        %v491 = vpack.c.b16 %v481, %v480
        %v492 = vpack.c.b16 %v483, %v482
        %v493 = vpack.c.b16 %v485, %v484
        %v518 = vunpack.c.l.b16 %v294
        %v519 = vunpack.c.h.b16 %v294
        %v520 = vunpack.c.l.b16 %v295
        %v521 = vunpack.c.h.b16 %v295
        %v522 = vunpack.c.l.b16 %v296
        %v523 = vunpack.c.h.b16 %v296
        %v524 = vunpack.c.l.b16 %v297
        %v525 = vunpack.c.h.b16 %v297
        %v526 = vunpack.c.l.b16 %v298
        %v527 = vunpack.c.h.b16 %v298
        %v528 = vunpack.c.l.b16 %v299
        %v529 = vunpack.c.h.b16 %v299
        %v530 = vunpack.c.l.b16 %v300
        %v531 = vunpack.c.h.b16 %v300
        %v532 = vunpack.c.l.b16 %v301
        %v533 = vunpack.c.h.b16 %v301
        %v534 = vunpack.c.l.b16 %v302
        %v535 = vunpack.c.h.b16 %v302
        %v536 = vunpack.c.l.b16 %v303
        %v537 = vunpack.c.h.b16 %v303
        %v538 = vunpack.c.l.b16 %v304
        %v539 = vunpack.c.h.b16 %v304
        %v540 = vunpack.c.l.b16 %v305
        %v541 = vunpack.c.h.b16 %v305
        %v542 = vunpack.c.l.b16 %v306
        %v543 = vunpack.c.h.b16 %v306
        %v544 = vunpack.c.l.b16 %v307
        %v545 = vunpack.c.h.b16 %v307
        %v546 = vunpack.c.l.b16 %v308
        %v547 = vunpack.c.h.b16 %v308
        %v548 = vunpack.c.l.b16 %v309
        %v549 = vunpack.c.h.b16 %v309
        %v550 = vpack.c.b16 %v520, %v518
        %v551 = vpack.c.b16 %v521, %v519
        %v552 = vpack.c.b16 %v524, %v522
        %v553 = vpack.c.b16 %v525, %v523
        %v554 = vpack.c.b16 %v528, %v526
        %v555 = vpack.c.b16 %v529, %v527
        %v556 = vpack.c.b16 %v532, %v530
        %v557 = vpack.c.b16 %v533, %v531
        %v558 = vpack.c.b16 %v536, %v534
        %v559 = vpack.c.b16 %v537, %v535
        %v560 = vpack.c.b16 %v540, %v538
        %v561 = vpack.c.b16 %v541, %v539
        %v562 = vpack.c.b16 %v544, %v542
        %v563 = vpack.c.b16 %v545, %v543
        %v564 = vpack.c.b16 %v548, %v546
        %v565 = vpack.c.b16 %v549, %v547
        %582 = vmatprep.subr.bf16.mxu0 %v551
        %583 = vmatpush1.bf16.msra.mxu0 %v550
        %584 = vmatprep.subr.bf16.mxu0 %v553
        %585 = vmatpush1.bf16.msra.mxu0 %v552
        %586 = vmatprep.subr.bf16.mxu0 %v555
        %587 = vmatpush1.bf16.msra.mxu0 %v554
        %588 = vmatprep.subr.bf16.mxu0 %v557
        %589 = vmatpush1.bf16.msra.mxu0 %v556
        %590 = vmatprep.subr.bf16.mxu0 %v559
        %591 = vmatpush1.bf16.msra.mxu0 %v558
        %592 = vmatprep.subr.bf16.mxu0 %v561
        %593 = vmatpush1.bf16.msra.mxu0 %v560
        %594 = vmatprep.subr.bf16.mxu0 %v563
        %595 = vmatpush1.bf16.msra.mxu0 %v562
        %596 = vmatprep.subr.bf16.mxu0 %v565
        %597 = vmatpush1.bf16.msra.mxu0 %v564
        %598 = vmatprep.subr.bf16.mxu0 0
        %599 = vmatpush1.bf16.msra.mxu0 0
        %600 = vmatprep.subr.bf16.mxu0 0
        %601 = vmatpush1.bf16.msra.mxu0 0
        %602 = vmatprep.subr.bf16.mxu0 0
        %603 = vmatpush1.bf16.msra.mxu0 0
        %604 = vmatprep.subr.bf16.mxu0 0
        %605 = vmatpush1.bf16.msra.mxu0 0
        %606 = vmatprep.subr.bf16.mxu0 0
        %607 = vmatpush1.bf16.msra.mxu0 0
        %608 = vmatprep.subr.bf16.mxu0 0
        %609 = vmatpush1.bf16.msra.mxu0 0
        %610 = vmatprep.subr.bf16.mxu0 0
        %611 = vmatpush1.bf16.msra.mxu0 0
        %612 = vmatprep.subr.bf16.mxu0 0
        %613 = vmatpush1.bf16.msra.mxu0 0
        %614 = vmatprep.mubr.bf16.mxu0 0
        %615 = vmatmul.mubr.bf16.gmra.mrb[0].mxu0 %v486
        %v616 = vpop.f32.mrb[0].mxu0
        %v617 = vadd.f32 %v377, %v616
        %v618 = vpop.f32.mrb[0].mxu0
        %v619 = vadd.f32 %v377, %v618
        %v620 = vpop.f32.mrb[0].mxu0
        %v621 = vadd.f32 %v382, %v620
        %v622 = vpop.f32.mrb[0].mxu0
        %v623 = vadd.f32 %v382, %v622
        %624 = vmatprep.mubr.bf16.mxu0 0
        %625 = vmatmul.mubr.bf16.gmra.mrb[0].mxu0 %v487
        %v626 = vpop.f32.mrb[0].mxu0
        %v627 = vadd.f32 %v387, %v626
        %v628 = vpop.f32.mrb[0].mxu0
        %v629 = vadd.f32 %v387, %v628
        %v630 = vpop.f32.mrb[0].mxu0
        %v631 = vadd.f32 %v392, %v630
        %v632 = vpop.f32.mrb[0].mxu0
        %v633 = vadd.f32 %v392, %v632
        %634 = vmatprep.mubr.bf16.mxu0 0
        %635 = vmatmul.mubr.bf16.gmra.mrb[0].mxu0 %v488
        %v636 = vpop.f32.mrb[0].mxu0
        %v637 = vadd.f32 %v397, %v636
        %v638 = vpop.f32.mrb[0].mxu0
        %v639 = vadd.f32 %v397, %v638
        %v640 = vpop.f32.mrb[0].mxu0
        %v641 = vadd.f32 %v402, %v640
        %v642 = vpop.f32.mrb[0].mxu0
        %v643 = vadd.f32 %v402, %v642
        %644 = vmatprep.mubr.bf16.mxu0 0
        %645 = vmatmul.mubr.bf16.gmra.mrb[0].mxu0 %v489
        %v646 = vpop.f32.mrb[0].mxu0
        %v647 = vadd.f32 %v407, %v646
        %v648 = vpop.f32.mrb[0].mxu0
        %v649 = vadd.f32 %v407, %v648
        %v650 = vpop.f32.mrb[0].mxu0
        %v651 = vadd.f32 %v412, %v650
        %v652 = vpop.f32.mrb[0].mxu0
        %v653 = vadd.f32 %v412, %v652
        %654 = vmatprep.mubr.bf16.mxu0 0
        %655 = vmatmul.mubr.bf16.gmra.mrb[0].mxu0 %v490
        %v656 = vpop.f32.mrb[0].mxu0
        %v657 = vadd.f32 %v417, %v656
        %v658 = vpop.f32.mrb[0].mxu0
        %v659 = vadd.f32 %v417, %v658
        %v660 = vpop.f32.mrb[0].mxu0
        %v661 = vadd.f32 %v422, %v660
        %v662 = vpop.f32.mrb[0].mxu0
        %v663 = vadd.f32 %v422, %v662
        %664 = vmatprep.mubr.bf16.mxu0 0
        %665 = vmatmul.mubr.bf16.gmra.mrb[0].mxu0 %v491
        %v666 = vpop.f32.mrb[0].mxu0
        %v667 = vadd.f32 %v427, %v666
        %v668 = vpop.f32.mrb[0].mxu0
        %v669 = vadd.f32 %v427, %v668
        %v670 = vpop.f32.mrb[0].mxu0
        %v671 = vadd.f32 %v432, %v670
        %v672 = vpop.f32.mrb[0].mxu0
        %v673 = vadd.f32 %v432, %v672
        %674 = vmatprep.mubr.bf16.mxu0 0
        %675 = vmatmul.mubr.bf16.gmra.mrb[0].mxu0 %v492
        %v676 = vpop.f32.mrb[0].mxu0
        %v677 = vadd.f32 %v437, %v676
        %v678 = vpop.f32.mrb[0].mxu0
        %v679 = vadd.f32 %v437, %v678
        %v680 = vpop.f32.mrb[0].mxu0
        %v681 = vadd.f32 %v442, %v680
        %v682 = vpop.f32.mrb[0].mxu0
        %v683 = vadd.f32 %v442, %v682
        %684 = vmatprep.mubr.bf16.mxu0 0
        %685 = vmatmul.mubr.bf16.gmra.mrb[0].mxu0 %v493
        %v686 = vpop.f32.mrb[0].mxu0
        %v687 = vadd.f32 %v447, %v686
        %v688 = vpop.f32.mrb[0].mxu0
        %v689 = vadd.f32 %v447, %v688
        %v690 = vpop.f32.mrb[0].mxu0
        %v691 = vadd.f32 %v452, %v690
        %v692 = vpop.f32.mrb[0].mxu0
        %v693 = vadd.f32 %v452, %v692
        %694 = vdwg.mxu0
        %v695 = vmax.f32 %v617, 0.0
        %v696 = vmax.f32 %v619, 0.0
        %v697 = vmax.f32 %v621, 0.0
        %v698 = vmax.f32 %v623, 0.0
        %v699 = vmax.f32 %v627, 0.0
        %v700 = vmax.f32 %v629, 0.0
        %v701 = vmax.f32 %v631, 0.0
        %v702 = vmax.f32 %v633, 0.0
        %v703 = vmax.f32 %v637, 0.0
        %v704 = vmax.f32 %v639, 0.0
        %v705 = vmax.f32 %v641, 0.0
        %v706 = vmax.f32 %v643, 0.0
        %v707 = vmax.f32 %v647, 0.0
        %v708 = vmax.f32 %v649, 0.0
        %v709 = vmax.f32 %v651, 0.0
        %v710 = vmax.f32 %v653, 0.0
        %v711 = vmax.f32 %v657, 0.0
        %v712 = vmax.f32 %v659, 0.0
        %v713 = vmax.f32 %v661, 0.0
        %v714 = vmax.f32 %v663, 0.0
        %v715 = vmax.f32 %v667, 0.0
        %v716 = vmax.f32 %v669, 0.0
        %v717 = vmax.f32 %v671, 0.0
        %v718 = vmax.f32 %v673, 0.0
        %v719 = vmax.f32 %v677, 0.0
        %v720 = vmax.f32 %v679, 0.0
        %v721 = vmax.f32 %v681, 0.0
        %v722 = vmax.f32 %v683, 0.0
        %v723 = vmax.f32 %v687, 0.0
        %v724 = vmax.f32 %v689, 0.0
        %v725 = vmax.f32 %v691, 0.0
        %v726 = vmax.f32 %v693, 0.0
        %s727 = scalar_lea.vmem %s1, 64
        %v728 = vld [vmem:[%s727] sm:$0xf]
        %v729 = vld [vmem:[%s727 + $0x4] sm:$0xf]
        %v730 = vld [vmem:[%s727 + $0x8] sm:$0xf]
        %v731 = vld [vmem:[%s727 + $0xc] sm:$0xf]
        %v732 = vld [vmem:[%s727 + $0x10] sm:$0xf]
        %v733 = vld [vmem:[%s727 + $0x14] sm:$0xf]
        %v734 = vld [vmem:[%s727 + $0x18] sm:$0xf]
        %v735 = vld [vmem:[%s727 + $0x1c] sm:$0xf]
        %v736 = vld [vmem:[%s727 + $0x20] sm:$0xf]
        %v737 = vld [vmem:[%s727 + $0x24] sm:$0xf]
        %v738 = vld [vmem:[%s727 + $0x28] sm:$0xf]
        %v739 = vld [vmem:[%s727 + $0x2c] sm:$0xf]
        %v740 = vld [vmem:[%s727 + $0x30] sm:$0xf]
        %v741 = vld [vmem:[%s727 + $0x34] sm:$0xf]
        %v742 = vld [vmem:[%s727 + $0x38] sm:$0xf]
        %v743 = vld [vmem:[%s727 + $0x3c] sm:$0xf]
        %s744 = scalar_lea.vmem %s3, 256
        %v745 = vld [vmem:[%s744] sm:$0xff]
        %v746 = vld [vmem:[%s744 + $0x8] sm:$0xff]
        %v747 = vld [vmem:[%s744 + $0x10] sm:$0xff]
        %v748 = vld [vmem:[%s744 + $0x18] sm:$0xff]
        %v749 = vld [vmem:[%s744 + $0x20] sm:$0xff]
        %v750 = vld [vmem:[%s744 + $0x28] sm:$0xff]
        %v751 = vld [vmem:[%s744 + $0x30] sm:$0xff]
        %v752 = vld [vmem:[%s744 + $0x38] sm:$0xff]
        %v753 = vld [vmem:[%s744 + $0x40] sm:$0xff]
        %v754 = vld [vmem:[%s744 + $0x48] sm:$0xff]
        %v755 = vld [vmem:[%s744 + $0x50] sm:$0xff]
        %v756 = vld [vmem:[%s744 + $0x58] sm:$0xff]
        %v757 = vld [vmem:[%s744 + $0x60] sm:$0xff]
        %v758 = vld [vmem:[%s744 + $0x68] sm:$0xff]
        %v759 = vld [vmem:[%s744 + $0x70] sm:$0xff]
        %v760 = vld [vmem:[%s744 + $0x78] sm:$0xff]
        %v761 = vpack.c.bf16 %v697, %v695
        %v762 = vpack.c.bf16 %v698, %v696
        %v763 = vpack.c.bf16 %v701, %v699
        %v764 = vpack.c.bf16 %v702, %v700
        %v765 = vpack.c.bf16 %v705, %v703
        %v766 = vpack.c.bf16 %v706, %v704
        %v767 = vpack.c.bf16 %v709, %v707
        %v768 = vpack.c.bf16 %v710, %v708
        %v769 = vpack.c.bf16 %v713, %v711
        %v770 = vpack.c.bf16 %v714, %v712
        %v771 = vpack.c.bf16 %v717, %v715
        %v772 = vpack.c.bf16 %v718, %v716
        %v773 = vpack.c.bf16 %v721, %v719
        %v774 = vpack.c.bf16 %v722, %v720
        %v775 = vpack.c.bf16 %v725, %v723
        %v776 = vpack.c.bf16 %v726, %v724
        %778 = vset.pattern.permute.xlu0 0
        %779 = vperm.xlu0 %778, %v745
        %v780 = vpop.permute.xlu0 %779
        %783 = vset.pattern.permute.xlu0 0
        %784 = vperm.xlu0 %783, %v746
        %v785 = vpop.permute.xlu0 %784
        %788 = vset.pattern.permute.xlu0 0
        %789 = vperm.xlu0 %788, %v747
        %v790 = vpop.permute.xlu0 %789
        %793 = vset.pattern.permute.xlu0 0
        %794 = vperm.xlu0 %793, %v748
        %v795 = vpop.permute.xlu0 %794
        %798 = vset.pattern.permute.xlu0 0
        %799 = vperm.xlu0 %798, %v749
        %v800 = vpop.permute.xlu0 %799
        %803 = vset.pattern.permute.xlu0 0
        %804 = vperm.xlu0 %803, %v750
        %v805 = vpop.permute.xlu0 %804
        %808 = vset.pattern.permute.xlu0 0
        %809 = vperm.xlu0 %808, %v751
        %v810 = vpop.permute.xlu0 %809
        %813 = vset.pattern.permute.xlu0 0
        %814 = vperm.xlu0 %813, %v752
        %v815 = vpop.permute.xlu0 %814
        %818 = vset.pattern.permute.xlu0 0
        %819 = vperm.xlu0 %818, %v753
        %v820 = vpop.permute.xlu0 %819
        %823 = vset.pattern.permute.xlu0 0
        %824 = vperm.xlu0 %823, %v754
        %v825 = vpop.permute.xlu0 %824
        %828 = vset.pattern.permute.xlu0 0
        %829 = vperm.xlu0 %828, %v755
        %v830 = vpop.permute.xlu0 %829
        %833 = vset.pattern.permute.xlu0 0
        %834 = vperm.xlu0 %833, %v756
        %v835 = vpop.permute.xlu0 %834
        %838 = vset.pattern.permute.xlu0 0
        %839 = vperm.xlu0 %838, %v757
        %v840 = vpop.permute.xlu0 %839
        %843 = vset.pattern.permute.xlu0 0
        %844 = vperm.xlu0 %843, %v758
        %v845 = vpop.permute.xlu0 %844
        %848 = vset.pattern.permute.xlu0 0
        %849 = vperm.xlu0 %848, %v759
        %v850 = vpop.permute.xlu0 %849
        %853 = vset.pattern.permute.xlu0 0
        %854 = vperm.xlu0 %853, %v760
        %v855 = vpop.permute.xlu0 %854
        %v873 = vunpack.c.l.b16 %v728
        %v874 = vunpack.c.l.b16 %v729
        %v875 = vunpack.c.l.b16 %v730
        %v876 = vunpack.c.l.b16 %v731
        %v877 = vunpack.c.l.b16 %v732
        %v878 = vunpack.c.l.b16 %v733
        %v879 = vunpack.c.l.b16 %v734
        %v880 = vunpack.c.l.b16 %v735
        %v881 = vunpack.c.l.b16 %v736
        %v882 = vunpack.c.l.b16 %v737
        %v883 = vunpack.c.l.b16 %v738
        %v884 = vunpack.c.l.b16 %v739
        %v885 = vunpack.c.l.b16 %v740
        %v886 = vunpack.c.l.b16 %v741
        %v887 = vunpack.c.l.b16 %v742
        %v888 = vunpack.c.l.b16 %v743
        %v889 = vpack.c.b16 %v874, %v873
        %v890 = vpack.c.b16 %v876, %v875
        %v891 = vpack.c.b16 %v878, %v877
        %v892 = vpack.c.b16 %v880, %v879
        %v893 = vpack.c.b16 %v882, %v881
        %v894 = vpack.c.b16 %v884, %v883
        %v895 = vpack.c.b16 %v886, %v885
        %v896 = vpack.c.b16 %v888, %v887
        %905 = vmatprep.subr.bf16.mxu0 %v762
        %906 = vmatpush1.bf16.msra.mxu0 %v761
        %907 = vmatprep.subr.bf16.mxu0 %v764
        %908 = vmatpush1.bf16.msra.mxu0 %v763
        %909 = vmatprep.subr.bf16.mxu0 %v766
        %910 = vmatpush1.bf16.msra.mxu0 %v765
        %911 = vmatprep.subr.bf16.mxu0 %v768
        %912 = vmatpush1.bf16.msra.mxu0 %v767
        %913 = vmatprep.subr.bf16.mxu0 %v770
        %914 = vmatpush1.bf16.msra.mxu0 %v769
        %915 = vmatprep.subr.bf16.mxu0 %v772
        %916 = vmatpush1.bf16.msra.mxu0 %v771
        %917 = vmatprep.subr.bf16.mxu0 %v774
        %918 = vmatpush1.bf16.msra.mxu0 %v773
        %919 = vmatprep.subr.bf16.mxu0 %v776
        %920 = vmatpush1.bf16.msra.mxu0 %v775
        %921 = vmatprep.subr.bf16.mxu0 0
        %922 = vmatpush1.bf16.msra.mxu0 0
        %923 = vmatprep.subr.bf16.mxu0 0
        %924 = vmatpush1.bf16.msra.mxu0 0
        %925 = vmatprep.subr.bf16.mxu0 0
        %926 = vmatpush1.bf16.msra.mxu0 0
        %927 = vmatprep.subr.bf16.mxu0 0
        %928 = vmatpush1.bf16.msra.mxu0 0
        %929 = vmatprep.subr.bf16.mxu0 0
        %930 = vmatpush1.bf16.msra.mxu0 0
        %931 = vmatprep.subr.bf16.mxu0 0
        %932 = vmatpush1.bf16.msra.mxu0 0
        %933 = vmatprep.subr.bf16.mxu0 0
        %934 = vmatpush1.bf16.msra.mxu0 0
        %935 = vmatprep.subr.bf16.mxu0 0
        %936 = vmatpush1.bf16.msra.mxu0 0
        %937 = vmatprep.mubr.bf16.mxu0 0
        %938 = vmatmul.mubr.bf16.gmra.mrb[0].mxu0 %v889
        %v939 = vpop.f32.mrb[0].mxu0
        %v940 = vadd.f32 %v780, %v939
        %v941 = vpop.f32.mrb[0].mxu0
        %v942 = vadd.f32 %v780, %v941
        %v943 = vpop.f32.mrb[0].mxu0
        %v944 = vadd.f32 %v785, %v943
        %v945 = vpop.f32.mrb[0].mxu0
        %v946 = vadd.f32 %v785, %v945
        %947 = vmatprep.mubr.bf16.mxu0 0
        %948 = vmatmul.mubr.bf16.gmra.mrb[0].mxu0 %v890
        %v949 = vpop.f32.mrb[0].mxu0
        %v950 = vadd.f32 %v790, %v949
        %v951 = vpop.f32.mrb[0].mxu0
        %v952 = vadd.f32 %v790, %v951
        %v953 = vpop.f32.mrb[0].mxu0
        %v954 = vadd.f32 %v795, %v953
        %v955 = vpop.f32.mrb[0].mxu0
        %v956 = vadd.f32 %v795, %v955
        %957 = vmatprep.mubr.bf16.mxu0 0
        %958 = vmatmul.mubr.bf16.gmra.mrb[0].mxu0 %v891
        %v959 = vpop.f32.mrb[0].mxu0
        %v960 = vadd.f32 %v800, %v959
        %v961 = vpop.f32.mrb[0].mxu0
        %v962 = vadd.f32 %v800, %v961
        %v963 = vpop.f32.mrb[0].mxu0
        %v964 = vadd.f32 %v805, %v963
        %v965 = vpop.f32.mrb[0].mxu0
        %v966 = vadd.f32 %v805, %v965
        %967 = vmatprep.mubr.bf16.mxu0 0
        %968 = vmatmul.mubr.bf16.gmra.mrb[0].mxu0 %v892
        %v969 = vpop.f32.mrb[0].mxu0
        %v970 = vadd.f32 %v810, %v969
        %v971 = vpop.f32.mrb[0].mxu0
        %v972 = vadd.f32 %v810, %v971
        %v973 = vpop.f32.mrb[0].mxu0
        %v974 = vadd.f32 %v815, %v973
        %v975 = vpop.f32.mrb[0].mxu0
        %v976 = vadd.f32 %v815, %v975
        %977 = vmatprep.mubr.bf16.mxu0 0
        %978 = vmatmul.mubr.bf16.gmra.mrb[0].mxu0 %v893
        %v979 = vpop.f32.mrb[0].mxu0
        %v980 = vadd.f32 %v820, %v979
        %v981 = vpop.f32.mrb[0].mxu0
        %v982 = vadd.f32 %v820, %v981
        %v983 = vpop.f32.mrb[0].mxu0
        %v984 = vadd.f32 %v825, %v983
        %v985 = vpop.f32.mrb[0].mxu0
        %v986 = vadd.f32 %v825, %v985
        %987 = vmatprep.mubr.bf16.mxu0 0
        %988 = vmatmul.mubr.bf16.gmra.mrb[0].mxu0 %v894
        %v989 = vpop.f32.mrb[0].mxu0
        %v990 = vadd.f32 %v830, %v989
        %v991 = vpop.f32.mrb[0].mxu0
        %v992 = vadd.f32 %v830, %v991
        %v993 = vpop.f32.mrb[0].mxu0
        %v994 = vadd.f32 %v835, %v993
        %v995 = vpop.f32.mrb[0].mxu0
        %v996 = vadd.f32 %v835, %v995
        %997 = vmatprep.mubr.bf16.mxu0 0
        %998 = vmatmul.mubr.bf16.gmra.mrb[0].mxu0 %v895
        %v999 = vpop.f32.mrb[0].mxu0
        %v1000 = vadd.f32 %v840, %v999
        %v1001 = vpop.f32.mrb[0].mxu0
        %v1002 = vadd.f32 %v840, %v1001
        %v1003 = vpop.f32.mrb[0].mxu0
        %v1004 = vadd.f32 %v845, %v1003
        %v1005 = vpop.f32.mrb[0].mxu0
        %v1006 = vadd.f32 %v845, %v1005
        %1007 = vmatprep.mubr.bf16.mxu0 0
        %1008 = vmatmul.mubr.bf16.gmra.mrb[0].mxu0 %v896
        %v1009 = vpop.f32.mrb[0].mxu0
        %v1010 = vadd.f32 %v850, %v1009
        %v1011 = vpop.f32.mrb[0].mxu0
        %v1012 = vadd.f32 %v850, %v1011
        %v1013 = vpop.f32.mrb[0].mxu0
        %v1014 = vadd.f32 %v855, %v1013
        %v1015 = vpop.f32.mrb[0].mxu0
        %v1016 = vadd.f32 %v855, %v1015
        %1017 = vdwg.mxu0
        %v1018 = vmax.f32 %v940, 0.0
        %v1019 = vmax.f32 %v942, 0.0
        %v1020 = vmax.f32 %v944, 0.0
        %v1021 = vmax.f32 %v946, 0.0
        %v1022 = vmax.f32 %v950, 0.0
        %v1023 = vmax.f32 %v952, 0.0
        %v1024 = vmax.f32 %v954, 0.0
        %v1025 = vmax.f32 %v956, 0.0
        %v1026 = vmax.f32 %v960, 0.0
        %v1027 = vmax.f32 %v962, 0.0
        %v1028 = vmax.f32 %v964, 0.0
        %v1029 = vmax.f32 %v966, 0.0
        %v1030 = vmax.f32 %v970, 0.0
        %v1031 = vmax.f32 %v972, 0.0
        %v1032 = vmax.f32 %v974, 0.0
        %v1033 = vmax.f32 %v976, 0.0
        %v1034 = vmax.f32 %v980, 0.0
        %v1035 = vmax.f32 %v982, 0.0
        %v1036 = vmax.f32 %v984, 0.0
        %v1037 = vmax.f32 %v986, 0.0
        %v1038 = vmax.f32 %v990, 0.0
        %v1039 = vmax.f32 %v992, 0.0
        %v1040 = vmax.f32 %v994, 0.0
        %v1041 = vmax.f32 %v996, 0.0
        %v1042 = vmax.f32 %v1000, 0.0
        %v1043 = vmax.f32 %v1002, 0.0
        %v1044 = vmax.f32 %v1004, 0.0
        %v1045 = vmax.f32 %v1006, 0.0
        %v1046 = vmax.f32 %v1010, 0.0
        %v1047 = vmax.f32 %v1012, 0.0
        %v1048 = vmax.f32 %v1014, 0.0
        %v1049 = vmax.f32 %v1016, 0.0
        %v1050 = vadd.f32 %v1018, %v310
        %v1051 = vadd.f32 %v1019, %v311
        %v1052 = vadd.f32 %v1020, %v312
        %v1053 = vadd.f32 %v1021, %v313
        %v1054 = vadd.f32 %v1022, %v314
        %v1055 = vadd.f32 %v1023, %v315
        %v1056 = vadd.f32 %v1024, %v316
        %v1057 = vadd.f32 %v1025, %v317
        %v1058 = vadd.f32 %v1026, %v318
        %v1059 = vadd.f32 %v1027, %v319
        %v1060 = vadd.f32 %v1028, %v320
        %v1061 = vadd.f32 %v1029, %v321
        %v1062 = vadd.f32 %v1030, %v322
        %v1063 = vadd.f32 %v1031, %v323
        %v1064 = vadd.f32 %v1032, %v324
        %v1065 = vadd.f32 %v1033, %v325
        %v1066 = vadd.f32 %v1034, %v326
        %v1067 = vadd.f32 %v1035, %v327
        %v1068 = vadd.f32 %v1036, %v328
        %v1069 = vadd.f32 %v1037, %v329
        %v1070 = vadd.f32 %v1038, %v330
        %v1071 = vadd.f32 %v1039, %v331
        %v1072 = vadd.f32 %v1040, %v332
        %v1073 = vadd.f32 %v1041, %v333
        %v1074 = vadd.f32 %v1042, %v334
        %v1075 = vadd.f32 %v1043, %v335
        %v1076 = vadd.f32 %v1044, %v336
        %v1077 = vadd.f32 %v1045, %v337
        %v1078 = vadd.f32 %v1046, %v338
        %v1079 = vadd.f32 %v1047, %v339
        %v1080 = vadd.f32 %v1048, %v340
        %v1081 = vadd.f32 %v1049, %v341
        %v1082 = vld [vmem:[%s2] sm:$0xf]
        %v1083 = vld [vmem:[%s2 + $0x8] sm:$0xf]
        %v1084 = vld [vmem:[%s2 + $0x10] sm:$0xf]
        %v1085 = vld [vmem:[%s2 + $0x18] sm:$0xf]
        %v1086 = vld [vmem:[%s2 + $0x20] sm:$0xf]
        %v1087 = vld [vmem:[%s2 + $0x28] sm:$0xf]
        %v1088 = vld [vmem:[%s2 + $0x30] sm:$0xf]
        %v1089 = vld [vmem:[%s2 + $0x38] sm:$0xf]
        %v1090 = vld [vmem:[%s2 + $0x40] sm:$0xf]
        %v1091 = vld [vmem:[%s2 + $0x48] sm:$0xf]
        %v1092 = vld [vmem:[%s2 + $0x50] sm:$0xf]
        %v1093 = vld [vmem:[%s2 + $0x58] sm:$0xf]
        %v1094 = vld [vmem:[%s2 + $0x60] sm:$0xf]
        %v1095 = vld [vmem:[%s2 + $0x68] sm:$0xf]
        %v1096 = vld [vmem:[%s2 + $0x70] sm:$0xf]
        %v1097 = vld [vmem:[%s2 + $0x78] sm:$0xf]
        %v1098 = vld [vmem:[%s2 + $0x80] sm:$0xf]
        %v1099 = vld [vmem:[%s2 + $0x88] sm:$0xf]
        %v1100 = vld [vmem:[%s2 + $0x90] sm:$0xf]
        %v1101 = vld [vmem:[%s2 + $0x98] sm:$0xf]
        %v1102 = vld [vmem:[%s2 + $0xa0] sm:$0xf]
        %v1103 = vld [vmem:[%s2 + $0xa8] sm:$0xf]
        %v1104 = vld [vmem:[%s2 + $0xb0] sm:$0xf]
        %v1105 = vld [vmem:[%s2 + $0xb8] sm:$0xf]
        %v1106 = vld [vmem:[%s2 + $0xc0] sm:$0xf]
        %v1107 = vld [vmem:[%s2 + $0xc8] sm:$0xf]
        %v1108 = vld [vmem:[%s2 + $0xd0] sm:$0xf]
        %v1109 = vld [vmem:[%s2 + $0xd8] sm:$0xf]
        %v1110 = vld [vmem:[%s2 + $0xe0] sm:$0xf]
        %v1111 = vld [vmem:[%s2 + $0xe8] sm:$0xf]
        %v1112 = vld [vmem:[%s2 + $0xf0] sm:$0xf]
        %v1113 = vld [vmem:[%s2 + $0xf8] sm:$0xf]
        %s1114 = scalar_lea.vmem %s3, 512
        %v1115 = vld [vmem:[%s1114] sm:$0xff]
        %v1116 = vld [vmem:[%s1114 + $0x8] sm:$0xff]
        %v1117 = vld [vmem:[%s1114 + $0x10] sm:$0xff]
        %v1118 = vld [vmem:[%s1114 + $0x18] sm:$0xff]
        %v1119 = vld [vmem:[%s1114 + $0x20] sm:$0xff]
        %v1120 = vld [vmem:[%s1114 + $0x28] sm:$0xff]
        %v1121 = vld [vmem:[%s1114 + $0x30] sm:$0xff]
        %v1122 = vld [vmem:[%s1114 + $0x38] sm:$0xff]
        %v1123 = vld [vmem:[%s1114 + $0x40] sm:$0xff]
        %v1124 = vld [vmem:[%s1114 + $0x48] sm:$0xff]
        %v1125 = vld [vmem:[%s1114 + $0x50] sm:$0xff]
        %v1126 = vld [vmem:[%s1114 + $0x58] sm:$0xff]
        %v1127 = vld [vmem:[%s1114 + $0x60] sm:$0xff]
        %v1128 = vld [vmem:[%s1114 + $0x68] sm:$0xff]
        %v1129 = vld [vmem:[%s1114 + $0x70] sm:$0xff]
        %v1130 = vld [vmem:[%s1114 + $0x78] sm:$0xff]
        %v1131 = vld [vmem:[%s1114 + $0x80] sm:$0xff]
        %v1132 = vld [vmem:[%s1114 + $0x88] sm:$0xff]
        %v1133 = vld [vmem:[%s1114 + $0x90] sm:$0xff]
        %v1134 = vld [vmem:[%s1114 + $0x98] sm:$0xff]
        %v1135 = vld [vmem:[%s1114 + $0xa0] sm:$0xff]
        %v1136 = vld [vmem:[%s1114 + $0xa8] sm:$0xff]
        %v1137 = vld [vmem:[%s1114 + $0xb0] sm:$0xff]
        %v1138 = vld [vmem:[%s1114 + $0xb8] sm:$0xff]
        %v1139 = vld [vmem:[%s1114 + $0xc0] sm:$0xff]
        %v1140 = vld [vmem:[%s1114 + $0xc8] sm:$0xff]
        %v1141 = vld [vmem:[%s1114 + $0xd0] sm:$0xff]
        %v1142 = vld [vmem:[%s1114 + $0xd8] sm:$0xff]
        %v1143 = vld [vmem:[%s1114 + $0xe0] sm:$0xff]
        %v1144 = vld [vmem:[%s1114 + $0xe8] sm:$0xff]
        %v1145 = vld [vmem:[%s1114 + $0xf0] sm:$0xff]
        %v1146 = vld [vmem:[%s1114 + $0xf8] sm:$0xff]
        %v1147 = vpack.c.bf16 %v1052, %v1050
        %v1148 = vpack.c.bf16 %v1053, %v1051
        %v1149 = vpack.c.bf16 %v1056, %v1054
        %v1150 = vpack.c.bf16 %v1057, %v1055
        %v1151 = vpack.c.bf16 %v1060, %v1058
        %v1152 = vpack.c.bf16 %v1061, %v1059
        %v1153 = vpack.c.bf16 %v1064, %v1062
        %v1154 = vpack.c.bf16 %v1065, %v1063
        %v1155 = vpack.c.bf16 %v1068, %v1066
        %v1156 = vpack.c.bf16 %v1069, %v1067
        %v1157 = vpack.c.bf16 %v1072, %v1070
        %v1158 = vpack.c.bf16 %v1073, %v1071
        %v1159 = vpack.c.bf16 %v1076, %v1074
        %v1160 = vpack.c.bf16 %v1077, %v1075
        %v1161 = vpack.c.bf16 %v1080, %v1078
        %v1162 = vpack.c.bf16 %v1081, %v1079
        %1164 = vset.pattern.permute.xlu0 0
        %1165 = vperm.xlu0 %1164, %v1115
        %v1166 = vpop.permute.xlu0 %1165
        %1169 = vset.pattern.permute.xlu0 0
        %1170 = vperm.xlu0 %1169, %v1116
        %v1171 = vpop.permute.xlu0 %1170
        %1174 = vset.pattern.permute.xlu0 0
        %1175 = vperm.xlu0 %1174, %v1117
        %v1176 = vpop.permute.xlu0 %1175
        %1179 = vset.pattern.permute.xlu0 0
        %1180 = vperm.xlu0 %1179, %v1118
        %v1181 = vpop.permute.xlu0 %1180
        %1184 = vset.pattern.permute.xlu0 0
        %1185 = vperm.xlu0 %1184, %v1119
        %v1186 = vpop.permute.xlu0 %1185
        %1189 = vset.pattern.permute.xlu0 0
        %1190 = vperm.xlu0 %1189, %v1120
        %v1191 = vpop.permute.xlu0 %1190
        %1194 = vset.pattern.permute.xlu0 0
        %1195 = vperm.xlu0 %1194, %v1121
        %v1196 = vpop.permute.xlu0 %1195
        %1199 = vset.pattern.permute.xlu0 0
        %1200 = vperm.xlu0 %1199, %v1122
        %v1201 = vpop.permute.xlu0 %1200
        %1204 = vset.pattern.permute.xlu0 0
        %1205 = vperm.xlu0 %1204, %v1123
        %v1206 = vpop.permute.xlu0 %1205
        %1209 = vset.pattern.permute.xlu0 0
        %1210 = vperm.xlu0 %1209, %v1124
        %v1211 = vpop.permute.xlu0 %1210
        %1214 = vset.pattern.permute.xlu0 0
        %1215 = vperm.xlu0 %1214, %v1125
        %v1216 = vpop.permute.xlu0 %1215
        %1219 = vset.pattern.permute.xlu0 0
        %1220 = vperm.xlu0 %1219, %v1126
        %v1221 = vpop.permute.xlu0 %1220
        %1224 = vset.pattern.permute.xlu0 0
        %1225 = vperm.xlu0 %1224, %v1127
        %v1226 = vpop.permute.xlu0 %1225
        %1229 = vset.pattern.permute.xlu0 0
        %1230 = vperm.xlu0 %1229, %v1128
        %v1231 = vpop.permute.xlu0 %1230
        %1234 = vset.pattern.permute.xlu0 0
        %1235 = vperm.xlu0 %1234, %v1129
        %v1236 = vpop.permute.xlu0 %1235
        %1239 = vset.pattern.permute.xlu0 0
        %1240 = vperm.xlu0 %1239, %v1130
        %v1241 = vpop.permute.xlu0 %1240
        %1244 = vset.pattern.permute.xlu0 0
        %1245 = vperm.xlu0 %1244, %v1131
        %v1246 = vpop.permute.xlu0 %1245
        %1249 = vset.pattern.permute.xlu0 0
        %1250 = vperm.xlu0 %1249, %v1132
        %v1251 = vpop.permute.xlu0 %1250
        %1254 = vset.pattern.permute.xlu0 0
        %1255 = vperm.xlu0 %1254, %v1133
        %v1256 = vpop.permute.xlu0 %1255
        %1259 = vset.pattern.permute.xlu0 0
        %1260 = vperm.xlu0 %1259, %v1134
        %v1261 = vpop.permute.xlu0 %1260
        %1264 = vset.pattern.permute.xlu0 0
        %1265 = vperm.xlu0 %1264, %v1135
        %v1266 = vpop.permute.xlu0 %1265
        %1269 = vset.pattern.permute.xlu0 0
        %1270 = vperm.xlu0 %1269, %v1136
        %v1271 = vpop.permute.xlu0 %1270
        %1274 = vset.pattern.permute.xlu0 0
        %1275 = vperm.xlu0 %1274, %v1137
        %v1276 = vpop.permute.xlu0 %1275
        %1279 = vset.pattern.permute.xlu0 0
        %1280 = vperm.xlu0 %1279, %v1138
        %v1281 = vpop.permute.xlu0 %1280
        %1284 = vset.pattern.permute.xlu0 0
        %1285 = vperm.xlu0 %1284, %v1139
        %v1286 = vpop.permute.xlu0 %1285
        %1289 = vset.pattern.permute.xlu0 0
        %1290 = vperm.xlu0 %1289, %v1140
        %v1291 = vpop.permute.xlu0 %1290
        %1294 = vset.pattern.permute.xlu0 0
        %1295 = vperm.xlu0 %1294, %v1141
        %v1296 = vpop.permute.xlu0 %1295
        %1299 = vset.pattern.permute.xlu0 0
        %1300 = vperm.xlu0 %1299, %v1142
        %v1301 = vpop.permute.xlu0 %1300
        %1304 = vset.pattern.permute.xlu0 0
        %1305 = vperm.xlu0 %1304, %v1143
        %v1306 = vpop.permute.xlu0 %1305
        %1309 = vset.pattern.permute.xlu0 0
        %1310 = vperm.xlu0 %1309, %v1144
        %v1311 = vpop.permute.xlu0 %1310
        %1314 = vset.pattern.permute.xlu0 0
        %1315 = vperm.xlu0 %1314, %v1145
        %v1316 = vpop.permute.xlu0 %1315
        %1319 = vset.pattern.permute.xlu0 0
        %1320 = vperm.xlu0 %1319, %v1146
        %v1321 = vpop.permute.xlu0 %1320
        %v1355 = vunpack.c.l.b16 %v1082
        %v1356 = vunpack.c.l.b16 %v1083
        %v1357 = vunpack.c.l.b16 %v1084
        %v1358 = vunpack.c.l.b16 %v1085
        %v1359 = vunpack.c.l.b16 %v1086
        %v1360 = vunpack.c.l.b16 %v1087
        %v1361 = vunpack.c.l.b16 %v1088
        %v1362 = vunpack.c.l.b16 %v1089
        %v1363 = vunpack.c.l.b16 %v1090
        %v1364 = vunpack.c.l.b16 %v1091
        %v1365 = vunpack.c.l.b16 %v1092
        %v1366 = vunpack.c.l.b16 %v1093
        %v1367 = vunpack.c.l.b16 %v1094
        %v1368 = vunpack.c.l.b16 %v1095
        %v1369 = vunpack.c.l.b16 %v1096
        %v1370 = vunpack.c.l.b16 %v1097
        %v1371 = vunpack.c.l.b16 %v1098
        %v1372 = vunpack.c.l.b16 %v1099
        %v1373 = vunpack.c.l.b16 %v1100
        %v1374 = vunpack.c.l.b16 %v1101
        %v1375 = vunpack.c.l.b16 %v1102
        %v1376 = vunpack.c.l.b16 %v1103
        %v1377 = vunpack.c.l.b16 %v1104
        %v1378 = vunpack.c.l.b16 %v1105
        %v1379 = vunpack.c.l.b16 %v1106
        %v1380 = vunpack.c.l.b16 %v1107
        %v1381 = vunpack.c.l.b16 %v1108
        %v1382 = vunpack.c.l.b16 %v1109
        %v1383 = vunpack.c.l.b16 %v1110
        %v1384 = vunpack.c.l.b16 %v1111
        %v1385 = vunpack.c.l.b16 %v1112
        %v1386 = vunpack.c.l.b16 %v1113
        %v1387 = vpack.c.b16 %v1356, %v1355
        %v1388 = vpack.c.b16 %v1358, %v1357
        %v1389 = vpack.c.b16 %v1360, %v1359
        %v1390 = vpack.c.b16 %v1362, %v1361
        %v1391 = vpack.c.b16 %v1364, %v1363
        %v1392 = vpack.c.b16 %v1366, %v1365
        %v1393 = vpack.c.b16 %v1368, %v1367
        %v1394 = vpack.c.b16 %v1370, %v1369
        %v1395 = vpack.c.b16 %v1372, %v1371
        %v1396 = vpack.c.b16 %v1374, %v1373
        %v1397 = vpack.c.b16 %v1376, %v1375
        %v1398 = vpack.c.b16 %v1378, %v1377
        %v1399 = vpack.c.b16 %v1380, %v1379
        %v1400 = vpack.c.b16 %v1382, %v1381
        %v1401 = vpack.c.b16 %v1384, %v1383
        %v1402 = vpack.c.b16 %v1386, %v1385
        %1419 = vmatprep.subr.bf16.mxu0 %v1148
        %1420 = vmatpush1.bf16.msra.mxu0 %v1147
        %1421 = vmatprep.subr.bf16.mxu0 %v1150
        %1422 = vmatpush1.bf16.msra.mxu0 %v1149
        %1423 = vmatprep.subr.bf16.mxu0 %v1152
        %1424 = vmatpush1.bf16.msra.mxu0 %v1151
        %1425 = vmatprep.subr.bf16.mxu0 %v1154
        %1426 = vmatpush1.bf16.msra.mxu0 %v1153
        %1427 = vmatprep.subr.bf16.mxu0 %v1156
        %1428 = vmatpush1.bf16.msra.mxu0 %v1155
        %1429 = vmatprep.subr.bf16.mxu0 %v1158
        %1430 = vmatpush1.bf16.msra.mxu0 %v1157
        %1431 = vmatprep.subr.bf16.mxu0 %v1160
        %1432 = vmatpush1.bf16.msra.mxu0 %v1159
        %1433 = vmatprep.subr.bf16.mxu0 %v1162
        %1434 = vmatpush1.bf16.msra.mxu0 %v1161
        %1435 = vmatprep.subr.bf16.mxu0 0
        %1436 = vmatpush1.bf16.msra.mxu0 0
        %1437 = vmatprep.subr.bf16.mxu0 0
        %1438 = vmatpush1.bf16.msra.mxu0 0
        %1439 = vmatprep.subr.bf16.mxu0 0
        %1440 = vmatpush1.bf16.msra.mxu0 0
        %1441 = vmatprep.subr.bf16.mxu0 0
        %1442 = vmatpush1.bf16.msra.mxu0 0
        %1443 = vmatprep.subr.bf16.mxu0 0
        %1444 = vmatpush1.bf16.msra.mxu0 0
        %1445 = vmatprep.subr.bf16.mxu0 0
        %1446 = vmatpush1.bf16.msra.mxu0 0
        %1447 = vmatprep.subr.bf16.mxu0 0
        %1448 = vmatpush1.bf16.msra.mxu0 0
        %1449 = vmatprep.subr.bf16.mxu0 0
        %1450 = vmatpush1.bf16.msra.mxu0 0
        %1451 = vmatprep.mubr.bf16.mxu0 0
        %1452 = vmatmul.mubr.bf16.gmra.mrb[0].mxu0 %v1387
        %v1453 = vpop.f32.mrb[0].mxu0
        %v1454 = vadd.f32 %v1166, %v1453
        %v1455 = vpop.f32.mrb[0].mxu0
        %v1456 = vadd.f32 %v1166, %v1455
        %v1457 = vpop.f32.mrb[0].mxu0
        %v1458 = vadd.f32 %v1171, %v1457
        %v1459 = vpop.f32.mrb[0].mxu0
        %v1460 = vadd.f32 %v1171, %v1459
        %1461 = vmatprep.mubr.bf16.mxu0 0
        %1462 = vmatmul.mubr.bf16.gmra.mrb[0].mxu0 %v1388
        %v1463 = vpop.f32.mrb[0].mxu0
        %v1464 = vadd.f32 %v1176, %v1463
        %v1465 = vpop.f32.mrb[0].mxu0
        %v1466 = vadd.f32 %v1176, %v1465
        %v1467 = vpop.f32.mrb[0].mxu0
        %v1468 = vadd.f32 %v1181, %v1467
        %v1469 = vpop.f32.mrb[0].mxu0
        %v1470 = vadd.f32 %v1181, %v1469
        %1471 = vmatprep.mubr.bf16.mxu0 0
        %1472 = vmatmul.mubr.bf16.gmra.mrb[0].mxu0 %v1389
        %v1473 = vpop.f32.mrb[0].mxu0
        %v1474 = vadd.f32 %v1186, %v1473
        %v1475 = vpop.f32.mrb[0].mxu0
        %v1476 = vadd.f32 %v1186, %v1475
        %v1477 = vpop.f32.mrb[0].mxu0
        %v1478 = vadd.f32 %v1191, %v1477
        %v1479 = vpop.f32.mrb[0].mxu0
        %v1480 = vadd.f32 %v1191, %v1479
        %1481 = vmatprep.mubr.bf16.mxu0 0
        %1482 = vmatmul.mubr.bf16.gmra.mrb[0].mxu0 %v1390
        %v1483 = vpop.f32.mrb[0].mxu0
        %v1484 = vadd.f32 %v1196, %v1483
        %v1485 = vpop.f32.mrb[0].mxu0
        %v1486 = vadd.f32 %v1196, %v1485
        %v1487 = vpop.f32.mrb[0].mxu0
        %v1488 = vadd.f32 %v1201, %v1487
        %v1489 = vpop.f32.mrb[0].mxu0
        %v1490 = vadd.f32 %v1201, %v1489
        %1491 = vmatprep.mubr.bf16.mxu0 0
        %1492 = vmatmul.mubr.bf16.gmra.mrb[0].mxu0 %v1391
        %v1493 = vpop.f32.mrb[0].mxu0
        %v1494 = vadd.f32 %v1206, %v1493
        %v1495 = vpop.f32.mrb[0].mxu0
        %v1496 = vadd.f32 %v1206, %v1495
        %v1497 = vpop.f32.mrb[0].mxu0
        %v1498 = vadd.f32 %v1211, %v1497
        %v1499 = vpop.f32.mrb[0].mxu0
        %v1500 = vadd.f32 %v1211, %v1499
        %1501 = vmatprep.mubr.bf16.mxu0 0
        %1502 = vmatmul.mubr.bf16.gmra.mrb[0].mxu0 %v1392
        %v1503 = vpop.f32.mrb[0].mxu0
        %v1504 = vadd.f32 %v1216, %v1503
        %v1505 = vpop.f32.mrb[0].mxu0
        %v1506 = vadd.f32 %v1216, %v1505
        %v1507 = vpop.f32.mrb[0].mxu0
        %v1508 = vadd.f32 %v1221, %v1507
        %v1509 = vpop.f32.mrb[0].mxu0
        %v1510 = vadd.f32 %v1221, %v1509
        %1511 = vmatprep.mubr.bf16.mxu0 0
        %1512 = vmatmul.mubr.bf16.gmra.mrb[0].mxu0 %v1393
        %v1513 = vpop.f32.mrb[0].mxu0
        %v1514 = vadd.f32 %v1226, %v1513
        %v1515 = vpop.f32.mrb[0].mxu0
        %v1516 = vadd.f32 %v1226, %v1515
        %v1517 = vpop.f32.mrb[0].mxu0
        %v1518 = vadd.f32 %v1231, %v1517
        %v1519 = vpop.f32.mrb[0].mxu0
        %v1520 = vadd.f32 %v1231, %v1519
        %1521 = vmatprep.mubr.bf16.mxu0 0
        %1522 = vmatmul.mubr.bf16.gmra.mrb[0].mxu0 %v1394
        %v1523 = vpop.f32.mrb[0].mxu0
        %v1524 = vadd.f32 %v1236, %v1523
        %v1525 = vpop.f32.mrb[0].mxu0
        %v1526 = vadd.f32 %v1236, %v1525
        %v1527 = vpop.f32.mrb[0].mxu0
        %v1528 = vadd.f32 %v1241, %v1527
        %v1529 = vpop.f32.mrb[0].mxu0
        %v1530 = vadd.f32 %v1241, %v1529
        %1531 = vmatprep.mubr.bf16.mxu0 0
        %1532 = vmatmul.mubr.bf16.gmra.mrb[0].mxu0 %v1395
        %v1533 = vpop.f32.mrb[0].mxu0
        %v1534 = vadd.f32 %v1246, %v1533
        %v1535 = vpop.f32.mrb[0].mxu0
        %v1536 = vadd.f32 %v1246, %v1535
        %v1537 = vpop.f32.mrb[0].mxu0
        %v1538 = vadd.f32 %v1251, %v1537
        %v1539 = vpop.f32.mrb[0].mxu0
        %v1540 = vadd.f32 %v1251, %v1539
        %1541 = vmatprep.mubr.bf16.mxu0 0
        %1542 = vmatmul.mubr.bf16.gmra.mrb[0].mxu0 %v1396
        %v1543 = vpop.f32.mrb[0].mxu0
        %v1544 = vadd.f32 %v1256, %v1543
        %v1545 = vpop.f32.mrb[0].mxu0
        %v1546 = vadd.f32 %v1256, %v1545
        %v1547 = vpop.f32.mrb[0].mxu0
        %v1548 = vadd.f32 %v1261, %v1547
        %v1549 = vpop.f32.mrb[0].mxu0
        %v1550 = vadd.f32 %v1261, %v1549
        %1551 = vmatprep.mubr.bf16.mxu0 0
        %1552 = vmatmul.mubr.bf16.gmra.mrb[0].mxu0 %v1397
        %v1553 = vpop.f32.mrb[0].mxu0
        %v1554 = vadd.f32 %v1266, %v1553
        %v1555 = vpop.f32.mrb[0].mxu0
        %v1556 = vadd.f32 %v1266, %v1555
        %v1557 = vpop.f32.mrb[0].mxu0
        %v1558 = vadd.f32 %v1271, %v1557
        %v1559 = vpop.f32.mrb[0].mxu0
        %v1560 = vadd.f32 %v1271, %v1559
        %1561 = vmatprep.mubr.bf16.mxu0 0
        %1562 = vmatmul.mubr.bf16.gmra.mrb[0].mxu0 %v1398
        %v1563 = vpop.f32.mrb[0].mxu0
        %v1564 = vadd.f32 %v1276, %v1563
        %v1565 = vpop.f32.mrb[0].mxu0
        %v1566 = vadd.f32 %v1276, %v1565
        %v1567 = vpop.f32.mrb[0].mxu0
        %v1568 = vadd.f32 %v1281, %v1567
        %v1569 = vpop.f32.mrb[0].mxu0
        %v1570 = vadd.f32 %v1281, %v1569
        %1571 = vmatprep.mubr.bf16.mxu0 0
        %1572 = vmatmul.mubr.bf16.gmra.mrb[0].mxu0 %v1399
        %v1573 = vpop.f32.mrb[0].mxu0
        %v1574 = vadd.f32 %v1286, %v1573
        %v1575 = vpop.f32.mrb[0].mxu0
        %v1576 = vadd.f32 %v1286, %v1575
        %v1577 = vpop.f32.mrb[0].mxu0
        %v1578 = vadd.f32 %v1291, %v1577
        %v1579 = vpop.f32.mrb[0].mxu0
        %v1580 = vadd.f32 %v1291, %v1579
        %1581 = vmatprep.mubr.bf16.mxu0 0
        %1582 = vmatmul.mubr.bf16.gmra.mrb[0].mxu0 %v1400
        %v1583 = vpop.f32.mrb[0].mxu0
        %v1584 = vadd.f32 %v1296, %v1583
        %v1585 = vpop.f32.mrb[0].mxu0
        %v1586 = vadd.f32 %v1296, %v1585
        %v1587 = vpop.f32.mrb[0].mxu0
        %v1588 = vadd.f32 %v1301, %v1587
        %v1589 = vpop.f32.mrb[0].mxu0
        %v1590 = vadd.f32 %v1301, %v1589
        %1591 = vmatprep.mubr.bf16.mxu0 0
        %1592 = vmatmul.mubr.bf16.gmra.mrb[0].mxu0 %v1401
        %v1593 = vpop.f32.mrb[0].mxu0
        %v1594 = vadd.f32 %v1306, %v1593
        %v1595 = vpop.f32.mrb[0].mxu0
        %v1596 = vadd.f32 %v1306, %v1595
        %v1597 = vpop.f32.mrb[0].mxu0
        %v1598 = vadd.f32 %v1311, %v1597
        %v1599 = vpop.f32.mrb[0].mxu0
        %v1600 = vadd.f32 %v1311, %v1599
        %1601 = vmatprep.mubr.bf16.mxu0 0
        %1602 = vmatmul.mubr.bf16.gmra.mrb[0].mxu0 %v1402
        %v1603 = vpop.f32.mrb[0].mxu0
        %v1604 = vadd.f32 %v1316, %v1603
        %v1605 = vpop.f32.mrb[0].mxu0
        %v1606 = vadd.f32 %v1316, %v1605
        %v1607 = vpop.f32.mrb[0].mxu0
        %v1608 = vadd.f32 %v1321, %v1607
        %v1609 = vpop.f32.mrb[0].mxu0
        %v1610 = vadd.f32 %v1321, %v1609
        %1611 = vdwg.mxu0
        %v1612 = vmax.f32 %v1454, 0.0
        %v1613 = vmax.f32 %v1456, 0.0
        %v1614 = vmax.f32 %v1458, 0.0
        %v1615 = vmax.f32 %v1460, 0.0
        %v1616 = vmax.f32 %v1464, 0.0
        %v1617 = vmax.f32 %v1466, 0.0
        %v1618 = vmax.f32 %v1468, 0.0
        %v1619 = vmax.f32 %v1470, 0.0
        %v1620 = vmax.f32 %v1474, 0.0
        %v1621 = vmax.f32 %v1476, 0.0
        %v1622 = vmax.f32 %v1478, 0.0
        %v1623 = vmax.f32 %v1480, 0.0
        %v1624 = vmax.f32 %v1484, 0.0
        %v1625 = vmax.f32 %v1486, 0.0
        %v1626 = vmax.f32 %v1488, 0.0
        %v1627 = vmax.f32 %v1490, 0.0
        %v1628 = vmax.f32 %v1494, 0.0
        %v1629 = vmax.f32 %v1496, 0.0
        %v1630 = vmax.f32 %v1498, 0.0
        %v1631 = vmax.f32 %v1500, 0.0
        %v1632 = vmax.f32 %v1504, 0.0
        %v1633 = vmax.f32 %v1506, 0.0
        %v1634 = vmax.f32 %v1508, 0.0
        %v1635 = vmax.f32 %v1510, 0.0
        %v1636 = vmax.f32 %v1514, 0.0
        %v1637 = vmax.f32 %v1516, 0.0
        %v1638 = vmax.f32 %v1518, 0.0
        %v1639 = vmax.f32 %v1520, 0.0
        %v1640 = vmax.f32 %v1524, 0.0
        %v1641 = vmax.f32 %v1526, 0.0
        %v1642 = vmax.f32 %v1528, 0.0
        %v1643 = vmax.f32 %v1530, 0.0
        %v1644 = vmax.f32 %v1534, 0.0
        %v1645 = vmax.f32 %v1536, 0.0
        %v1646 = vmax.f32 %v1538, 0.0
        %v1647 = vmax.f32 %v1540, 0.0
        %v1648 = vmax.f32 %v1544, 0.0
        %v1649 = vmax.f32 %v1546, 0.0
        %v1650 = vmax.f32 %v1548, 0.0
        %v1651 = vmax.f32 %v1550, 0.0
        %v1652 = vmax.f32 %v1554, 0.0
        %v1653 = vmax.f32 %v1556, 0.0
        %v1654 = vmax.f32 %v1558, 0.0
        %v1655 = vmax.f32 %v1560, 0.0
        %v1656 = vmax.f32 %v1564, 0.0
        %v1657 = vmax.f32 %v1566, 0.0
        %v1658 = vmax.f32 %v1568, 0.0
        %v1659 = vmax.f32 %v1570, 0.0
        %v1660 = vmax.f32 %v1574, 0.0
        %v1661 = vmax.f32 %v1576, 0.0
        %v1662 = vmax.f32 %v1578, 0.0
        %v1663 = vmax.f32 %v1580, 0.0
        %v1664 = vmax.f32 %v1584, 0.0
        %v1665 = vmax.f32 %v1586, 0.0
        %v1666 = vmax.f32 %v1588, 0.0
        %v1667 = vmax.f32 %v1590, 0.0
        %v1668 = vmax.f32 %v1594, 0.0
        %v1669 = vmax.f32 %v1596, 0.0
        %v1670 = vmax.f32 %v1598, 0.0
        %v1671 = vmax.f32 %v1600, 0.0
        %v1672 = vmax.f32 %v1604, 0.0
        %v1673 = vmax.f32 %v1606, 0.0
        %v1674 = vmax.f32 %v1608, 0.0
        %v1675 = vmax.f32 %v1610, 0.0
        %s1676 = scalar_lea.vmem %s2, 256
        %v1677 = vld [vmem:[%s1676] sm:$0xff]
        %v1678 = vld [vmem:[%s1676 + $0x8] sm:$0xff]
        %v1679 = vld [vmem:[%s1676 + $0x10] sm:$0xff]
        %v1680 = vld [vmem:[%s1676 + $0x18] sm:$0xff]
        %v1681 = vld [vmem:[%s1676 + $0x20] sm:$0xff]
        %v1682 = vld [vmem:[%s1676 + $0x28] sm:$0xff]
        %v1683 = vld [vmem:[%s1676 + $0x30] sm:$0xff]
        %v1684 = vld [vmem:[%s1676 + $0x38] sm:$0xff]
        %v1685 = vld [vmem:[%s1676 + $0x40] sm:$0xff]
        %v1686 = vld [vmem:[%s1676 + $0x48] sm:$0xff]
        %v1687 = vld [vmem:[%s1676 + $0x50] sm:$0xff]
        %v1688 = vld [vmem:[%s1676 + $0x58] sm:$0xff]
        %v1689 = vld [vmem:[%s1676 + $0x60] sm:$0xff]
        %v1690 = vld [vmem:[%s1676 + $0x68] sm:$0xff]
        %v1691 = vld [vmem:[%s1676 + $0x70] sm:$0xff]
        %v1692 = vld [vmem:[%s1676 + $0x78] sm:$0xff]
        %v1693 = vld [vmem:[%s1676 + $0x80] sm:$0xff]
        %v1694 = vld [vmem:[%s1676 + $0x88] sm:$0xff]
        %v1695 = vld [vmem:[%s1676 + $0x90] sm:$0xff]
        %v1696 = vld [vmem:[%s1676 + $0x98] sm:$0xff]
        %v1697 = vld [vmem:[%s1676 + $0xa0] sm:$0xff]
        %v1698 = vld [vmem:[%s1676 + $0xa8] sm:$0xff]
        %v1699 = vld [vmem:[%s1676 + $0xb0] sm:$0xff]
        %v1700 = vld [vmem:[%s1676 + $0xb8] sm:$0xff]
        %v1701 = vld [vmem:[%s1676 + $0xc0] sm:$0xff]
        %v1702 = vld [vmem:[%s1676 + $0xc8] sm:$0xff]
        %v1703 = vld [vmem:[%s1676 + $0xd0] sm:$0xff]
        %v1704 = vld [vmem:[%s1676 + $0xd8] sm:$0xff]
        %v1705 = vld [vmem:[%s1676 + $0xe0] sm:$0xff]
        %v1706 = vld [vmem:[%s1676 + $0xe8] sm:$0xff]
        %v1707 = vld [vmem:[%s1676 + $0xf0] sm:$0xff]
        %v1708 = vld [vmem:[%s1676 + $0xf8] sm:$0xff]
        %s1709 = scalar_lea.vmem %s3, 768
        %v1710 = vld [vmem:[%s1709] sm:$0xff]
        %v1711 = vld [vmem:[%s1709 + $0x8] sm:$0xff]
        %v1712 = vld [vmem:[%s1709 + $0x10] sm:$0xff]
        %v1713 = vld [vmem:[%s1709 + $0x18] sm:$0xff]
        %v1714 = vld [vmem:[%s1709 + $0x20] sm:$0xff]
        %v1715 = vld [vmem:[%s1709 + $0x28] sm:$0xff]
        %v1716 = vld [vmem:[%s1709 + $0x30] sm:$0xff]
        %v1717 = vld [vmem:[%s1709 + $0x38] sm:$0xff]
        %v1718 = vld [vmem:[%s1709 + $0x40] sm:$0xff]
        %v1719 = vld [vmem:[%s1709 + $0x48] sm:$0xff]
        %v1720 = vld [vmem:[%s1709 + $0x50] sm:$0xff]
        %v1721 = vld [vmem:[%s1709 + $0x58] sm:$0xff]
        %v1722 = vld [vmem:[%s1709 + $0x60] sm:$0xff]
        %v1723 = vld [vmem:[%s1709 + $0x68] sm:$0xff]
        %v1724 = vld [vmem:[%s1709 + $0x70] sm:$0xff]
        %v1725 = vld [vmem:[%s1709 + $0x78] sm:$0xff]
        %v1726 = vld [vmem:[%s1709 + $0x80] sm:$0xff]
        %v1727 = vld [vmem:[%s1709 + $0x88] sm:$0xff]
        %v1728 = vld [vmem:[%s1709 + $0x90] sm:$0xff]
        %v1729 = vld [vmem:[%s1709 + $0x98] sm:$0xff]
        %v1730 = vld [vmem:[%s1709 + $0xa0] sm:$0xff]
        %v1731 = vld [vmem:[%s1709 + $0xa8] sm:$0xff]
        %v1732 = vld [vmem:[%s1709 + $0xb0] sm:$0xff]
        %v1733 = vld [vmem:[%s1709 + $0xb8] sm:$0xff]
        %v1734 = vld [vmem:[%s1709 + $0xc0] sm:$0xff]
        %v1735 = vld [vmem:[%s1709 + $0xc8] sm:$0xff]
        %v1736 = vld [vmem:[%s1709 + $0xd0] sm:$0xff]
        %v1737 = vld [vmem:[%s1709 + $0xd8] sm:$0xff]
        %v1738 = vld [vmem:[%s1709 + $0xe0] sm:$0xff]
        %v1739 = vld [vmem:[%s1709 + $0xe8] sm:$0xff]
        %v1740 = vld [vmem:[%s1709 + $0xf0] sm:$0xff]
        %v1741 = vld [vmem:[%s1709 + $0xf8] sm:$0xff]
        %v1742 = vpack.c.bf16 %v1614, %v1612
        %v1743 = vpack.c.bf16 %v1615, %v1613
        %v1744 = vpack.c.bf16 %v1618, %v1616
        %v1745 = vpack.c.bf16 %v1619, %v1617
        %v1746 = vpack.c.bf16 %v1622, %v1620
        %v1747 = vpack.c.bf16 %v1623, %v1621
        %v1748 = vpack.c.bf16 %v1626, %v1624
        %v1749 = vpack.c.bf16 %v1627, %v1625
        %v1750 = vpack.c.bf16 %v1630, %v1628
        %v1751 = vpack.c.bf16 %v1631, %v1629
        %v1752 = vpack.c.bf16 %v1634, %v1632
        %v1753 = vpack.c.bf16 %v1635, %v1633
        %v1754 = vpack.c.bf16 %v1638, %v1636
        %v1755 = vpack.c.bf16 %v1639, %v1637
        %v1756 = vpack.c.bf16 %v1642, %v1640
        %v1757 = vpack.c.bf16 %v1643, %v1641
        %v1758 = vpack.c.bf16 %v1646, %v1644
        %v1759 = vpack.c.bf16 %v1647, %v1645
        %v1760 = vpack.c.bf16 %v1650, %v1648
        %v1761 = vpack.c.bf16 %v1651, %v1649
        %v1762 = vpack.c.bf16 %v1654, %v1652
        %v1763 = vpack.c.bf16 %v1655, %v1653
        %v1764 = vpack.c.bf16 %v1658, %v1656
        %v1765 = vpack.c.bf16 %v1659, %v1657
        %v1766 = vpack.c.bf16 %v1662, %v1660
        %v1767 = vpack.c.bf16 %v1663, %v1661
        %v1768 = vpack.c.bf16 %v1666, %v1664
        %v1769 = vpack.c.bf16 %v1667, %v1665
        %v1770 = vpack.c.bf16 %v1670, %v1668
        %v1771 = vpack.c.bf16 %v1671, %v1669
        %v1772 = vpack.c.bf16 %v1674, %v1672
        %v1773 = vpack.c.bf16 %v1675, %v1673
        %1775 = vset.pattern.permute.xlu0 0
        %1776 = vperm.xlu0 %1775, %v1710
        %v1777 = vpop.permute.xlu0 %1776
        %1780 = vset.pattern.permute.xlu0 0
        %1781 = vperm.xlu0 %1780, %v1711
        %v1782 = vpop.permute.xlu0 %1781
        %1785 = vset.pattern.permute.xlu0 0
        %1786 = vperm.xlu0 %1785, %v1712
        %v1787 = vpop.permute.xlu0 %1786
        %1790 = vset.pattern.permute.xlu0 0
        %1791 = vperm.xlu0 %1790, %v1713
        %v1792 = vpop.permute.xlu0 %1791
        %1795 = vset.pattern.permute.xlu0 0
        %1796 = vperm.xlu0 %1795, %v1714
        %v1797 = vpop.permute.xlu0 %1796
        %1800 = vset.pattern.permute.xlu0 0
        %1801 = vperm.xlu0 %1800, %v1715
        %v1802 = vpop.permute.xlu0 %1801
        %1805 = vset.pattern.permute.xlu0 0
        %1806 = vperm.xlu0 %1805, %v1716
        %v1807 = vpop.permute.xlu0 %1806
        %1810 = vset.pattern.permute.xlu0 0
        %1811 = vperm.xlu0 %1810, %v1717
        %v1812 = vpop.permute.xlu0 %1811
        %1815 = vset.pattern.permute.xlu0 0
        %1816 = vperm.xlu0 %1815, %v1718
        %v1817 = vpop.permute.xlu0 %1816
        %1820 = vset.pattern.permute.xlu0 0
        %1821 = vperm.xlu0 %1820, %v1719
        %v1822 = vpop.permute.xlu0 %1821
        %1825 = vset.pattern.permute.xlu0 0
        %1826 = vperm.xlu0 %1825, %v1720
        %v1827 = vpop.permute.xlu0 %1826
        %1830 = vset.pattern.permute.xlu0 0
        %1831 = vperm.xlu0 %1830, %v1721
        %v1832 = vpop.permute.xlu0 %1831
        %1835 = vset.pattern.permute.xlu0 0
        %1836 = vperm.xlu0 %1835, %v1722
        %v1837 = vpop.permute.xlu0 %1836
        %1840 = vset.pattern.permute.xlu0 0
        %1841 = vperm.xlu0 %1840, %v1723
        %v1842 = vpop.permute.xlu0 %1841
        %1845 = vset.pattern.permute.xlu0 0
        %1846 = vperm.xlu0 %1845, %v1724
        %v1847 = vpop.permute.xlu0 %1846
        %1850 = vset.pattern.permute.xlu0 0
        %1851 = vperm.xlu0 %1850, %v1725
        %v1852 = vpop.permute.xlu0 %1851
        %1855 = vset.pattern.permute.xlu0 0
        %1856 = vperm.xlu0 %1855, %v1726
        %v1857 = vpop.permute.xlu0 %1856
        %1860 = vset.pattern.permute.xlu0 0
        %1861 = vperm.xlu0 %1860, %v1727
        %v1862 = vpop.permute.xlu0 %1861
        %1865 = vset.pattern.permute.xlu0 0
        %1866 = vperm.xlu0 %1865, %v1728
        %v1867 = vpop.permute.xlu0 %1866
        %1870 = vset.pattern.permute.xlu0 0
        %1871 = vperm.xlu0 %1870, %v1729
        %v1872 = vpop.permute.xlu0 %1871
        %1875 = vset.pattern.permute.xlu0 0
        %1876 = vperm.xlu0 %1875, %v1730
        %v1877 = vpop.permute.xlu0 %1876
        %1880 = vset.pattern.permute.xlu0 0
        %1881 = vperm.xlu0 %1880, %v1731
        %v1882 = vpop.permute.xlu0 %1881
        %1885 = vset.pattern.permute.xlu0 0
        %1886 = vperm.xlu0 %1885, %v1732
        %v1887 = vpop.permute.xlu0 %1886
        %1890 = vset.pattern.permute.xlu0 0
        %1891 = vperm.xlu0 %1890, %v1733
        %v1892 = vpop.permute.xlu0 %1891
        %1895 = vset.pattern.permute.xlu0 0
        %1896 = vperm.xlu0 %1895, %v1734
        %v1897 = vpop.permute.xlu0 %1896
        %1900 = vset.pattern.permute.xlu0 0
        %1901 = vperm.xlu0 %1900, %v1735
        %v1902 = vpop.permute.xlu0 %1901
        %1905 = vset.pattern.permute.xlu0 0
        %1906 = vperm.xlu0 %1905, %v1736
        %v1907 = vpop.permute.xlu0 %1906
        %1910 = vset.pattern.permute.xlu0 0
        %1911 = vperm.xlu0 %1910, %v1737
        %v1912 = vpop.permute.xlu0 %1911
        %1915 = vset.pattern.permute.xlu0 0
        %1916 = vperm.xlu0 %1915, %v1738
        %v1917 = vpop.permute.xlu0 %1916
        %1920 = vset.pattern.permute.xlu0 0
        %1921 = vperm.xlu0 %1920, %v1739
        %v1922 = vpop.permute.xlu0 %1921
        %1925 = vset.pattern.permute.xlu0 0
        %1926 = vperm.xlu0 %1925, %v1740
        %v1927 = vpop.permute.xlu0 %1926
        %1930 = vset.pattern.permute.xlu0 0
        %1931 = vperm.xlu0 %1930, %v1741
        %v1932 = vpop.permute.xlu0 %1931
        %v1966 = vunpack.c.l.b16 %v1677
        %v1967 = vunpack.c.h.b16 %v1677
        %v1968 = vunpack.c.l.b16 %v1678
        %v1969 = vunpack.c.h.b16 %v1678
        %v1970 = vunpack.c.l.b16 %v1679
        %v1971 = vunpack.c.h.b16 %v1679
        %v1972 = vunpack.c.l.b16 %v1680
        %v1973 = vunpack.c.h.b16 %v1680
        %v1974 = vunpack.c.l.b16 %v1681
        %v1975 = vunpack.c.h.b16 %v1681
        %v1976 = vunpack.c.l.b16 %v1682
        %v1977 = vunpack.c.h.b16 %v1682
        %v1978 = vunpack.c.l.b16 %v1683
        %v1979 = vunpack.c.h.b16 %v1683
        %v1980 = vunpack.c.l.b16 %v1684
        %v1981 = vunpack.c.h.b16 %v1684
        %v1982 = vunpack.c.l.b16 %v1685
        %v1983 = vunpack.c.h.b16 %v1685
        %v1984 = vunpack.c.l.b16 %v1686
        %v1985 = vunpack.c.h.b16 %v1686
        %v1986 = vunpack.c.l.b16 %v1687
        %v1987 = vunpack.c.h.b16 %v1687
        %v1988 = vunpack.c.l.b16 %v1688
        %v1989 = vunpack.c.h.b16 %v1688
        %v1990 = vunpack.c.l.b16 %v1689
        %v1991 = vunpack.c.h.b16 %v1689
        %v1992 = vunpack.c.l.b16 %v1690
        %v1993 = vunpack.c.h.b16 %v1690
        %v1994 = vunpack.c.l.b16 %v1691
        %v1995 = vunpack.c.h.b16 %v1691
        %v1996 = vunpack.c.l.b16 %v1692
        %v1997 = vunpack.c.h.b16 %v1692
        %v1998 = vunpack.c.l.b16 %v1693
        %v1999 = vunpack.c.h.b16 %v1693
        %v2000 = vunpack.c.l.b16 %v1694
        %v2001 = vunpack.c.h.b16 %v1694
        %v2002 = vunpack.c.l.b16 %v1695
        %v2003 = vunpack.c.h.b16 %v1695
        %v2004 = vunpack.c.l.b16 %v1696
        %v2005 = vunpack.c.h.b16 %v1696
        %v2006 = vunpack.c.l.b16 %v1697
        %v2007 = vunpack.c.h.b16 %v1697
        %v2008 = vunpack.c.l.b16 %v1698
        %v2009 = vunpack.c.h.b16 %v1698
        %v2010 = vunpack.c.l.b16 %v1699
        %v2011 = vunpack.c.h.b16 %v1699
        %v2012 = vunpack.c.l.b16 %v1700
        %v2013 = vunpack.c.h.b16 %v1700
        %v2014 = vunpack.c.l.b16 %v1701
        %v2015 = vunpack.c.h.b16 %v1701
        %v2016 = vunpack.c.l.b16 %v1702
        %v2017 = vunpack.c.h.b16 %v1702
        %v2018 = vunpack.c.l.b16 %v1703
        %v2019 = vunpack.c.h.b16 %v1703
        %v2020 = vunpack.c.l.b16 %v1704
        %v2021 = vunpack.c.h.b16 %v1704
        %v2022 = vunpack.c.l.b16 %v1705
        %v2023 = vunpack.c.h.b16 %v1705
        %v2024 = vunpack.c.l.b16 %v1706
        %v2025 = vunpack.c.h.b16 %v1706
        %v2026 = vunpack.c.l.b16 %v1707
        %v2027 = vunpack.c.h.b16 %v1707
        %v2028 = vunpack.c.l.b16 %v1708
        %v2029 = vunpack.c.h.b16 %v1708
        %v2030 = vpack.c.b16 %v1968, %v1966
        %v2031 = vpack.c.b16 %v1969, %v1967
        %v2032 = vpack.c.b16 %v1972, %v1970
        %v2033 = vpack.c.b16 %v1973, %v1971
        %v2034 = vpack.c.b16 %v1976, %v1974
        %v2035 = vpack.c.b16 %v1977, %v1975
        %v2036 = vpack.c.b16 %v1980, %v1978
        %v2037 = vpack.c.b16 %v1981, %v1979
        %v2038 = vpack.c.b16 %v1984, %v1982
        %v2039 = vpack.c.b16 %v1985, %v1983
        %v2040 = vpack.c.b16 %v1988, %v1986
        %v2041 = vpack.c.b16 %v1989, %v1987
        %v2042 = vpack.c.b16 %v1992, %v1990
        %v2043 = vpack.c.b16 %v1993, %v1991
        %v2044 = vpack.c.b16 %v1996, %v1994
        %v2045 = vpack.c.b16 %v1997, %v1995
        %v2046 = vpack.c.b16 %v2000, %v1998
        %v2047 = vpack.c.b16 %v2001, %v1999
        %v2048 = vpack.c.b16 %v2004, %v2002
        %v2049 = vpack.c.b16 %v2005, %v2003
        %v2050 = vpack.c.b16 %v2008, %v2006
        %v2051 = vpack.c.b16 %v2009, %v2007
        %v2052 = vpack.c.b16 %v2012, %v2010
        %v2053 = vpack.c.b16 %v2013, %v2011
        %v2054 = vpack.c.b16 %v2016, %v2014
        %v2055 = vpack.c.b16 %v2017, %v2015
        %v2056 = vpack.c.b16 %v2020, %v2018
        %v2057 = vpack.c.b16 %v2021, %v2019
        %v2058 = vpack.c.b16 %v2024, %v2022
        %v2059 = vpack.c.b16 %v2025, %v2023
        %v2060 = vpack.c.b16 %v2028, %v2026
        %v2061 = vpack.c.b16 %v2029, %v2027
        %2094 = vmatprep.subr.bf16.mxu0 %v1743
        %2095 = vmatpush1.bf16.msra.mxu0 %v1742
        %2096 = vmatprep.subr.bf16.mxu0 %v1745
        %2097 = vmatpush1.bf16.msra.mxu0 %v1744
        %2098 = vmatprep.subr.bf16.mxu0 %v1747
        %2099 = vmatpush1.bf16.msra.mxu0 %v1746
        %2100 = vmatprep.subr.bf16.mxu0 %v1749
        %2101 = vmatpush1.bf16.msra.mxu0 %v1748
        %2102 = vmatprep.subr.bf16.mxu0 %v1751
        %2103 = vmatpush1.bf16.msra.mxu0 %v1750
        %2104 = vmatprep.subr.bf16.mxu0 %v1753
        %2105 = vmatpush1.bf16.msra.mxu0 %v1752
        %2106 = vmatprep.subr.bf16.mxu0 %v1755
        %2107 = vmatpush1.bf16.msra.mxu0 %v1754
        %2108 = vmatprep.subr.bf16.mxu0 %v1757
        %2109 = vmatpush1.bf16.msra.mxu0 %v1756
        %2110 = vmatprep.subr.bf16.mxu0 %v1759
        %2111 = vmatpush1.bf16.msra.mxu0 %v1758
        %2112 = vmatprep.subr.bf16.mxu0 %v1761
        %2113 = vmatpush1.bf16.msra.mxu0 %v1760
        %2114 = vmatprep.subr.bf16.mxu0 %v1763
        %2115 = vmatpush1.bf16.msra.mxu0 %v1762
        %2116 = vmatprep.subr.bf16.mxu0 %v1765
        %2117 = vmatpush1.bf16.msra.mxu0 %v1764
        %2118 = vmatprep.subr.bf16.mxu0 %v1767
        %2119 = vmatpush1.bf16.msra.mxu0 %v1766
        %2120 = vmatprep.subr.bf16.mxu0 %v1769
        %2121 = vmatpush1.bf16.msra.mxu0 %v1768
        %2122 = vmatprep.subr.bf16.mxu0 %v1771
        %2123 = vmatpush1.bf16.msra.mxu0 %v1770
        %2124 = vmatprep.subr.bf16.mxu0 %v1773
        %2125 = vmatpush1.bf16.msra.mxu0 %v1772
        %2126 = vmatprep.mubr.bf16.mxu0 %v2031
        %2127 = vmatmul.mubr.bf16.gmra.mrb[0].mxu0 %v2030
        %v2128 = vpop.f32.mrb[0].mxu0
        %v2129 = vadd.f32 %v1777, %v2128
        %v2130 = vpop.f32.mrb[0].mxu0
        %v2131 = vadd.f32 %v1777, %v2130
        %v2132 = vpop.f32.mrb[0].mxu0
        %v2133 = vadd.f32 %v1782, %v2132
        %v2134 = vpop.f32.mrb[0].mxu0
        %v2135 = vadd.f32 %v1782, %v2134
        %2136 = vmatprep.mubr.bf16.mxu0 %v2033
        %2137 = vmatmul.mubr.bf16.gmra.mrb[0].mxu0 %v2032
        %v2138 = vpop.f32.mrb[0].mxu0
        %v2139 = vadd.f32 %v1787, %v2138
        %v2140 = vpop.f32.mrb[0].mxu0
        %v2141 = vadd.f32 %v1787, %v2140
        %v2142 = vpop.f32.mrb[0].mxu0
        %v2143 = vadd.f32 %v1792, %v2142
        %v2144 = vpop.f32.mrb[0].mxu0
        %v2145 = vadd.f32 %v1792, %v2144
        %2146 = vmatprep.mubr.bf16.mxu0 %v2035
        %2147 = vmatmul.mubr.bf16.gmra.mrb[0].mxu0 %v2034
        %v2148 = vpop.f32.mrb[0].mxu0
        %v2149 = vadd.f32 %v1797, %v2148
        %v2150 = vpop.f32.mrb[0].mxu0
        %v2151 = vadd.f32 %v1797, %v2150
        %v2152 = vpop.f32.mrb[0].mxu0
        %v2153 = vadd.f32 %v1802, %v2152
        %v2154 = vpop.f32.mrb[0].mxu0
        %v2155 = vadd.f32 %v1802, %v2154
        %2156 = vmatprep.mubr.bf16.mxu0 %v2037
        %2157 = vmatmul.mubr.bf16.gmra.mrb[0].mxu0 %v2036
        %v2158 = vpop.f32.mrb[0].mxu0
        %v2159 = vadd.f32 %v1807, %v2158
        %v2160 = vpop.f32.mrb[0].mxu0
        %v2161 = vadd.f32 %v1807, %v2160
        %v2162 = vpop.f32.mrb[0].mxu0
        %v2163 = vadd.f32 %v1812, %v2162
        %v2164 = vpop.f32.mrb[0].mxu0
        %v2165 = vadd.f32 %v1812, %v2164
        %2166 = vmatprep.mubr.bf16.mxu0 %v2039
        %2167 = vmatmul.mubr.bf16.gmra.mrb[0].mxu0 %v2038
        %v2168 = vpop.f32.mrb[0].mxu0
        %v2169 = vadd.f32 %v1817, %v2168
        %v2170 = vpop.f32.mrb[0].mxu0
        %v2171 = vadd.f32 %v1817, %v2170
        %v2172 = vpop.f32.mrb[0].mxu0
        %v2173 = vadd.f32 %v1822, %v2172
        %v2174 = vpop.f32.mrb[0].mxu0
        %v2175 = vadd.f32 %v1822, %v2174
        %2176 = vmatprep.mubr.bf16.mxu0 %v2041
        %2177 = vmatmul.mubr.bf16.gmra.mrb[0].mxu0 %v2040
        %v2178 = vpop.f32.mrb[0].mxu0
        %v2179 = vadd.f32 %v1827, %v2178
        %v2180 = vpop.f32.mrb[0].mxu0
        %v2181 = vadd.f32 %v1827, %v2180
        %v2182 = vpop.f32.mrb[0].mxu0
        %v2183 = vadd.f32 %v1832, %v2182
        %v2184 = vpop.f32.mrb[0].mxu0
        %v2185 = vadd.f32 %v1832, %v2184
        %2186 = vmatprep.mubr.bf16.mxu0 %v2043
        %2187 = vmatmul.mubr.bf16.gmra.mrb[0].mxu0 %v2042
        %v2188 = vpop.f32.mrb[0].mxu0
        %v2189 = vadd.f32 %v1837, %v2188
        %v2190 = vpop.f32.mrb[0].mxu0
        %v2191 = vadd.f32 %v1837, %v2190
        %v2192 = vpop.f32.mrb[0].mxu0
        %v2193 = vadd.f32 %v1842, %v2192
        %v2194 = vpop.f32.mrb[0].mxu0
        %v2195 = vadd.f32 %v1842, %v2194
        %2196 = vmatprep.mubr.bf16.mxu0 %v2045
        %2197 = vmatmul.mubr.bf16.gmra.mrb[0].mxu0 %v2044
        %v2198 = vpop.f32.mrb[0].mxu0
        %v2199 = vadd.f32 %v1847, %v2198
        %v2200 = vpop.f32.mrb[0].mxu0
        %v2201 = vadd.f32 %v1847, %v2200
        %v2202 = vpop.f32.mrb[0].mxu0
        %v2203 = vadd.f32 %v1852, %v2202
        %v2204 = vpop.f32.mrb[0].mxu0
        %v2205 = vadd.f32 %v1852, %v2204
        %2206 = vmatprep.mubr.bf16.mxu0 %v2047
        %2207 = vmatmul.mubr.bf16.gmra.mrb[0].mxu0 %v2046
        %v2208 = vpop.f32.mrb[0].mxu0
        %v2209 = vadd.f32 %v1857, %v2208
        %v2210 = vpop.f32.mrb[0].mxu0
        %v2211 = vadd.f32 %v1857, %v2210
        %v2212 = vpop.f32.mrb[0].mxu0
        %v2213 = vadd.f32 %v1862, %v2212
        %v2214 = vpop.f32.mrb[0].mxu0
        %v2215 = vadd.f32 %v1862, %v2214
        %2216 = vmatprep.mubr.bf16.mxu0 %v2049
        %2217 = vmatmul.mubr.bf16.gmra.mrb[0].mxu0 %v2048
        %v2218 = vpop.f32.mrb[0].mxu0
        %v2219 = vadd.f32 %v1867, %v2218
        %v2220 = vpop.f32.mrb[0].mxu0
        %v2221 = vadd.f32 %v1867, %v2220
        %v2222 = vpop.f32.mrb[0].mxu0
        %v2223 = vadd.f32 %v1872, %v2222
        %v2224 = vpop.f32.mrb[0].mxu0
        %v2225 = vadd.f32 %v1872, %v2224
        %2226 = vmatprep.mubr.bf16.mxu0 %v2051
        %2227 = vmatmul.mubr.bf16.gmra.mrb[0].mxu0 %v2050
        %v2228 = vpop.f32.mrb[0].mxu0
        %v2229 = vadd.f32 %v1877, %v2228
        %v2230 = vpop.f32.mrb[0].mxu0
        %v2231 = vadd.f32 %v1877, %v2230
        %v2232 = vpop.f32.mrb[0].mxu0
        %v2233 = vadd.f32 %v1882, %v2232
        %v2234 = vpop.f32.mrb[0].mxu0
        %v2235 = vadd.f32 %v1882, %v2234
        %2236 = vmatprep.mubr.bf16.mxu0 %v2053
        %2237 = vmatmul.mubr.bf16.gmra.mrb[0].mxu0 %v2052
        %v2238 = vpop.f32.mrb[0].mxu0
        %v2239 = vadd.f32 %v1887, %v2238
        %v2240 = vpop.f32.mrb[0].mxu0
        %v2241 = vadd.f32 %v1887, %v2240
        %v2242 = vpop.f32.mrb[0].mxu0
        %v2243 = vadd.f32 %v1892, %v2242
        %v2244 = vpop.f32.mrb[0].mxu0
        %v2245 = vadd.f32 %v1892, %v2244
        %2246 = vmatprep.mubr.bf16.mxu0 %v2055
        %2247 = vmatmul.mubr.bf16.gmra.mrb[0].mxu0 %v2054
        %v2248 = vpop.f32.mrb[0].mxu0
        %v2249 = vadd.f32 %v1897, %v2248
        %v2250 = vpop.f32.mrb[0].mxu0
        %v2251 = vadd.f32 %v1897, %v2250
        %v2252 = vpop.f32.mrb[0].mxu0
        %v2253 = vadd.f32 %v1902, %v2252
        %v2254 = vpop.f32.mrb[0].mxu0
        %v2255 = vadd.f32 %v1902, %v2254
        %2256 = vmatprep.mubr.bf16.mxu0 %v2057
        %2257 = vmatmul.mubr.bf16.gmra.mrb[0].mxu0 %v2056
        %v2258 = vpop.f32.mrb[0].mxu0
        %v2259 = vadd.f32 %v1907, %v2258
        %v2260 = vpop.f32.mrb[0].mxu0
        %v2261 = vadd.f32 %v1907, %v2260
        %v2262 = vpop.f32.mrb[0].mxu0
        %v2263 = vadd.f32 %v1912, %v2262
        %v2264 = vpop.f32.mrb[0].mxu0
        %v2265 = vadd.f32 %v1912, %v2264
        %2266 = vmatprep.mubr.bf16.mxu0 %v2059
        %2267 = vmatmul.mubr.bf16.gmra.mrb[0].mxu0 %v2058
        %v2268 = vpop.f32.mrb[0].mxu0
        %v2269 = vadd.f32 %v1917, %v2268
        %v2270 = vpop.f32.mrb[0].mxu0
        %v2271 = vadd.f32 %v1917, %v2270
        %v2272 = vpop.f32.mrb[0].mxu0
        %v2273 = vadd.f32 %v1922, %v2272
        %v2274 = vpop.f32.mrb[0].mxu0
        %v2275 = vadd.f32 %v1922, %v2274
        %2276 = vmatprep.mubr.bf16.mxu0 %v2061
        %2277 = vmatmul.mubr.bf16.gmra.mrb[0].mxu0 %v2060
        %v2278 = vpop.f32.mrb[0].mxu0
        %v2279 = vadd.f32 %v1927, %v2278
        %v2280 = vpop.f32.mrb[0].mxu0
        %v2281 = vadd.f32 %v1927, %v2280
        %v2282 = vpop.f32.mrb[0].mxu0
        %v2283 = vadd.f32 %v1932, %v2282
        %v2284 = vpop.f32.mrb[0].mxu0
        %v2285 = vadd.f32 %v1932, %v2284
        %2286 = vdwg.mxu0
        %v2287 = vmax.f32 %v2129, 0.0
        %v2288 = vmax.f32 %v2131, 0.0
        %v2289 = vmax.f32 %v2133, 0.0
        %v2290 = vmax.f32 %v2135, 0.0
        %v2291 = vmax.f32 %v2139, 0.0
        %v2292 = vmax.f32 %v2141, 0.0
        %v2293 = vmax.f32 %v2143, 0.0
        %v2294 = vmax.f32 %v2145, 0.0
        %v2295 = vmax.f32 %v2149, 0.0
        %v2296 = vmax.f32 %v2151, 0.0
        %v2297 = vmax.f32 %v2153, 0.0
        %v2298 = vmax.f32 %v2155, 0.0
        %v2299 = vmax.f32 %v2159, 0.0
        %v2300 = vmax.f32 %v2161, 0.0
        %v2301 = vmax.f32 %v2163, 0.0
        %v2302 = vmax.f32 %v2165, 0.0
        %v2303 = vmax.f32 %v2169, 0.0
        %v2304 = vmax.f32 %v2171, 0.0
        %v2305 = vmax.f32 %v2173, 0.0
        %v2306 = vmax.f32 %v2175, 0.0
        %v2307 = vmax.f32 %v2179, 0.0
        %v2308 = vmax.f32 %v2181, 0.0
        %v2309 = vmax.f32 %v2183, 0.0
        %v2310 = vmax.f32 %v2185, 0.0
        %v2311 = vmax.f32 %v2189, 0.0
        %v2312 = vmax.f32 %v2191, 0.0
        %v2313 = vmax.f32 %v2193, 0.0
        %v2314 = vmax.f32 %v2195, 0.0
        %v2315 = vmax.f32 %v2199, 0.0
        %v2316 = vmax.f32 %v2201, 0.0
        %v2317 = vmax.f32 %v2203, 0.0
        %v2318 = vmax.f32 %v2205, 0.0
        %v2319 = vmax.f32 %v2209, 0.0
        %v2320 = vmax.f32 %v2211, 0.0
        %v2321 = vmax.f32 %v2213, 0.0
        %v2322 = vmax.f32 %v2215, 0.0
        %v2323 = vmax.f32 %v2219, 0.0
        %v2324 = vmax.f32 %v2221, 0.0
        %v2325 = vmax.f32 %v2223, 0.0
        %v2326 = vmax.f32 %v2225, 0.0
        %v2327 = vmax.f32 %v2229, 0.0
        %v2328 = vmax.f32 %v2231, 0.0
        %v2329 = vmax.f32 %v2233, 0.0
        %v2330 = vmax.f32 %v2235, 0.0
        %v2331 = vmax.f32 %v2239, 0.0
        %v2332 = vmax.f32 %v2241, 0.0
        %v2333 = vmax.f32 %v2243, 0.0
        %v2334 = vmax.f32 %v2245, 0.0
        %v2335 = vmax.f32 %v2249, 0.0
        %v2336 = vmax.f32 %v2251, 0.0
        %v2337 = vmax.f32 %v2253, 0.0
        %v2338 = vmax.f32 %v2255, 0.0
        %v2339 = vmax.f32 %v2259, 0.0
        %v2340 = vmax.f32 %v2261, 0.0
        %v2341 = vmax.f32 %v2263, 0.0
        %v2342 = vmax.f32 %v2265, 0.0
        %v2343 = vmax.f32 %v2269, 0.0
        %v2344 = vmax.f32 %v2271, 0.0
        %v2345 = vmax.f32 %v2273, 0.0
        %v2346 = vmax.f32 %v2275, 0.0
        %v2347 = vmax.f32 %v2279, 0.0
        %v2348 = vmax.f32 %v2281, 0.0
        %v2349 = vmax.f32 %v2283, 0.0
        %v2350 = vmax.f32 %v2285, 0.0
        %s2351 = scalar_lea.vmem %s2, 512
        %v2352 = vld [vmem:[%s2351] sm:$0xff]
        %v2353 = vld [vmem:[%s2351 + $0x8] sm:$0xff]
        %v2354 = vld [vmem:[%s2351 + $0x10] sm:$0xff]
        %v2355 = vld [vmem:[%s2351 + $0x18] sm:$0xff]
        %v2356 = vld [vmem:[%s2351 + $0x20] sm:$0xff]
        %v2357 = vld [vmem:[%s2351 + $0x28] sm:$0xff]
        %v2358 = vld [vmem:[%s2351 + $0x30] sm:$0xff]
        %v2359 = vld [vmem:[%s2351 + $0x38] sm:$0xff]
        %v2360 = vld [vmem:[%s2351 + $0x40] sm:$0xff]
        %v2361 = vld [vmem:[%s2351 + $0x48] sm:$0xff]
        %v2362 = vld [vmem:[%s2351 + $0x50] sm:$0xff]
        %v2363 = vld [vmem:[%s2351 + $0x58] sm:$0xff]
        %v2364 = vld [vmem:[%s2351 + $0x60] sm:$0xff]
        %v2365 = vld [vmem:[%s2351 + $0x68] sm:$0xff]
        %v2366 = vld [vmem:[%s2351 + $0x70] sm:$0xff]
        %v2367 = vld [vmem:[%s2351 + $0x78] sm:$0xff]
        %v2368 = vld [vmem:[%s2351 + $0x80] sm:$0xff]
        %v2369 = vld [vmem:[%s2351 + $0x88] sm:$0xff]
        %v2370 = vld [vmem:[%s2351 + $0x90] sm:$0xff]
        %v2371 = vld [vmem:[%s2351 + $0x98] sm:$0xff]
        %v2372 = vld [vmem:[%s2351 + $0xa0] sm:$0xff]
        %v2373 = vld [vmem:[%s2351 + $0xa8] sm:$0xff]
        %v2374 = vld [vmem:[%s2351 + $0xb0] sm:$0xff]
        %v2375 = vld [vmem:[%s2351 + $0xb8] sm:$0xff]
        %v2376 = vld [vmem:[%s2351 + $0xc0] sm:$0xff]
        %v2377 = vld [vmem:[%s2351 + $0xc8] sm:$0xff]
        %v2378 = vld [vmem:[%s2351 + $0xd0] sm:$0xff]
        %v2379 = vld [vmem:[%s2351 + $0xd8] sm:$0xff]
        %v2380 = vld [vmem:[%s2351 + $0xe0] sm:$0xff]
        %v2381 = vld [vmem:[%s2351 + $0xe8] sm:$0xff]
        %v2382 = vld [vmem:[%s2351 + $0xf0] sm:$0xff]
        %v2383 = vld [vmem:[%s2351 + $0xf8] sm:$0xff]
        %s2384 = scalar_lea.vmem %s3, 1024
        %v2385 = vld [vmem:[%s2384] sm:$0xff]
        %v2386 = vld [vmem:[%s2384 + $0x8] sm:$0xff]
        %v2387 = vld [vmem:[%s2384 + $0x10] sm:$0xff]
        %v2388 = vld [vmem:[%s2384 + $0x18] sm:$0xff]
        %v2389 = vld [vmem:[%s2384 + $0x20] sm:$0xff]
        %v2390 = vld [vmem:[%s2384 + $0x28] sm:$0xff]
        %v2391 = vld [vmem:[%s2384 + $0x30] sm:$0xff]
        %v2392 = vld [vmem:[%s2384 + $0x38] sm:$0xff]
        %v2393 = vld [vmem:[%s2384 + $0x40] sm:$0xff]
        %v2394 = vld [vmem:[%s2384 + $0x48] sm:$0xff]
        %v2395 = vld [vmem:[%s2384 + $0x50] sm:$0xff]
        %v2396 = vld [vmem:[%s2384 + $0x58] sm:$0xff]
        %v2397 = vld [vmem:[%s2384 + $0x60] sm:$0xff]
        %v2398 = vld [vmem:[%s2384 + $0x68] sm:$0xff]
        %v2399 = vld [vmem:[%s2384 + $0x70] sm:$0xff]
        %v2400 = vld [vmem:[%s2384 + $0x78] sm:$0xff]
        %v2401 = vld [vmem:[%s2384 + $0x80] sm:$0xff]
        %v2402 = vld [vmem:[%s2384 + $0x88] sm:$0xff]
        %v2403 = vld [vmem:[%s2384 + $0x90] sm:$0xff]
        %v2404 = vld [vmem:[%s2384 + $0x98] sm:$0xff]
        %v2405 = vld [vmem:[%s2384 + $0xa0] sm:$0xff]
        %v2406 = vld [vmem:[%s2384 + $0xa8] sm:$0xff]
        %v2407 = vld [vmem:[%s2384 + $0xb0] sm:$0xff]
        %v2408 = vld [vmem:[%s2384 + $0xb8] sm:$0xff]
        %v2409 = vld [vmem:[%s2384 + $0xc0] sm:$0xff]
        %v2410 = vld [vmem:[%s2384 + $0xc8] sm:$0xff]
        %v2411 = vld [vmem:[%s2384 + $0xd0] sm:$0xff]
        %v2412 = vld [vmem:[%s2384 + $0xd8] sm:$0xff]
        %v2413 = vld [vmem:[%s2384 + $0xe0] sm:$0xff]
        %v2414 = vld [vmem:[%s2384 + $0xe8] sm:$0xff]
        %v2415 = vld [vmem:[%s2384 + $0xf0] sm:$0xff]
        %v2416 = vld [vmem:[%s2384 + $0xf8] sm:$0xff]
        %v2417 = vpack.c.bf16 %v2289, %v2287
        %v2418 = vpack.c.bf16 %v2290, %v2288
        %v2419 = vpack.c.bf16 %v2293, %v2291
        %v2420 = vpack.c.bf16 %v2294, %v2292
        %v2421 = vpack.c.bf16 %v2297, %v2295
        %v2422 = vpack.c.bf16 %v2298, %v2296
        %v2423 = vpack.c.bf16 %v2301, %v2299
        %v2424 = vpack.c.bf16 %v2302, %v2300
        %v2425 = vpack.c.bf16 %v2305, %v2303
        %v2426 = vpack.c.bf16 %v2306, %v2304
        %v2427 = vpack.c.bf16 %v2309, %v2307
        %v2428 = vpack.c.bf16 %v2310, %v2308
        %v2429 = vpack.c.bf16 %v2313, %v2311
        %v2430 = vpack.c.bf16 %v2314, %v2312
        %v2431 = vpack.c.bf16 %v2317, %v2315
        %v2432 = vpack.c.bf16 %v2318, %v2316
        %v2433 = vpack.c.bf16 %v2321, %v2319
        %v2434 = vpack.c.bf16 %v2322, %v2320
        %v2435 = vpack.c.bf16 %v2325, %v2323
        %v2436 = vpack.c.bf16 %v2326, %v2324
        %v2437 = vpack.c.bf16 %v2329, %v2327
        %v2438 = vpack.c.bf16 %v2330, %v2328
        %v2439 = vpack.c.bf16 %v2333, %v2331
        %v2440 = vpack.c.bf16 %v2334, %v2332
        %v2441 = vpack.c.bf16 %v2337, %v2335
        %v2442 = vpack.c.bf16 %v2338, %v2336
        %v2443 = vpack.c.bf16 %v2341, %v2339
        %v2444 = vpack.c.bf16 %v2342, %v2340
        %v2445 = vpack.c.bf16 %v2345, %v2343
        %v2446 = vpack.c.bf16 %v2346, %v2344
        %v2447 = vpack.c.bf16 %v2349, %v2347
        %v2448 = vpack.c.bf16 %v2350, %v2348
        %2450 = vset.pattern.permute.xlu0 0
        %2451 = vperm.xlu0 %2450, %v2385
        %v2452 = vpop.permute.xlu0 %2451
        %2455 = vset.pattern.permute.xlu0 0
        %2456 = vperm.xlu0 %2455, %v2386
        %v2457 = vpop.permute.xlu0 %2456
        %2460 = vset.pattern.permute.xlu0 0
        %2461 = vperm.xlu0 %2460, %v2387
        %v2462 = vpop.permute.xlu0 %2461
        %2465 = vset.pattern.permute.xlu0 0
        %2466 = vperm.xlu0 %2465, %v2388
        %v2467 = vpop.permute.xlu0 %2466
        %2470 = vset.pattern.permute.xlu0 0
        %2471 = vperm.xlu0 %2470, %v2389
        %v2472 = vpop.permute.xlu0 %2471
        %2475 = vset.pattern.permute.xlu0 0
        %2476 = vperm.xlu0 %2475, %v2390
        %v2477 = vpop.permute.xlu0 %2476
        %2480 = vset.pattern.permute.xlu0 0
        %2481 = vperm.xlu0 %2480, %v2391
        %v2482 = vpop.permute.xlu0 %2481
        %2485 = vset.pattern.permute.xlu0 0
        %2486 = vperm.xlu0 %2485, %v2392
        %v2487 = vpop.permute.xlu0 %2486
        %2490 = vset.pattern.permute.xlu0 0
        %2491 = vperm.xlu0 %2490, %v2393
        %v2492 = vpop.permute.xlu0 %2491
        %2495 = vset.pattern.permute.xlu0 0
        %2496 = vperm.xlu0 %2495, %v2394
        %v2497 = vpop.permute.xlu0 %2496
        %2500 = vset.pattern.permute.xlu0 0
        %2501 = vperm.xlu0 %2500, %v2395
        %v2502 = vpop.permute.xlu0 %2501
        %2505 = vset.pattern.permute.xlu0 0
        %2506 = vperm.xlu0 %2505, %v2396
        %v2507 = vpop.permute.xlu0 %2506
        %2510 = vset.pattern.permute.xlu0 0
        %2511 = vperm.xlu0 %2510, %v2397
        %v2512 = vpop.permute.xlu0 %2511
        %2515 = vset.pattern.permute.xlu0 0
        %2516 = vperm.xlu0 %2515, %v2398
        %v2517 = vpop.permute.xlu0 %2516
        %2520 = vset.pattern.permute.xlu0 0
        %2521 = vperm.xlu0 %2520, %v2399
        %v2522 = vpop.permute.xlu0 %2521
        %2525 = vset.pattern.permute.xlu0 0
        %2526 = vperm.xlu0 %2525, %v2400
        %v2527 = vpop.permute.xlu0 %2526
        %2530 = vset.pattern.permute.xlu0 0
        %2531 = vperm.xlu0 %2530, %v2401
        %v2532 = vpop.permute.xlu0 %2531
        %2535 = vset.pattern.permute.xlu0 0
        %2536 = vperm.xlu0 %2535, %v2402
        %v2537 = vpop.permute.xlu0 %2536
        %2540 = vset.pattern.permute.xlu0 0
        %2541 = vperm.xlu0 %2540, %v2403
        %v2542 = vpop.permute.xlu0 %2541
        %2545 = vset.pattern.permute.xlu0 0
        %2546 = vperm.xlu0 %2545, %v2404
        %v2547 = vpop.permute.xlu0 %2546
        %2550 = vset.pattern.permute.xlu0 0
        %2551 = vperm.xlu0 %2550, %v2405
        %v2552 = vpop.permute.xlu0 %2551
        %2555 = vset.pattern.permute.xlu0 0
        %2556 = vperm.xlu0 %2555, %v2406
        %v2557 = vpop.permute.xlu0 %2556
        %2560 = vset.pattern.permute.xlu0 0
        %2561 = vperm.xlu0 %2560, %v2407
        %v2562 = vpop.permute.xlu0 %2561
        %2565 = vset.pattern.permute.xlu0 0
        %2566 = vperm.xlu0 %2565, %v2408
        %v2567 = vpop.permute.xlu0 %2566
        %2570 = vset.pattern.permute.xlu0 0
        %2571 = vperm.xlu0 %2570, %v2409
        %v2572 = vpop.permute.xlu0 %2571
        %2575 = vset.pattern.permute.xlu0 0
        %2576 = vperm.xlu0 %2575, %v2410
        %v2577 = vpop.permute.xlu0 %2576
        %2580 = vset.pattern.permute.xlu0 0
        %2581 = vperm.xlu0 %2580, %v2411
        %v2582 = vpop.permute.xlu0 %2581
        %2585 = vset.pattern.permute.xlu0 0
        %2586 = vperm.xlu0 %2585, %v2412
        %v2587 = vpop.permute.xlu0 %2586
        %2590 = vset.pattern.permute.xlu0 0
        %2591 = vperm.xlu0 %2590, %v2413
        %v2592 = vpop.permute.xlu0 %2591
        %2595 = vset.pattern.permute.xlu0 0
        %2596 = vperm.xlu0 %2595, %v2414
        %v2597 = vpop.permute.xlu0 %2596
        %2600 = vset.pattern.permute.xlu0 0
        %2601 = vperm.xlu0 %2600, %v2415
        %v2602 = vpop.permute.xlu0 %2601
        %2605 = vset.pattern.permute.xlu0 0
        %2606 = vperm.xlu0 %2605, %v2416
        %v2607 = vpop.permute.xlu0 %2606
        %v2641 = vunpack.c.l.b16 %v2352
        %v2642 = vunpack.c.h.b16 %v2352
        %v2643 = vunpack.c.l.b16 %v2353
        %v2644 = vunpack.c.h.b16 %v2353
        %v2645 = vunpack.c.l.b16 %v2354
        %v2646 = vunpack.c.h.b16 %v2354
        %v2647 = vunpack.c.l.b16 %v2355
        %v2648 = vunpack.c.h.b16 %v2355
        %v2649 = vunpack.c.l.b16 %v2356
        %v2650 = vunpack.c.h.b16 %v2356
        %v2651 = vunpack.c.l.b16 %v2357
        %v2652 = vunpack.c.h.b16 %v2357
        %v2653 = vunpack.c.l.b16 %v2358
        %v2654 = vunpack.c.h.b16 %v2358
        %v2655 = vunpack.c.l.b16 %v2359
        %v2656 = vunpack.c.h.b16 %v2359
        %v2657 = vunpack.c.l.b16 %v2360
        %v2658 = vunpack.c.h.b16 %v2360
        %v2659 = vunpack.c.l.b16 %v2361
        %v2660 = vunpack.c.h.b16 %v2361
        %v2661 = vunpack.c.l.b16 %v2362
        %v2662 = vunpack.c.h.b16 %v2362
        %v2663 = vunpack.c.l.b16 %v2363
        %v2664 = vunpack.c.h.b16 %v2363
        %v2665 = vunpack.c.l.b16 %v2364
        %v2666 = vunpack.c.h.b16 %v2364
        %v2667 = vunpack.c.l.b16 %v2365
        %v2668 = vunpack.c.h.b16 %v2365
        %v2669 = vunpack.c.l.b16 %v2366
        %v2670 = vunpack.c.h.b16 %v2366
        %v2671 = vunpack.c.l.b16 %v2367
        %v2672 = vunpack.c.h.b16 %v2367
        %v2673 = vunpack.c.l.b16 %v2368
        %v2674 = vunpack.c.h.b16 %v2368
        %v2675 = vunpack.c.l.b16 %v2369
        %v2676 = vunpack.c.h.b16 %v2369
        %v2677 = vunpack.c.l.b16 %v2370
        %v2678 = vunpack.c.h.b16 %v2370
        %v2679 = vunpack.c.l.b16 %v2371
        %v2680 = vunpack.c.h.b16 %v2371
        %v2681 = vunpack.c.l.b16 %v2372
        %v2682 = vunpack.c.h.b16 %v2372
        %v2683 = vunpack.c.l.b16 %v2373
        %v2684 = vunpack.c.h.b16 %v2373
        %v2685 = vunpack.c.l.b16 %v2374
        %v2686 = vunpack.c.h.b16 %v2374
        %v2687 = vunpack.c.l.b16 %v2375
        %v2688 = vunpack.c.h.b16 %v2375
        %v2689 = vunpack.c.l.b16 %v2376
        %v2690 = vunpack.c.h.b16 %v2376
        %v2691 = vunpack.c.l.b16 %v2377
        %v2692 = vunpack.c.h.b16 %v2377
        %v2693 = vunpack.c.l.b16 %v2378
        %v2694 = vunpack.c.h.b16 %v2378
        %v2695 = vunpack.c.l.b16 %v2379
        %v2696 = vunpack.c.h.b16 %v2379
        %v2697 = vunpack.c.l.b16 %v2380
        %v2698 = vunpack.c.h.b16 %v2380
        %v2699 = vunpack.c.l.b16 %v2381
        %v2700 = vunpack.c.h.b16 %v2381
        %v2701 = vunpack.c.l.b16 %v2382
        %v2702 = vunpack.c.h.b16 %v2382
        %v2703 = vunpack.c.l.b16 %v2383
        %v2704 = vunpack.c.h.b16 %v2383
        %v2705 = vpack.c.b16 %v2643, %v2641
        %v2706 = vpack.c.b16 %v2644, %v2642
        %v2707 = vpack.c.b16 %v2647, %v2645
        %v2708 = vpack.c.b16 %v2648, %v2646
        %v2709 = vpack.c.b16 %v2651, %v2649
        %v2710 = vpack.c.b16 %v2652, %v2650
        %v2711 = vpack.c.b16 %v2655, %v2653
        %v2712 = vpack.c.b16 %v2656, %v2654
        %v2713 = vpack.c.b16 %v2659, %v2657
        %v2714 = vpack.c.b16 %v2660, %v2658
        %v2715 = vpack.c.b16 %v2663, %v2661
        %v2716 = vpack.c.b16 %v2664, %v2662
        %v2717 = vpack.c.b16 %v2667, %v2665
        %v2718 = vpack.c.b16 %v2668, %v2666
        %v2719 = vpack.c.b16 %v2671, %v2669
        %v2720 = vpack.c.b16 %v2672, %v2670
        %v2721 = vpack.c.b16 %v2675, %v2673
        %v2722 = vpack.c.b16 %v2676, %v2674
        %v2723 = vpack.c.b16 %v2679, %v2677
        %v2724 = vpack.c.b16 %v2680, %v2678
        %v2725 = vpack.c.b16 %v2683, %v2681
        %v2726 = vpack.c.b16 %v2684, %v2682
        %v2727 = vpack.c.b16 %v2687, %v2685
        %v2728 = vpack.c.b16 %v2688, %v2686
        %v2729 = vpack.c.b16 %v2691, %v2689
        %v2730 = vpack.c.b16 %v2692, %v2690
        %v2731 = vpack.c.b16 %v2695, %v2693
        %v2732 = vpack.c.b16 %v2696, %v2694
        %v2733 = vpack.c.b16 %v2699, %v2697
        %v2734 = vpack.c.b16 %v2700, %v2698
        %v2735 = vpack.c.b16 %v2703, %v2701
        %v2736 = vpack.c.b16 %v2704, %v2702
        %2769 = vmatprep.subr.bf16.mxu0 %v2418
        %2770 = vmatpush1.bf16.msra.mxu0 %v2417
        %2771 = vmatprep.subr.bf16.mxu0 %v2420
        %2772 = vmatpush1.bf16.msra.mxu0 %v2419
        %2773 = vmatprep.subr.bf16.mxu0 %v2422
        %2774 = vmatpush1.bf16.msra.mxu0 %v2421
        %2775 = vmatprep.subr.bf16.mxu0 %v2424
        %2776 = vmatpush1.bf16.msra.mxu0 %v2423
        %2777 = vmatprep.subr.bf16.mxu0 %v2426
        %2778 = vmatpush1.bf16.msra.mxu0 %v2425
        %2779 = vmatprep.subr.bf16.mxu0 %v2428
        %2780 = vmatpush1.bf16.msra.mxu0 %v2427
        %2781 = vmatprep.subr.bf16.mxu0 %v2430
        %2782 = vmatpush1.bf16.msra.mxu0 %v2429
        %2783 = vmatprep.subr.bf16.mxu0 %v2432
        %2784 = vmatpush1.bf16.msra.mxu0 %v2431
        %2785 = vmatprep.subr.bf16.mxu0 %v2434
        %2786 = vmatpush1.bf16.msra.mxu0 %v2433
        %2787 = vmatprep.subr.bf16.mxu0 %v2436
        %2788 = vmatpush1.bf16.msra.mxu0 %v2435
        %2789 = vmatprep.subr.bf16.mxu0 %v2438
        %2790 = vmatpush1.bf16.msra.mxu0 %v2437
        %2791 = vmatprep.subr.bf16.mxu0 %v2440
        %2792 = vmatpush1.bf16.msra.mxu0 %v2439
        %2793 = vmatprep.subr.bf16.mxu0 %v2442
        %2794 = vmatpush1.bf16.msra.mxu0 %v2441
        %2795 = vmatprep.subr.bf16.mxu0 %v2444
        %2796 = vmatpush1.bf16.msra.mxu0 %v2443
        %2797 = vmatprep.subr.bf16.mxu0 %v2446
        %2798 = vmatpush1.bf16.msra.mxu0 %v2445
        %2799 = vmatprep.subr.bf16.mxu0 %v2448
        %2800 = vmatpush1.bf16.msra.mxu0 %v2447
        %2801 = vmatprep.mubr.bf16.mxu0 %v2706
        %2802 = vmatmul.mubr.bf16.gmra.mrb[0].mxu0 %v2705
        %v2803 = vpop.f32.mrb[0].mxu0
        %v2804 = vadd.f32 %v2452, %v2803
        %v2805 = vpop.f32.mrb[0].mxu0
        %v2806 = vadd.f32 %v2452, %v2805
        %v2807 = vpop.f32.mrb[0].mxu0
        %v2808 = vadd.f32 %v2457, %v2807
        %v2809 = vpop.f32.mrb[0].mxu0
        %v2810 = vadd.f32 %v2457, %v2809
        %2811 = vmatprep.mubr.bf16.mxu0 %v2708
        %2812 = vmatmul.mubr.bf16.gmra.mrb[0].mxu0 %v2707
        %v2813 = vpop.f32.mrb[0].mxu0
        %v2814 = vadd.f32 %v2462, %v2813
        %v2815 = vpop.f32.mrb[0].mxu0
        %v2816 = vadd.f32 %v2462, %v2815
        %v2817 = vpop.f32.mrb[0].mxu0
        %v2818 = vadd.f32 %v2467, %v2817
        %v2819 = vpop.f32.mrb[0].mxu0
        %v2820 = vadd.f32 %v2467, %v2819
        %2821 = vmatprep.mubr.bf16.mxu0 %v2710
        %2822 = vmatmul.mubr.bf16.gmra.mrb[0].mxu0 %v2709
        %v2823 = vpop.f32.mrb[0].mxu0
        %v2824 = vadd.f32 %v2472, %v2823
        %v2825 = vpop.f32.mrb[0].mxu0
        %v2826 = vadd.f32 %v2472, %v2825
        %v2827 = vpop.f32.mrb[0].mxu0
        %v2828 = vadd.f32 %v2477, %v2827
        %v2829 = vpop.f32.mrb[0].mxu0
        %v2830 = vadd.f32 %v2477, %v2829
        %2831 = vmatprep.mubr.bf16.mxu0 %v2712
        %2832 = vmatmul.mubr.bf16.gmra.mrb[0].mxu0 %v2711
        %v2833 = vpop.f32.mrb[0].mxu0
        %v2834 = vadd.f32 %v2482, %v2833
        %v2835 = vpop.f32.mrb[0].mxu0
        %v2836 = vadd.f32 %v2482, %v2835
        %v2837 = vpop.f32.mrb[0].mxu0
        %v2838 = vadd.f32 %v2487, %v2837
        %v2839 = vpop.f32.mrb[0].mxu0
        %v2840 = vadd.f32 %v2487, %v2839
        %2841 = vmatprep.mubr.bf16.mxu0 %v2714
        %2842 = vmatmul.mubr.bf16.gmra.mrb[0].mxu0 %v2713
        %v2843 = vpop.f32.mrb[0].mxu0
        %v2844 = vadd.f32 %v2492, %v2843
        %v2845 = vpop.f32.mrb[0].mxu0
        %v2846 = vadd.f32 %v2492, %v2845
        %v2847 = vpop.f32.mrb[0].mxu0
        %v2848 = vadd.f32 %v2497, %v2847
        %v2849 = vpop.f32.mrb[0].mxu0
        %v2850 = vadd.f32 %v2497, %v2849
        %2851 = vmatprep.mubr.bf16.mxu0 %v2716
        %2852 = vmatmul.mubr.bf16.gmra.mrb[0].mxu0 %v2715
        %v2853 = vpop.f32.mrb[0].mxu0
        %v2854 = vadd.f32 %v2502, %v2853
        %v2855 = vpop.f32.mrb[0].mxu0
        %v2856 = vadd.f32 %v2502, %v2855
        %v2857 = vpop.f32.mrb[0].mxu0
        %v2858 = vadd.f32 %v2507, %v2857
        %v2859 = vpop.f32.mrb[0].mxu0
        %v2860 = vadd.f32 %v2507, %v2859
        %2861 = vmatprep.mubr.bf16.mxu0 %v2718
        %2862 = vmatmul.mubr.bf16.gmra.mrb[0].mxu0 %v2717
        %v2863 = vpop.f32.mrb[0].mxu0
        %v2864 = vadd.f32 %v2512, %v2863
        %v2865 = vpop.f32.mrb[0].mxu0
        %v2866 = vadd.f32 %v2512, %v2865
        %v2867 = vpop.f32.mrb[0].mxu0
        %v2868 = vadd.f32 %v2517, %v2867
        %v2869 = vpop.f32.mrb[0].mxu0
        %v2870 = vadd.f32 %v2517, %v2869
        %2871 = vmatprep.mubr.bf16.mxu0 %v2720
        %2872 = vmatmul.mubr.bf16.gmra.mrb[0].mxu0 %v2719
        %v2873 = vpop.f32.mrb[0].mxu0
        %v2874 = vadd.f32 %v2522, %v2873
        %v2875 = vpop.f32.mrb[0].mxu0
        %v2876 = vadd.f32 %v2522, %v2875
        %v2877 = vpop.f32.mrb[0].mxu0
        %v2878 = vadd.f32 %v2527, %v2877
        %v2879 = vpop.f32.mrb[0].mxu0
        %v2880 = vadd.f32 %v2527, %v2879
        %2881 = vmatprep.mubr.bf16.mxu0 %v2722
        %2882 = vmatmul.mubr.bf16.gmra.mrb[0].mxu0 %v2721
        %v2883 = vpop.f32.mrb[0].mxu0
        %v2884 = vadd.f32 %v2532, %v2883
        %v2885 = vpop.f32.mrb[0].mxu0
        %v2886 = vadd.f32 %v2532, %v2885
        %v2887 = vpop.f32.mrb[0].mxu0
        %v2888 = vadd.f32 %v2537, %v2887
        %v2889 = vpop.f32.mrb[0].mxu0
        %v2890 = vadd.f32 %v2537, %v2889
        %2891 = vmatprep.mubr.bf16.mxu0 %v2724
        %2892 = vmatmul.mubr.bf16.gmra.mrb[0].mxu0 %v2723
        %v2893 = vpop.f32.mrb[0].mxu0
        %v2894 = vadd.f32 %v2542, %v2893
        %v2895 = vpop.f32.mrb[0].mxu0
        %v2896 = vadd.f32 %v2542, %v2895
        %v2897 = vpop.f32.mrb[0].mxu0
        %v2898 = vadd.f32 %v2547, %v2897
        %v2899 = vpop.f32.mrb[0].mxu0
        %v2900 = vadd.f32 %v2547, %v2899
        %2901 = vmatprep.mubr.bf16.mxu0 %v2726
        %2902 = vmatmul.mubr.bf16.gmra.mrb[0].mxu0 %v2725
        %v2903 = vpop.f32.mrb[0].mxu0
        %v2904 = vadd.f32 %v2552, %v2903
        %v2905 = vpop.f32.mrb[0].mxu0
        %v2906 = vadd.f32 %v2552, %v2905
        %v2907 = vpop.f32.mrb[0].mxu0
        %v2908 = vadd.f32 %v2557, %v2907
        %v2909 = vpop.f32.mrb[0].mxu0
        %v2910 = vadd.f32 %v2557, %v2909
        %2911 = vmatprep.mubr.bf16.mxu0 %v2728
        %2912 = vmatmul.mubr.bf16.gmra.mrb[0].mxu0 %v2727
        %v2913 = vpop.f32.mrb[0].mxu0
        %v2914 = vadd.f32 %v2562, %v2913
        %v2915 = vpop.f32.mrb[0].mxu0
        %v2916 = vadd.f32 %v2562, %v2915
        %v2917 = vpop.f32.mrb[0].mxu0
        %v2918 = vadd.f32 %v2567, %v2917
        %v2919 = vpop.f32.mrb[0].mxu0
        %v2920 = vadd.f32 %v2567, %v2919
        %2921 = vmatprep.mubr.bf16.mxu0 %v2730
        %2922 = vmatmul.mubr.bf16.gmra.mrb[0].mxu0 %v2729
        %v2923 = vpop.f32.mrb[0].mxu0
        %v2924 = vadd.f32 %v2572, %v2923
        %v2925 = vpop.f32.mrb[0].mxu0
        %v2926 = vadd.f32 %v2572, %v2925
        %v2927 = vpop.f32.mrb[0].mxu0
        %v2928 = vadd.f32 %v2577, %v2927
        %v2929 = vpop.f32.mrb[0].mxu0
        %v2930 = vadd.f32 %v2577, %v2929
        %2931 = vmatprep.mubr.bf16.mxu0 %v2732
        %2932 = vmatmul.mubr.bf16.gmra.mrb[0].mxu0 %v2731
        %v2933 = vpop.f32.mrb[0].mxu0
        %v2934 = vadd.f32 %v2582, %v2933
        %v2935 = vpop.f32.mrb[0].mxu0
        %v2936 = vadd.f32 %v2582, %v2935
        %v2937 = vpop.f32.mrb[0].mxu0
        %v2938 = vadd.f32 %v2587, %v2937
        %v2939 = vpop.f32.mrb[0].mxu0
        %v2940 = vadd.f32 %v2587, %v2939
        %2941 = vmatprep.mubr.bf16.mxu0 %v2734
        %2942 = vmatmul.mubr.bf16.gmra.mrb[0].mxu0 %v2733
        %v2943 = vpop.f32.mrb[0].mxu0
        %v2944 = vadd.f32 %v2592, %v2943
        %v2945 = vpop.f32.mrb[0].mxu0
        %v2946 = vadd.f32 %v2592, %v2945
        %v2947 = vpop.f32.mrb[0].mxu0
        %v2948 = vadd.f32 %v2597, %v2947
        %v2949 = vpop.f32.mrb[0].mxu0
        %v2950 = vadd.f32 %v2597, %v2949
        %2951 = vmatprep.mubr.bf16.mxu0 %v2736
        %2952 = vmatmul.mubr.bf16.gmra.mrb[0].mxu0 %v2735
        %v2953 = vpop.f32.mrb[0].mxu0
        %v2954 = vadd.f32 %v2602, %v2953
        %v2955 = vpop.f32.mrb[0].mxu0
        %v2956 = vadd.f32 %v2602, %v2955
        %v2957 = vpop.f32.mrb[0].mxu0
        %v2958 = vadd.f32 %v2607, %v2957
        %v2959 = vpop.f32.mrb[0].mxu0
        %v2960 = vadd.f32 %v2607, %v2959
        %2961 = vdwg.mxu0
        %v2962 = vmax.f32 %v2804, 0.0
        %v2963 = vmax.f32 %v2806, 0.0
        %v2964 = vmax.f32 %v2808, 0.0
        %v2965 = vmax.f32 %v2810, 0.0
        %v2966 = vmax.f32 %v2814, 0.0
        %v2967 = vmax.f32 %v2816, 0.0
        %v2968 = vmax.f32 %v2818, 0.0
        %v2969 = vmax.f32 %v2820, 0.0
        %v2970 = vmax.f32 %v2824, 0.0
        %v2971 = vmax.f32 %v2826, 0.0
        %v2972 = vmax.f32 %v2828, 0.0
        %v2973 = vmax.f32 %v2830, 0.0
        %v2974 = vmax.f32 %v2834, 0.0
        %v2975 = vmax.f32 %v2836, 0.0
        %v2976 = vmax.f32 %v2838, 0.0
        %v2977 = vmax.f32 %v2840, 0.0
        %v2978 = vmax.f32 %v2844, 0.0
        %v2979 = vmax.f32 %v2846, 0.0
        %v2980 = vmax.f32 %v2848, 0.0
        %v2981 = vmax.f32 %v2850, 0.0
        %v2982 = vmax.f32 %v2854, 0.0
        %v2983 = vmax.f32 %v2856, 0.0
        %v2984 = vmax.f32 %v2858, 0.0
        %v2985 = vmax.f32 %v2860, 0.0
        %v2986 = vmax.f32 %v2864, 0.0
        %v2987 = vmax.f32 %v2866, 0.0
        %v2988 = vmax.f32 %v2868, 0.0
        %v2989 = vmax.f32 %v2870, 0.0
        %v2990 = vmax.f32 %v2874, 0.0
        %v2991 = vmax.f32 %v2876, 0.0
        %v2992 = vmax.f32 %v2878, 0.0
        %v2993 = vmax.f32 %v2880, 0.0
        %v2994 = vmax.f32 %v2884, 0.0
        %v2995 = vmax.f32 %v2886, 0.0
        %v2996 = vmax.f32 %v2888, 0.0
        %v2997 = vmax.f32 %v2890, 0.0
        %v2998 = vmax.f32 %v2894, 0.0
        %v2999 = vmax.f32 %v2896, 0.0
        %v3000 = vmax.f32 %v2898, 0.0
        %v3001 = vmax.f32 %v2900, 0.0
        %v3002 = vmax.f32 %v2904, 0.0
        %v3003 = vmax.f32 %v2906, 0.0
        %v3004 = vmax.f32 %v2908, 0.0
        %v3005 = vmax.f32 %v2910, 0.0
        %v3006 = vmax.f32 %v2914, 0.0
        %v3007 = vmax.f32 %v2916, 0.0
        %v3008 = vmax.f32 %v2918, 0.0
        %v3009 = vmax.f32 %v2920, 0.0
        %v3010 = vmax.f32 %v2924, 0.0
        %v3011 = vmax.f32 %v2926, 0.0
        %v3012 = vmax.f32 %v2928, 0.0
        %v3013 = vmax.f32 %v2930, 0.0
        %v3014 = vmax.f32 %v2934, 0.0
        %v3015 = vmax.f32 %v2936, 0.0
        %v3016 = vmax.f32 %v2938, 0.0
        %v3017 = vmax.f32 %v2940, 0.0
        %v3018 = vmax.f32 %v2944, 0.0
        %v3019 = vmax.f32 %v2946, 0.0
        %v3020 = vmax.f32 %v2948, 0.0
        %v3021 = vmax.f32 %v2950, 0.0
        %v3022 = vmax.f32 %v2954, 0.0
        %v3023 = vmax.f32 %v2956, 0.0
        %v3024 = vmax.f32 %v2958, 0.0
        %v3025 = vmax.f32 %v2960, 0.0
        %v3026 = vadd.f32 %v2962, %v1612
        %v3027 = vadd.f32 %v2963, %v1613
        %v3028 = vadd.f32 %v2964, %v1614
        %v3029 = vadd.f32 %v2965, %v1615
        %v3030 = vadd.f32 %v2966, %v1616
        %v3031 = vadd.f32 %v2967, %v1617
        %v3032 = vadd.f32 %v2968, %v1618
        %v3033 = vadd.f32 %v2969, %v1619
        %v3034 = vadd.f32 %v2970, %v1620
        %v3035 = vadd.f32 %v2971, %v1621
        %v3036 = vadd.f32 %v2972, %v1622
        %v3037 = vadd.f32 %v2973, %v1623
        %v3038 = vadd.f32 %v2974, %v1624
        %v3039 = vadd.f32 %v2975, %v1625
        %v3040 = vadd.f32 %v2976, %v1626
        %v3041 = vadd.f32 %v2977, %v1627
        %v3042 = vadd.f32 %v2978, %v1628
        %v3043 = vadd.f32 %v2979, %v1629
        %v3044 = vadd.f32 %v2980, %v1630
        %v3045 = vadd.f32 %v2981, %v1631
        %v3046 = vadd.f32 %v2982, %v1632
        %v3047 = vadd.f32 %v2983, %v1633
        %v3048 = vadd.f32 %v2984, %v1634
        %v3049 = vadd.f32 %v2985, %v1635
        %v3050 = vadd.f32 %v2986, %v1636
        %v3051 = vadd.f32 %v2987, %v1637
        %v3052 = vadd.f32 %v2988, %v1638
        %v3053 = vadd.f32 %v2989, %v1639
        %v3054 = vadd.f32 %v2990, %v1640
        %v3055 = vadd.f32 %v2991, %v1641
        %v3056 = vadd.f32 %v2992, %v1642
        %v3057 = vadd.f32 %v2993, %v1643
        %v3058 = vadd.f32 %v2994, %v1644
        %v3059 = vadd.f32 %v2995, %v1645
        %v3060 = vadd.f32 %v2996, %v1646
        %v3061 = vadd.f32 %v2997, %v1647
        %v3062 = vadd.f32 %v2998, %v1648
        %v3063 = vadd.f32 %v2999, %v1649
        %v3064 = vadd.f32 %v3000, %v1650
        %v3065 = vadd.f32 %v3001, %v1651
        %v3066 = vadd.f32 %v3002, %v1652
        %v3067 = vadd.f32 %v3003, %v1653
        %v3068 = vadd.f32 %v3004, %v1654
        %v3069 = vadd.f32 %v3005, %v1655
        %v3070 = vadd.f32 %v3006, %v1656
        %v3071 = vadd.f32 %v3007, %v1657
        %v3072 = vadd.f32 %v3008, %v1658
        %v3073 = vadd.f32 %v3009, %v1659
        %v3074 = vadd.f32 %v3010, %v1660
        %v3075 = vadd.f32 %v3011, %v1661
        %v3076 = vadd.f32 %v3012, %v1662
        %v3077 = vadd.f32 %v3013, %v1663
        %v3078 = vadd.f32 %v3014, %v1664
        %v3079 = vadd.f32 %v3015, %v1665
        %v3080 = vadd.f32 %v3016, %v1666
        %v3081 = vadd.f32 %v3017, %v1667
        %v3082 = vadd.f32 %v3018, %v1668
        %v3083 = vadd.f32 %v3019, %v1669
        %v3084 = vadd.f32 %v3020, %v1670
        %v3085 = vadd.f32 %v3021, %v1671
        %v3086 = vadd.f32 %v3022, %v1672
        %v3087 = vadd.f32 %v3023, %v1673
        %v3088 = vadd.f32 %v3024, %v1674
        %v3089 = vadd.f32 %v3025, %v1675
        %s3090 = scalar_lea.vmem %s2, 768
        %v3091 = vld [vmem:[%s3090] sm:$0xff]
        %v3092 = vld [vmem:[%s3090 + $0x8] sm:$0xff]
        %v3093 = vld [vmem:[%s3090 + $0x10] sm:$0xff]
        %v3094 = vld [vmem:[%s3090 + $0x18] sm:$0xff]
        %v3095 = vld [vmem:[%s3090 + $0x20] sm:$0xff]
        %v3096 = vld [vmem:[%s3090 + $0x28] sm:$0xff]
        %v3097 = vld [vmem:[%s3090 + $0x30] sm:$0xff]
        %v3098 = vld [vmem:[%s3090 + $0x38] sm:$0xff]
        %v3099 = vld [vmem:[%s3090 + $0x40] sm:$0xff]
        %v3100 = vld [vmem:[%s3090 + $0x48] sm:$0xff]
        %v3101 = vld [vmem:[%s3090 + $0x50] sm:$0xff]
        %v3102 = vld [vmem:[%s3090 + $0x58] sm:$0xff]
        %v3103 = vld [vmem:[%s3090 + $0x60] sm:$0xff]
        %v3104 = vld [vmem:[%s3090 + $0x68] sm:$0xff]
        %v3105 = vld [vmem:[%s3090 + $0x70] sm:$0xff]
        %v3106 = vld [vmem:[%s3090 + $0x78] sm:$0xff]
        %s3107 = scalar_lea.vmem %s3, 1280
        %v3108 = vld [vmem:[%s3107] sm:$0xff]
        %v3109 = vld [vmem:[%s3107 + $0x8] sm:$0xff]
        %v3110 = vld [vmem:[%s3107 + $0x10] sm:$0xff]
        %v3111 = vld [vmem:[%s3107 + $0x18] sm:$0xff]
        %v3112 = vld [vmem:[%s3107 + $0x20] sm:$0xff]
        %v3113 = vld [vmem:[%s3107 + $0x28] sm:$0xff]
        %v3114 = vld [vmem:[%s3107 + $0x30] sm:$0xff]
        %v3115 = vld [vmem:[%s3107 + $0x38] sm:$0xff]
        %v3116 = vld [vmem:[%s3107 + $0x40] sm:$0xff]
        %v3117 = vld [vmem:[%s3107 + $0x48] sm:$0xff]
        %v3118 = vld [vmem:[%s3107 + $0x50] sm:$0xff]
        %v3119 = vld [vmem:[%s3107 + $0x58] sm:$0xff]
        %v3120 = vld [vmem:[%s3107 + $0x60] sm:$0xff]
        %v3121 = vld [vmem:[%s3107 + $0x68] sm:$0xff]
        %v3122 = vld [vmem:[%s3107 + $0x70] sm:$0xff]
        %v3123 = vld [vmem:[%s3107 + $0x78] sm:$0xff]
        %v3124 = vpack.c.bf16 %v3028, %v3026
        %v3125 = vpack.c.bf16 %v3029, %v3027
        %v3126 = vpack.c.bf16 %v3032, %v3030
        %v3127 = vpack.c.bf16 %v3033, %v3031
        %v3128 = vpack.c.bf16 %v3036, %v3034
        %v3129 = vpack.c.bf16 %v3037, %v3035
        %v3130 = vpack.c.bf16 %v3040, %v3038
        %v3131 = vpack.c.bf16 %v3041, %v3039
        %v3132 = vpack.c.bf16 %v3044, %v3042
        %v3133 = vpack.c.bf16 %v3045, %v3043
        %v3134 = vpack.c.bf16 %v3048, %v3046
        %v3135 = vpack.c.bf16 %v3049, %v3047
        %v3136 = vpack.c.bf16 %v3052, %v3050
        %v3137 = vpack.c.bf16 %v3053, %v3051
        %v3138 = vpack.c.bf16 %v3056, %v3054
        %v3139 = vpack.c.bf16 %v3057, %v3055
        %v3140 = vpack.c.bf16 %v3060, %v3058
        %v3141 = vpack.c.bf16 %v3061, %v3059
        %v3142 = vpack.c.bf16 %v3064, %v3062
        %v3143 = vpack.c.bf16 %v3065, %v3063
        %v3144 = vpack.c.bf16 %v3068, %v3066
        %v3145 = vpack.c.bf16 %v3069, %v3067
        %v3146 = vpack.c.bf16 %v3072, %v3070
        %v3147 = vpack.c.bf16 %v3073, %v3071
        %v3148 = vpack.c.bf16 %v3076, %v3074
        %v3149 = vpack.c.bf16 %v3077, %v3075
        %v3150 = vpack.c.bf16 %v3080, %v3078
        %v3151 = vpack.c.bf16 %v3081, %v3079
        %v3152 = vpack.c.bf16 %v3084, %v3082
        %v3153 = vpack.c.bf16 %v3085, %v3083
        %v3154 = vpack.c.bf16 %v3088, %v3086
        %v3155 = vpack.c.bf16 %v3089, %v3087
        %3157 = vset.pattern.permute.xlu0 0
        %3158 = vperm.xlu0 %3157, %v3108
        %v3159 = vpop.permute.xlu0 %3158
        %3162 = vset.pattern.permute.xlu0 0
        %3163 = vperm.xlu0 %3162, %v3109
        %v3164 = vpop.permute.xlu0 %3163
        %3167 = vset.pattern.permute.xlu0 0
        %3168 = vperm.xlu0 %3167, %v3110
        %v3169 = vpop.permute.xlu0 %3168
        %3172 = vset.pattern.permute.xlu0 0
        %3173 = vperm.xlu0 %3172, %v3111
        %v3174 = vpop.permute.xlu0 %3173
        %3177 = vset.pattern.permute.xlu0 0
        %3178 = vperm.xlu0 %3177, %v3112
        %v3179 = vpop.permute.xlu0 %3178
        %3182 = vset.pattern.permute.xlu0 0
        %3183 = vperm.xlu0 %3182, %v3113
        %v3184 = vpop.permute.xlu0 %3183
        %3187 = vset.pattern.permute.xlu0 0
        %3188 = vperm.xlu0 %3187, %v3114
        %v3189 = vpop.permute.xlu0 %3188
        %3192 = vset.pattern.permute.xlu0 0
        %3193 = vperm.xlu0 %3192, %v3115
        %v3194 = vpop.permute.xlu0 %3193
        %3197 = vset.pattern.permute.xlu0 0
        %3198 = vperm.xlu0 %3197, %v3116
        %v3199 = vpop.permute.xlu0 %3198
        %3202 = vset.pattern.permute.xlu0 0
        %3203 = vperm.xlu0 %3202, %v3117
        %v3204 = vpop.permute.xlu0 %3203
        %3207 = vset.pattern.permute.xlu0 0
        %3208 = vperm.xlu0 %3207, %v3118
        %v3209 = vpop.permute.xlu0 %3208
        %3212 = vset.pattern.permute.xlu0 0
        %3213 = vperm.xlu0 %3212, %v3119
        %v3214 = vpop.permute.xlu0 %3213
        %3217 = vset.pattern.permute.xlu0 0
        %3218 = vperm.xlu0 %3217, %v3120
        %v3219 = vpop.permute.xlu0 %3218
        %3222 = vset.pattern.permute.xlu0 0
        %3223 = vperm.xlu0 %3222, %v3121
        %v3224 = vpop.permute.xlu0 %3223
        %3227 = vset.pattern.permute.xlu0 0
        %3228 = vperm.xlu0 %3227, %v3122
        %v3229 = vpop.permute.xlu0 %3228
        %3232 = vset.pattern.permute.xlu0 0
        %3233 = vperm.xlu0 %3232, %v3123
        %v3234 = vpop.permute.xlu0 %3233
        %v3252 = vunpack.c.l.b16 %v3091
        %v3253 = vunpack.c.h.b16 %v3091
        %v3254 = vunpack.c.l.b16 %v3092
        %v3255 = vunpack.c.h.b16 %v3092
        %v3256 = vunpack.c.l.b16 %v3093
        %v3257 = vunpack.c.h.b16 %v3093
        %v3258 = vunpack.c.l.b16 %v3094
        %v3259 = vunpack.c.h.b16 %v3094
        %v3260 = vunpack.c.l.b16 %v3095
        %v3261 = vunpack.c.h.b16 %v3095
        %v3262 = vunpack.c.l.b16 %v3096
        %v3263 = vunpack.c.h.b16 %v3096
        %v3264 = vunpack.c.l.b16 %v3097
        %v3265 = vunpack.c.h.b16 %v3097
        %v3266 = vunpack.c.l.b16 %v3098
        %v3267 = vunpack.c.h.b16 %v3098
        %v3268 = vunpack.c.l.b16 %v3099
        %v3269 = vunpack.c.h.b16 %v3099
        %v3270 = vunpack.c.l.b16 %v3100
        %v3271 = vunpack.c.h.b16 %v3100
        %v3272 = vunpack.c.l.b16 %v3101
        %v3273 = vunpack.c.h.b16 %v3101
        %v3274 = vunpack.c.l.b16 %v3102
        %v3275 = vunpack.c.h.b16 %v3102
        %v3276 = vunpack.c.l.b16 %v3103
        %v3277 = vunpack.c.h.b16 %v3103
        %v3278 = vunpack.c.l.b16 %v3104
        %v3279 = vunpack.c.h.b16 %v3104
        %v3280 = vunpack.c.l.b16 %v3105
        %v3281 = vunpack.c.h.b16 %v3105
        %v3282 = vunpack.c.l.b16 %v3106
        %v3283 = vunpack.c.h.b16 %v3106
        %v3284 = vpack.c.b16 %v3254, %v3252
        %v3285 = vpack.c.b16 %v3255, %v3253
        %v3286 = vpack.c.b16 %v3258, %v3256
        %v3287 = vpack.c.b16 %v3259, %v3257
        %v3288 = vpack.c.b16 %v3262, %v3260
        %v3289 = vpack.c.b16 %v3263, %v3261
        %v3290 = vpack.c.b16 %v3266, %v3264
        %v3291 = vpack.c.b16 %v3267, %v3265
        %v3292 = vpack.c.b16 %v3270, %v3268
        %v3293 = vpack.c.b16 %v3271, %v3269
        %v3294 = vpack.c.b16 %v3274, %v3272
        %v3295 = vpack.c.b16 %v3275, %v3273
        %v3296 = vpack.c.b16 %v3278, %v3276
        %v3297 = vpack.c.b16 %v3279, %v3277
        %v3298 = vpack.c.b16 %v3282, %v3280
        %v3299 = vpack.c.b16 %v3283, %v3281
        %3316 = vmatprep.subr.bf16.mxu0 %v3125
        %3317 = vmatpush1.bf16.msra.mxu0 %v3124
        %3318 = vmatprep.subr.bf16.mxu0 %v3127
        %3319 = vmatpush1.bf16.msra.mxu0 %v3126
        %3320 = vmatprep.subr.bf16.mxu0 %v3129
        %3321 = vmatpush1.bf16.msra.mxu0 %v3128
        %3322 = vmatprep.subr.bf16.mxu0 %v3131
        %3323 = vmatpush1.bf16.msra.mxu0 %v3130
        %3324 = vmatprep.subr.bf16.mxu0 %v3133
        %3325 = vmatpush1.bf16.msra.mxu0 %v3132
        %3326 = vmatprep.subr.bf16.mxu0 %v3135
        %3327 = vmatpush1.bf16.msra.mxu0 %v3134
        %3328 = vmatprep.subr.bf16.mxu0 %v3137
        %3329 = vmatpush1.bf16.msra.mxu0 %v3136
        %3330 = vmatprep.subr.bf16.mxu0 %v3139
        %3331 = vmatpush1.bf16.msra.mxu0 %v3138
        %3332 = vmatprep.subr.bf16.mxu0 %v3141
        %3333 = vmatpush1.bf16.msra.mxu0 %v3140
        %3334 = vmatprep.subr.bf16.mxu0 %v3143
        %3335 = vmatpush1.bf16.msra.mxu0 %v3142
        %3336 = vmatprep.subr.bf16.mxu0 %v3145
        %3337 = vmatpush1.bf16.msra.mxu0 %v3144
        %3338 = vmatprep.subr.bf16.mxu0 %v3147
        %3339 = vmatpush1.bf16.msra.mxu0 %v3146
        %3340 = vmatprep.subr.bf16.mxu0 %v3149
        %3341 = vmatpush1.bf16.msra.mxu0 %v3148
        %3342 = vmatprep.subr.bf16.mxu0 %v3151
        %3343 = vmatpush1.bf16.msra.mxu0 %v3150
        %3344 = vmatprep.subr.bf16.mxu0 %v3153
        %3345 = vmatpush1.bf16.msra.mxu0 %v3152
        %3346 = vmatprep.subr.bf16.mxu0 %v3155
        %3347 = vmatpush1.bf16.msra.mxu0 %v3154
        %3348 = vmatprep.mubr.bf16.mxu0 %v3285
        %3349 = vmatmul.mubr.bf16.gmra.mrb[0].mxu0 %v3284
        %v3350 = vpop.f32.mrb[0].mxu0
        %v3351 = vadd.f32 %v3159, %v3350
        %v3352 = vpop.f32.mrb[0].mxu0
        %v3353 = vadd.f32 %v3159, %v3352
        %v3354 = vpop.f32.mrb[0].mxu0
        %v3355 = vadd.f32 %v3164, %v3354
        %v3356 = vpop.f32.mrb[0].mxu0
        %v3357 = vadd.f32 %v3164, %v3356
        %3358 = vmatprep.mubr.bf16.mxu0 %v3287
        %3359 = vmatmul.mubr.bf16.gmra.mrb[0].mxu0 %v3286
        %v3360 = vpop.f32.mrb[0].mxu0
        %v3361 = vadd.f32 %v3169, %v3360
        %v3362 = vpop.f32.mrb[0].mxu0
        %v3363 = vadd.f32 %v3169, %v3362
        %v3364 = vpop.f32.mrb[0].mxu0
        %v3365 = vadd.f32 %v3174, %v3364
        %v3366 = vpop.f32.mrb[0].mxu0
        %v3367 = vadd.f32 %v3174, %v3366
        %3368 = vmatprep.mubr.bf16.mxu0 %v3289
        %3369 = vmatmul.mubr.bf16.gmra.mrb[0].mxu0 %v3288
        %v3370 = vpop.f32.mrb[0].mxu0
        %v3371 = vadd.f32 %v3179, %v3370
        %v3372 = vpop.f32.mrb[0].mxu0
        %v3373 = vadd.f32 %v3179, %v3372
        %v3374 = vpop.f32.mrb[0].mxu0
        %v3375 = vadd.f32 %v3184, %v3374
        %v3376 = vpop.f32.mrb[0].mxu0
        %v3377 = vadd.f32 %v3184, %v3376
        %3378 = vmatprep.mubr.bf16.mxu0 %v3291
        %3379 = vmatmul.mubr.bf16.gmra.mrb[0].mxu0 %v3290
        %v3380 = vpop.f32.mrb[0].mxu0
        %v3381 = vadd.f32 %v3189, %v3380
        %v3382 = vpop.f32.mrb[0].mxu0
        %v3383 = vadd.f32 %v3189, %v3382
        %v3384 = vpop.f32.mrb[0].mxu0
        %v3385 = vadd.f32 %v3194, %v3384
        %v3386 = vpop.f32.mrb[0].mxu0
        %v3387 = vadd.f32 %v3194, %v3386
        %3388 = vmatprep.mubr.bf16.mxu0 %v3293
        %3389 = vmatmul.mubr.bf16.gmra.mrb[0].mxu0 %v3292
        %v3390 = vpop.f32.mrb[0].mxu0
        %v3391 = vadd.f32 %v3199, %v3390
        %v3392 = vpop.f32.mrb[0].mxu0
        %v3393 = vadd.f32 %v3199, %v3392
        %v3394 = vpop.f32.mrb[0].mxu0
        %v3395 = vadd.f32 %v3204, %v3394
        %v3396 = vpop.f32.mrb[0].mxu0
        %v3397 = vadd.f32 %v3204, %v3396
        %3398 = vmatprep.mubr.bf16.mxu0 %v3295
        %3399 = vmatmul.mubr.bf16.gmra.mrb[0].mxu0 %v3294
        %v3400 = vpop.f32.mrb[0].mxu0
        %v3401 = vadd.f32 %v3209, %v3400
        %v3402 = vpop.f32.mrb[0].mxu0
        %v3403 = vadd.f32 %v3209, %v3402
        %v3404 = vpop.f32.mrb[0].mxu0
        %v3405 = vadd.f32 %v3214, %v3404
        %v3406 = vpop.f32.mrb[0].mxu0
        %v3407 = vadd.f32 %v3214, %v3406
        %3408 = vmatprep.mubr.bf16.mxu0 %v3297
        %3409 = vmatmul.mubr.bf16.gmra.mrb[0].mxu0 %v3296
        %v3410 = vpop.f32.mrb[0].mxu0
        %v3411 = vadd.f32 %v3219, %v3410
        %v3412 = vpop.f32.mrb[0].mxu0
        %v3413 = vadd.f32 %v3219, %v3412
        %v3414 = vpop.f32.mrb[0].mxu0
        %v3415 = vadd.f32 %v3224, %v3414
        %v3416 = vpop.f32.mrb[0].mxu0
        %v3417 = vadd.f32 %v3224, %v3416
        %3418 = vmatprep.mubr.bf16.mxu0 %v3299
        %3419 = vmatmul.mubr.bf16.gmra.mrb[0].mxu0 %v3298
        %v3420 = vpop.f32.mrb[0].mxu0
        %v3421 = vadd.f32 %v3229, %v3420
        %v3422 = vpop.f32.mrb[0].mxu0
        %v3423 = vadd.f32 %v3229, %v3422
        %v3424 = vpop.f32.mrb[0].mxu0
        %v3425 = vadd.f32 %v3234, %v3424
        %v3426 = vpop.f32.mrb[0].mxu0
        %v3427 = vadd.f32 %v3234, %v3426
        %3428 = vdwg.mxu0
        %v3429 = vmax.f32 %v3351, 0.0
        %v3430 = vmax.f32 %v3353, 0.0
        %v3431 = vmax.f32 %v3355, 0.0
        %v3432 = vmax.f32 %v3357, 0.0
        %v3433 = vmax.f32 %v3361, 0.0
        %v3434 = vmax.f32 %v3363, 0.0
        %v3435 = vmax.f32 %v3365, 0.0
        %v3436 = vmax.f32 %v3367, 0.0
        %v3437 = vmax.f32 %v3371, 0.0
        %v3438 = vmax.f32 %v3373, 0.0
        %v3439 = vmax.f32 %v3375, 0.0
        %v3440 = vmax.f32 %v3377, 0.0
        %v3441 = vmax.f32 %v3381, 0.0
        %v3442 = vmax.f32 %v3383, 0.0
        %v3443 = vmax.f32 %v3385, 0.0
        %v3444 = vmax.f32 %v3387, 0.0
        %v3445 = vmax.f32 %v3391, 0.0
        %v3446 = vmax.f32 %v3393, 0.0
        %v3447 = vmax.f32 %v3395, 0.0
        %v3448 = vmax.f32 %v3397, 0.0
        %v3449 = vmax.f32 %v3401, 0.0
        %v3450 = vmax.f32 %v3403, 0.0
        %v3451 = vmax.f32 %v3405, 0.0
        %v3452 = vmax.f32 %v3407, 0.0
        %v3453 = vmax.f32 %v3411, 0.0
        %v3454 = vmax.f32 %v3413, 0.0
        %v3455 = vmax.f32 %v3415, 0.0
        %v3456 = vmax.f32 %v3417, 0.0
        %v3457 = vmax.f32 %v3421, 0.0
        %v3458 = vmax.f32 %v3423, 0.0
        %v3459 = vmax.f32 %v3425, 0.0
        %v3460 = vmax.f32 %v3427, 0.0
        %s3461 = scalar_lea.vmem %s1, 128
        %v3462 = vld [vmem:[%s3461] sm:$0xf]
        %v3463 = vld [vmem:[%s3461 + $0x4] sm:$0xf]
        %v3464 = vld [vmem:[%s3461 + $0x8] sm:$0xf]
        %v3465 = vld [vmem:[%s3461 + $0xc] sm:$0xf]
        %v3466 = vld [vmem:[%s3461 + $0x10] sm:$0xf]
        %v3467 = vld [vmem:[%s3461 + $0x14] sm:$0xf]
        %v3468 = vld [vmem:[%s3461 + $0x18] sm:$0xf]
        %v3469 = vld [vmem:[%s3461 + $0x1c] sm:$0xf]
        %v3470 = vld [vmem:[%s3461 + $0x20] sm:$0xf]
        %v3471 = vld [vmem:[%s3461 + $0x24] sm:$0xf]
        %v3472 = vld [vmem:[%s3461 + $0x28] sm:$0xf]
        %v3473 = vld [vmem:[%s3461 + $0x2c] sm:$0xf]
        %v3474 = vld [vmem:[%s3461 + $0x30] sm:$0xf]
        %v3475 = vld [vmem:[%s3461 + $0x34] sm:$0xf]
        %v3476 = vld [vmem:[%s3461 + $0x38] sm:$0xf]
        %v3477 = vld [vmem:[%s3461 + $0x3c] sm:$0xf]
        %s3478 = scalar_lea.vmem %s3, 1536
        %v3479 = vld [vmem:[%s3478] sm:$0xff]
        %v3480 = vld [vmem:[%s3478 + $0x8] sm:$0xff]
        %v3481 = vld [vmem:[%s3478 + $0x10] sm:$0xff]
        %v3482 = vld [vmem:[%s3478 + $0x18] sm:$0xff]
        %v3483 = vld [vmem:[%s3478 + $0x20] sm:$0xff]
        %v3484 = vld [vmem:[%s3478 + $0x28] sm:$0xff]
        %v3485 = vld [vmem:[%s3478 + $0x30] sm:$0xff]
        %v3486 = vld [vmem:[%s3478 + $0x38] sm:$0xff]
        %v3487 = vld [vmem:[%s3478 + $0x40] sm:$0xff]
        %v3488 = vld [vmem:[%s3478 + $0x48] sm:$0xff]
        %v3489 = vld [vmem:[%s3478 + $0x50] sm:$0xff]
        %v3490 = vld [vmem:[%s3478 + $0x58] sm:$0xff]
        %v3491 = vld [vmem:[%s3478 + $0x60] sm:$0xff]
        %v3492 = vld [vmem:[%s3478 + $0x68] sm:$0xff]
        %v3493 = vld [vmem:[%s3478 + $0x70] sm:$0xff]
        %v3494 = vld [vmem:[%s3478 + $0x78] sm:$0xff]
        %v3495 = vpack.c.bf16 %v3431, %v3429
        %v3496 = vpack.c.bf16 %v3432, %v3430
        %v3497 = vpack.c.bf16 %v3435, %v3433
        %v3498 = vpack.c.bf16 %v3436, %v3434
        %v3499 = vpack.c.bf16 %v3439, %v3437
        %v3500 = vpack.c.bf16 %v3440, %v3438
        %v3501 = vpack.c.bf16 %v3443, %v3441
        %v3502 = vpack.c.bf16 %v3444, %v3442
        %v3503 = vpack.c.bf16 %v3447, %v3445
        %v3504 = vpack.c.bf16 %v3448, %v3446
        %v3505 = vpack.c.bf16 %v3451, %v3449
        %v3506 = vpack.c.bf16 %v3452, %v3450
        %v3507 = vpack.c.bf16 %v3455, %v3453
        %v3508 = vpack.c.bf16 %v3456, %v3454
        %v3509 = vpack.c.bf16 %v3459, %v3457
        %v3510 = vpack.c.bf16 %v3460, %v3458
        %3512 = vset.pattern.permute.xlu0 0
        %3513 = vperm.xlu0 %3512, %v3479
        %v3514 = vpop.permute.xlu0 %3513
        %3517 = vset.pattern.permute.xlu0 0
        %3518 = vperm.xlu0 %3517, %v3480
        %v3519 = vpop.permute.xlu0 %3518
        %3522 = vset.pattern.permute.xlu0 0
        %3523 = vperm.xlu0 %3522, %v3481
        %v3524 = vpop.permute.xlu0 %3523
        %3527 = vset.pattern.permute.xlu0 0
        %3528 = vperm.xlu0 %3527, %v3482
        %v3529 = vpop.permute.xlu0 %3528
        %3532 = vset.pattern.permute.xlu0 0
        %3533 = vperm.xlu0 %3532, %v3483
        %v3534 = vpop.permute.xlu0 %3533
        %3537 = vset.pattern.permute.xlu0 0
        %3538 = vperm.xlu0 %3537, %v3484
        %v3539 = vpop.permute.xlu0 %3538
        %3542 = vset.pattern.permute.xlu0 0
        %3543 = vperm.xlu0 %3542, %v3485
        %v3544 = vpop.permute.xlu0 %3543
        %3547 = vset.pattern.permute.xlu0 0
        %3548 = vperm.xlu0 %3547, %v3486
        %v3549 = vpop.permute.xlu0 %3548
        %3552 = vset.pattern.permute.xlu0 0
        %3553 = vperm.xlu0 %3552, %v3487
        %v3554 = vpop.permute.xlu0 %3553
        %3557 = vset.pattern.permute.xlu0 0
        %3558 = vperm.xlu0 %3557, %v3488
        %v3559 = vpop.permute.xlu0 %3558
        %3562 = vset.pattern.permute.xlu0 0
        %3563 = vperm.xlu0 %3562, %v3489
        %v3564 = vpop.permute.xlu0 %3563
        %3567 = vset.pattern.permute.xlu0 0
        %3568 = vperm.xlu0 %3567, %v3490
        %v3569 = vpop.permute.xlu0 %3568
        %3572 = vset.pattern.permute.xlu0 0
        %3573 = vperm.xlu0 %3572, %v3491
        %v3574 = vpop.permute.xlu0 %3573
        %3577 = vset.pattern.permute.xlu0 0
        %3578 = vperm.xlu0 %3577, %v3492
        %v3579 = vpop.permute.xlu0 %3578
        %3582 = vset.pattern.permute.xlu0 0
        %3583 = vperm.xlu0 %3582, %v3493
        %v3584 = vpop.permute.xlu0 %3583
        %3587 = vset.pattern.permute.xlu0 0
        %3588 = vperm.xlu0 %3587, %v3494
        %v3589 = vpop.permute.xlu0 %3588
        %v3607 = vunpack.c.l.b16 %v3462
        %v3608 = vunpack.c.l.b16 %v3463
        %v3609 = vunpack.c.l.b16 %v3464
        %v3610 = vunpack.c.l.b16 %v3465
        %v3611 = vunpack.c.l.b16 %v3466
        %v3612 = vunpack.c.l.b16 %v3467
        %v3613 = vunpack.c.l.b16 %v3468
        %v3614 = vunpack.c.l.b16 %v3469
        %v3615 = vunpack.c.l.b16 %v3470
        %v3616 = vunpack.c.l.b16 %v3471
        %v3617 = vunpack.c.l.b16 %v3472
        %v3618 = vunpack.c.l.b16 %v3473
        %v3619 = vunpack.c.l.b16 %v3474
        %v3620 = vunpack.c.l.b16 %v3475
        %v3621 = vunpack.c.l.b16 %v3476
        %v3622 = vunpack.c.l.b16 %v3477
        %v3623 = vpack.c.b16 %v3608, %v3607
        %v3624 = vpack.c.b16 %v3610, %v3609
        %v3625 = vpack.c.b16 %v3612, %v3611
        %v3626 = vpack.c.b16 %v3614, %v3613
        %v3627 = vpack.c.b16 %v3616, %v3615
        %v3628 = vpack.c.b16 %v3618, %v3617
        %v3629 = vpack.c.b16 %v3620, %v3619
        %v3630 = vpack.c.b16 %v3622, %v3621
        %3639 = vmatprep.subr.bf16.mxu0 %v3496
        %3640 = vmatpush1.bf16.msra.mxu0 %v3495
        %3641 = vmatprep.subr.bf16.mxu0 %v3498
        %3642 = vmatpush1.bf16.msra.mxu0 %v3497
        %3643 = vmatprep.subr.bf16.mxu0 %v3500
        %3644 = vmatpush1.bf16.msra.mxu0 %v3499
        %3645 = vmatprep.subr.bf16.mxu0 %v3502
        %3646 = vmatpush1.bf16.msra.mxu0 %v3501
        %3647 = vmatprep.subr.bf16.mxu0 %v3504
        %3648 = vmatpush1.bf16.msra.mxu0 %v3503
        %3649 = vmatprep.subr.bf16.mxu0 %v3506
        %3650 = vmatpush1.bf16.msra.mxu0 %v3505
        %3651 = vmatprep.subr.bf16.mxu0 %v3508
        %3652 = vmatpush1.bf16.msra.mxu0 %v3507
        %3653 = vmatprep.subr.bf16.mxu0 %v3510
        %3654 = vmatpush1.bf16.msra.mxu0 %v3509
        %3655 = vmatprep.subr.bf16.mxu0 0
        %3656 = vmatpush1.bf16.msra.mxu0 0
        %3657 = vmatprep.subr.bf16.mxu0 0
        %3658 = vmatpush1.bf16.msra.mxu0 0
        %3659 = vmatprep.subr.bf16.mxu0 0
        %3660 = vmatpush1.bf16.msra.mxu0 0
        %3661 = vmatprep.subr.bf16.mxu0 0
        %3662 = vmatpush1.bf16.msra.mxu0 0
        %3663 = vmatprep.subr.bf16.mxu0 0
        %3664 = vmatpush1.bf16.msra.mxu0 0
        %3665 = vmatprep.subr.bf16.mxu0 0
        %3666 = vmatpush1.bf16.msra.mxu0 0
        %3667 = vmatprep.subr.bf16.mxu0 0
        %3668 = vmatpush1.bf16.msra.mxu0 0
        %3669 = vmatprep.subr.bf16.mxu0 0
        %3670 = vmatpush1.bf16.msra.mxu0 0
        %3671 = vmatprep.mubr.bf16.mxu0 0
        %3672 = vmatmul.mubr.bf16.gmra.mrb[0].mxu0 %v3623
        %v3673 = vpop.f32.mrb[0].mxu0
        %v3674 = vadd.f32 %v3514, %v3673
        %v3675 = vpop.f32.mrb[0].mxu0
        %v3676 = vadd.f32 %v3514, %v3675
        %v3677 = vpop.f32.mrb[0].mxu0
        %v3678 = vadd.f32 %v3519, %v3677
        %v3679 = vpop.f32.mrb[0].mxu0
        %v3680 = vadd.f32 %v3519, %v3679
        %3681 = vmatprep.mubr.bf16.mxu0 0
        %3682 = vmatmul.mubr.bf16.gmra.mrb[0].mxu0 %v3624
        %v3683 = vpop.f32.mrb[0].mxu0
        %v3684 = vadd.f32 %v3524, %v3683
        %v3685 = vpop.f32.mrb[0].mxu0
        %v3686 = vadd.f32 %v3524, %v3685
        %v3687 = vpop.f32.mrb[0].mxu0
        %v3688 = vadd.f32 %v3529, %v3687
        %v3689 = vpop.f32.mrb[0].mxu0
        %v3690 = vadd.f32 %v3529, %v3689
        %3691 = vmatprep.mubr.bf16.mxu0 0
        %3692 = vmatmul.mubr.bf16.gmra.mrb[0].mxu0 %v3625
        %v3693 = vpop.f32.mrb[0].mxu0
        %v3694 = vadd.f32 %v3534, %v3693
        %v3695 = vpop.f32.mrb[0].mxu0
        %v3696 = vadd.f32 %v3534, %v3695
        %v3697 = vpop.f32.mrb[0].mxu0
        %v3698 = vadd.f32 %v3539, %v3697
        %v3699 = vpop.f32.mrb[0].mxu0
        %v3700 = vadd.f32 %v3539, %v3699
        %3701 = vmatprep.mubr.bf16.mxu0 0
        %3702 = vmatmul.mubr.bf16.gmra.mrb[0].mxu0 %v3626
        %v3703 = vpop.f32.mrb[0].mxu0
        %v3704 = vadd.f32 %v3544, %v3703
        %v3705 = vpop.f32.mrb[0].mxu0
        %v3706 = vadd.f32 %v3544, %v3705
        %v3707 = vpop.f32.mrb[0].mxu0
        %v3708 = vadd.f32 %v3549, %v3707
        %v3709 = vpop.f32.mrb[0].mxu0
        %v3710 = vadd.f32 %v3549, %v3709
        %3711 = vmatprep.mubr.bf16.mxu0 0
        %3712 = vmatmul.mubr.bf16.gmra.mrb[0].mxu0 %v3627
        %v3713 = vpop.f32.mrb[0].mxu0
        %v3714 = vadd.f32 %v3554, %v3713
        %v3715 = vpop.f32.mrb[0].mxu0
        %v3716 = vadd.f32 %v3554, %v3715
        %v3717 = vpop.f32.mrb[0].mxu0
        %v3718 = vadd.f32 %v3559, %v3717
        %v3719 = vpop.f32.mrb[0].mxu0
        %v3720 = vadd.f32 %v3559, %v3719
        %3721 = vmatprep.mubr.bf16.mxu0 0
        %3722 = vmatmul.mubr.bf16.gmra.mrb[0].mxu0 %v3628
        %v3723 = vpop.f32.mrb[0].mxu0
        %v3724 = vadd.f32 %v3564, %v3723
        %v3725 = vpop.f32.mrb[0].mxu0
        %v3726 = vadd.f32 %v3564, %v3725
        %v3727 = vpop.f32.mrb[0].mxu0
        %v3728 = vadd.f32 %v3569, %v3727
        %v3729 = vpop.f32.mrb[0].mxu0
        %v3730 = vadd.f32 %v3569, %v3729
        %3731 = vmatprep.mubr.bf16.mxu0 0
        %3732 = vmatmul.mubr.bf16.gmra.mrb[0].mxu0 %v3629
        %v3733 = vpop.f32.mrb[0].mxu0
        %v3734 = vadd.f32 %v3574, %v3733
        %v3735 = vpop.f32.mrb[0].mxu0
        %v3736 = vadd.f32 %v3574, %v3735
        %v3737 = vpop.f32.mrb[0].mxu0
        %v3738 = vadd.f32 %v3579, %v3737
        %v3739 = vpop.f32.mrb[0].mxu0
        %v3740 = vadd.f32 %v3579, %v3739
        %3741 = vmatprep.mubr.bf16.mxu0 0
        %3742 = vmatmul.mubr.bf16.gmra.mrb[0].mxu0 %v3630
        %v3743 = vpop.f32.mrb[0].mxu0
        %v3744 = vadd.f32 %v3584, %v3743
        %v3745 = vpop.f32.mrb[0].mxu0
        %v3746 = vadd.f32 %v3584, %v3745
        %v3747 = vpop.f32.mrb[0].mxu0
        %v3748 = vadd.f32 %v3589, %v3747
        %v3749 = vpop.f32.mrb[0].mxu0
        %v3750 = vadd.f32 %v3589, %v3749
        %3751 = vdwg.mxu0
        %v3752 = vmax.f32 %v3674, 0.0
        %v3753 = vmax.f32 %v3676, 0.0
        %v3754 = vmax.f32 %v3678, 0.0
        %v3755 = vmax.f32 %v3680, 0.0
        %v3756 = vmax.f32 %v3684, 0.0
        %v3757 = vmax.f32 %v3686, 0.0
        %v3758 = vmax.f32 %v3688, 0.0
        %v3759 = vmax.f32 %v3690, 0.0
        %v3760 = vmax.f32 %v3694, 0.0
        %v3761 = vmax.f32 %v3696, 0.0
        %v3762 = vmax.f32 %v3698, 0.0
        %v3763 = vmax.f32 %v3700, 0.0
        %v3764 = vmax.f32 %v3704, 0.0
        %v3765 = vmax.f32 %v3706, 0.0
        %v3766 = vmax.f32 %v3708, 0.0
        %v3767 = vmax.f32 %v3710, 0.0
        %v3768 = vmax.f32 %v3714, 0.0
        %v3769 = vmax.f32 %v3716, 0.0
        %v3770 = vmax.f32 %v3718, 0.0
        %v3771 = vmax.f32 %v3720, 0.0
        %v3772 = vmax.f32 %v3724, 0.0
        %v3773 = vmax.f32 %v3726, 0.0
        %v3774 = vmax.f32 %v3728, 0.0
        %v3775 = vmax.f32 %v3730, 0.0
        %v3776 = vmax.f32 %v3734, 0.0
        %v3777 = vmax.f32 %v3736, 0.0
        %v3778 = vmax.f32 %v3738, 0.0
        %v3779 = vmax.f32 %v3740, 0.0
        %v3780 = vmax.f32 %v3744, 0.0
        %v3781 = vmax.f32 %v3746, 0.0
        %v3782 = vmax.f32 %v3748, 0.0
        %v3783 = vmax.f32 %v3750, 0.0
        %s3784 = scalar_lea.vmem %s1, 192
        %v3785 = vld [vmem:[%s3784] sm:$0xf]
        %v3786 = vld [vmem:[%s3784 + $0x4] sm:$0xf]
        %v3787 = vld [vmem:[%s3784 + $0x8] sm:$0xf]
        %v3788 = vld [vmem:[%s3784 + $0xc] sm:$0xf]
        %v3789 = vld [vmem:[%s3784 + $0x10] sm:$0xf]
        %v3790 = vld [vmem:[%s3784 + $0x14] sm:$0xf]
        %v3791 = vld [vmem:[%s3784 + $0x18] sm:$0xf]
        %v3792 = vld [vmem:[%s3784 + $0x1c] sm:$0xf]
        %v3793 = vld [vmem:[%s3784 + $0x20] sm:$0xf]
        %v3794 = vld [vmem:[%s3784 + $0x24] sm:$0xf]
        %v3795 = vld [vmem:[%s3784 + $0x28] sm:$0xf]
        %v3796 = vld [vmem:[%s3784 + $0x2c] sm:$0xf]
        %v3797 = vld [vmem:[%s3784 + $0x30] sm:$0xf]
        %v3798 = vld [vmem:[%s3784 + $0x34] sm:$0xf]
        %v3799 = vld [vmem:[%s3784 + $0x38] sm:$0xf]
        %v3800 = vld [vmem:[%s3784 + $0x3c] sm:$0xf]
        %s3801 = scalar_lea.vmem %s3, 1792
        %v3802 = vld [vmem:[%s3801] sm:$0xff]
        %v3803 = vld [vmem:[%s3801 + $0x8] sm:$0xff]
        %v3804 = vld [vmem:[%s3801 + $0x10] sm:$0xff]
        %v3805 = vld [vmem:[%s3801 + $0x18] sm:$0xff]
        %v3806 = vld [vmem:[%s3801 + $0x20] sm:$0xff]
        %v3807 = vld [vmem:[%s3801 + $0x28] sm:$0xff]
        %v3808 = vld [vmem:[%s3801 + $0x30] sm:$0xff]
        %v3809 = vld [vmem:[%s3801 + $0x38] sm:$0xff]
        %v3810 = vld [vmem:[%s3801 + $0x40] sm:$0xff]
        %v3811 = vld [vmem:[%s3801 + $0x48] sm:$0xff]
        %v3812 = vld [vmem:[%s3801 + $0x50] sm:$0xff]
        %v3813 = vld [vmem:[%s3801 + $0x58] sm:$0xff]
        %v3814 = vld [vmem:[%s3801 + $0x60] sm:$0xff]
        %v3815 = vld [vmem:[%s3801 + $0x68] sm:$0xff]
        %v3816 = vld [vmem:[%s3801 + $0x70] sm:$0xff]
        %v3817 = vld [vmem:[%s3801 + $0x78] sm:$0xff]
        %v3818 = vpack.c.bf16 %v3754, %v3752
        %v3819 = vpack.c.bf16 %v3755, %v3753
        %v3820 = vpack.c.bf16 %v3758, %v3756
        %v3821 = vpack.c.bf16 %v3759, %v3757
        %v3822 = vpack.c.bf16 %v3762, %v3760
        %v3823 = vpack.c.bf16 %v3763, %v3761
        %v3824 = vpack.c.bf16 %v3766, %v3764
        %v3825 = vpack.c.bf16 %v3767, %v3765
        %v3826 = vpack.c.bf16 %v3770, %v3768
        %v3827 = vpack.c.bf16 %v3771, %v3769
        %v3828 = vpack.c.bf16 %v3774, %v3772
        %v3829 = vpack.c.bf16 %v3775, %v3773
        %v3830 = vpack.c.bf16 %v3778, %v3776
        %v3831 = vpack.c.bf16 %v3779, %v3777
        %v3832 = vpack.c.bf16 %v3782, %v3780
        %v3833 = vpack.c.bf16 %v3783, %v3781
        %3835 = vset.pattern.permute.xlu0 0
        %3836 = vperm.xlu0 %3835, %v3802
        %v3837 = vpop.permute.xlu0 %3836
        %3840 = vset.pattern.permute.xlu0 0
        %3841 = vperm.xlu0 %3840, %v3803
        %v3842 = vpop.permute.xlu0 %3841
        %3845 = vset.pattern.permute.xlu0 0
        %3846 = vperm.xlu0 %3845, %v3804
        %v3847 = vpop.permute.xlu0 %3846
        %3850 = vset.pattern.permute.xlu0 0
        %3851 = vperm.xlu0 %3850, %v3805
        %v3852 = vpop.permute.xlu0 %3851
        %3855 = vset.pattern.permute.xlu0 0
        %3856 = vperm.xlu0 %3855, %v3806
        %v3857 = vpop.permute.xlu0 %3856
        %3860 = vset.pattern.permute.xlu0 0
        %3861 = vperm.xlu0 %3860, %v3807
        %v3862 = vpop.permute.xlu0 %3861
        %3865 = vset.pattern.permute.xlu0 0
        %3866 = vperm.xlu0 %3865, %v3808
        %v3867 = vpop.permute.xlu0 %3866
        %3870 = vset.pattern.permute.xlu0 0
        %3871 = vperm.xlu0 %3870, %v3809
        %v3872 = vpop.permute.xlu0 %3871
        %3875 = vset.pattern.permute.xlu0 0
        %3876 = vperm.xlu0 %3875, %v3810
        %v3877 = vpop.permute.xlu0 %3876
        %3880 = vset.pattern.permute.xlu0 0
        %3881 = vperm.xlu0 %3880, %v3811
        %v3882 = vpop.permute.xlu0 %3881
        %3885 = vset.pattern.permute.xlu0 0
        %3886 = vperm.xlu0 %3885, %v3812
        %v3887 = vpop.permute.xlu0 %3886
        %3890 = vset.pattern.permute.xlu0 0
        %3891 = vperm.xlu0 %3890, %v3813
        %v3892 = vpop.permute.xlu0 %3891
        %3895 = vset.pattern.permute.xlu0 0
        %3896 = vperm.xlu0 %3895, %v3814
        %v3897 = vpop.permute.xlu0 %3896
        %3900 = vset.pattern.permute.xlu0 0
        %3901 = vperm.xlu0 %3900, %v3815
        %v3902 = vpop.permute.xlu0 %3901
        %3905 = vset.pattern.permute.xlu0 0
        %3906 = vperm.xlu0 %3905, %v3816
        %v3907 = vpop.permute.xlu0 %3906
        %3910 = vset.pattern.permute.xlu0 0
        %3911 = vperm.xlu0 %3910, %v3817
        %v3912 = vpop.permute.xlu0 %3911
        %v3930 = vunpack.c.l.b16 %v3785
        %v3931 = vunpack.c.l.b16 %v3786
        %v3932 = vunpack.c.l.b16 %v3787
        %v3933 = vunpack.c.l.b16 %v3788
        %v3934 = vunpack.c.l.b16 %v3789
        %v3935 = vunpack.c.l.b16 %v3790
        %v3936 = vunpack.c.l.b16 %v3791
        %v3937 = vunpack.c.l.b16 %v3792
        %v3938 = vunpack.c.l.b16 %v3793
        %v3939 = vunpack.c.l.b16 %v3794
        %v3940 = vunpack.c.l.b16 %v3795
        %v3941 = vunpack.c.l.b16 %v3796
        %v3942 = vunpack.c.l.b16 %v3797
        %v3943 = vunpack.c.l.b16 %v3798
        %v3944 = vunpack.c.l.b16 %v3799
        %v3945 = vunpack.c.l.b16 %v3800
        %v3946 = vpack.c.b16 %v3931, %v3930
        %v3947 = vpack.c.b16 %v3933, %v3932
        %v3948 = vpack.c.b16 %v3935, %v3934
        %v3949 = vpack.c.b16 %v3937, %v3936
        %v3950 = vpack.c.b16 %v3939, %v3938
        %v3951 = vpack.c.b16 %v3941, %v3940
        %v3952 = vpack.c.b16 %v3943, %v3942
        %v3953 = vpack.c.b16 %v3945, %v3944
        %3962 = vmatprep.subr.bf16.mxu0 %v3819
        %3963 = vmatpush1.bf16.msra.mxu0 %v3818
        %3964 = vmatprep.subr.bf16.mxu0 %v3821
        %3965 = vmatpush1.bf16.msra.mxu0 %v3820
        %3966 = vmatprep.subr.bf16.mxu0 %v3823
        %3967 = vmatpush1.bf16.msra.mxu0 %v3822
        %3968 = vmatprep.subr.bf16.mxu0 %v3825
        %3969 = vmatpush1.bf16.msra.mxu0 %v3824
        %3970 = vmatprep.subr.bf16.mxu0 %v3827
        %3971 = vmatpush1.bf16.msra.mxu0 %v3826
        %3972 = vmatprep.subr.bf16.mxu0 %v3829
        %3973 = vmatpush1.bf16.msra.mxu0 %v3828
        %3974 = vmatprep.subr.bf16.mxu0 %v3831
        %3975 = vmatpush1.bf16.msra.mxu0 %v3830
        %3976 = vmatprep.subr.bf16.mxu0 %v3833
        %3977 = vmatpush1.bf16.msra.mxu0 %v3832
        %3978 = vmatprep.subr.bf16.mxu0 0
        %3979 = vmatpush1.bf16.msra.mxu0 0
        %3980 = vmatprep.subr.bf16.mxu0 0
        %3981 = vmatpush1.bf16.msra.mxu0 0
        %3982 = vmatprep.subr.bf16.mxu0 0
        %3983 = vmatpush1.bf16.msra.mxu0 0
        %3984 = vmatprep.subr.bf16.mxu0 0
        %3985 = vmatpush1.bf16.msra.mxu0 0
        %3986 = vmatprep.subr.bf16.mxu0 0
        %3987 = vmatpush1.bf16.msra.mxu0 0
        %3988 = vmatprep.subr.bf16.mxu0 0
        %3989 = vmatpush1.bf16.msra.mxu0 0
        %3990 = vmatprep.subr.bf16.mxu0 0
        %3991 = vmatpush1.bf16.msra.mxu0 0
        %3992 = vmatprep.subr.bf16.mxu0 0
        %3993 = vmatpush1.bf16.msra.mxu0 0
        %3994 = vmatprep.mubr.bf16.mxu0 0
        %3995 = vmatmul.mubr.bf16.gmra.mrb[0].mxu0 %v3946
        %v3996 = vpop.f32.mrb[0].mxu0
        %v3997 = vadd.f32 %v3837, %v3996
        %v3998 = vpop.f32.mrb[0].mxu0
        %v3999 = vadd.f32 %v3837, %v3998
        %v4000 = vpop.f32.mrb[0].mxu0
        %v4001 = vadd.f32 %v3842, %v4000
        %v4002 = vpop.f32.mrb[0].mxu0
        %v4003 = vadd.f32 %v3842, %v4002
        %4004 = vmatprep.mubr.bf16.mxu0 0
        %4005 = vmatmul.mubr.bf16.gmra.mrb[0].mxu0 %v3947
        %v4006 = vpop.f32.mrb[0].mxu0
        %v4007 = vadd.f32 %v3847, %v4006
        %v4008 = vpop.f32.mrb[0].mxu0
        %v4009 = vadd.f32 %v3847, %v4008
        %v4010 = vpop.f32.mrb[0].mxu0
        %v4011 = vadd.f32 %v3852, %v4010
        %v4012 = vpop.f32.mrb[0].mxu0
        %v4013 = vadd.f32 %v3852, %v4012
        %4014 = vmatprep.mubr.bf16.mxu0 0
        %4015 = vmatmul.mubr.bf16.gmra.mrb[0].mxu0 %v3948
        %v4016 = vpop.f32.mrb[0].mxu0
        %v4017 = vadd.f32 %v3857, %v4016
        %v4018 = vpop.f32.mrb[0].mxu0
        %v4019 = vadd.f32 %v3857, %v4018
        %v4020 = vpop.f32.mrb[0].mxu0
        %v4021 = vadd.f32 %v3862, %v4020
        %v4022 = vpop.f32.mrb[0].mxu0
        %v4023 = vadd.f32 %v3862, %v4022
        %4024 = vmatprep.mubr.bf16.mxu0 0
        %4025 = vmatmul.mubr.bf16.gmra.mrb[0].mxu0 %v3949
        %v4026 = vpop.f32.mrb[0].mxu0
        %v4027 = vadd.f32 %v3867, %v4026
        %v4028 = vpop.f32.mrb[0].mxu0
        %v4029 = vadd.f32 %v3867, %v4028
        %v4030 = vpop.f32.mrb[0].mxu0
        %v4031 = vadd.f32 %v3872, %v4030
        %v4032 = vpop.f32.mrb[0].mxu0
        %v4033 = vadd.f32 %v3872, %v4032
        %4034 = vmatprep.mubr.bf16.mxu0 0
        %4035 = vmatmul.mubr.bf16.gmra.mrb[0].mxu0 %v3950
        %v4036 = vpop.f32.mrb[0].mxu0
        %v4037 = vadd.f32 %v3877, %v4036
        %v4038 = vpop.f32.mrb[0].mxu0
        %v4039 = vadd.f32 %v3877, %v4038
        %v4040 = vpop.f32.mrb[0].mxu0
        %v4041 = vadd.f32 %v3882, %v4040
        %v4042 = vpop.f32.mrb[0].mxu0
        %v4043 = vadd.f32 %v3882, %v4042
        %4044 = vmatprep.mubr.bf16.mxu0 0
        %4045 = vmatmul.mubr.bf16.gmra.mrb[0].mxu0 %v3951
        %v4046 = vpop.f32.mrb[0].mxu0
        %v4047 = vadd.f32 %v3887, %v4046
        %v4048 = vpop.f32.mrb[0].mxu0
        %v4049 = vadd.f32 %v3887, %v4048
        %v4050 = vpop.f32.mrb[0].mxu0
        %v4051 = vadd.f32 %v3892, %v4050
        %v4052 = vpop.f32.mrb[0].mxu0
        %v4053 = vadd.f32 %v3892, %v4052
        %4054 = vmatprep.mubr.bf16.mxu0 0
        %4055 = vmatmul.mubr.bf16.gmra.mrb[0].mxu0 %v3952
        %v4056 = vpop.f32.mrb[0].mxu0
        %v4057 = vadd.f32 %v3897, %v4056
        %v4058 = vpop.f32.mrb[0].mxu0
        %v4059 = vadd.f32 %v3897, %v4058
        %v4060 = vpop.f32.mrb[0].mxu0
        %v4061 = vadd.f32 %v3902, %v4060
        %v4062 = vpop.f32.mrb[0].mxu0
        %v4063 = vadd.f32 %v3902, %v4062
        %4064 = vmatprep.mubr.bf16.mxu0 0
        %4065 = vmatmul.mubr.bf16.gmra.mrb[0].mxu0 %v3953
        %v4066 = vpop.f32.mrb[0].mxu0
        %v4067 = vadd.f32 %v3907, %v4066
        %v4068 = vpop.f32.mrb[0].mxu0
        %v4069 = vadd.f32 %v3907, %v4068
        %v4070 = vpop.f32.mrb[0].mxu0
        %v4071 = vadd.f32 %v3912, %v4070
        %v4072 = vpop.f32.mrb[0].mxu0
        %v4073 = vadd.f32 %v3912, %v4072
        %4074 = vdwg.mxu0
        %v4075 = vmax.f32 %v3997, 0.0
        %v4076 = vmax.f32 %v3999, 0.0
        %v4077 = vmax.f32 %v4001, 0.0
        %v4078 = vmax.f32 %v4003, 0.0
        %v4079 = vmax.f32 %v4007, 0.0
        %v4080 = vmax.f32 %v4009, 0.0
        %v4081 = vmax.f32 %v4011, 0.0
        %v4082 = vmax.f32 %v4013, 0.0
        %v4083 = vmax.f32 %v4017, 0.0
        %v4084 = vmax.f32 %v4019, 0.0
        %v4085 = vmax.f32 %v4021, 0.0
        %v4086 = vmax.f32 %v4023, 0.0
        %v4087 = vmax.f32 %v4027, 0.0
        %v4088 = vmax.f32 %v4029, 0.0
        %v4089 = vmax.f32 %v4031, 0.0
        %v4090 = vmax.f32 %v4033, 0.0
        %v4091 = vmax.f32 %v4037, 0.0
        %v4092 = vmax.f32 %v4039, 0.0
        %v4093 = vmax.f32 %v4041, 0.0
        %v4094 = vmax.f32 %v4043, 0.0
        %v4095 = vmax.f32 %v4047, 0.0
        %v4096 = vmax.f32 %v4049, 0.0
        %v4097 = vmax.f32 %v4051, 0.0
        %v4098 = vmax.f32 %v4053, 0.0
        %v4099 = vmax.f32 %v4057, 0.0
        %v4100 = vmax.f32 %v4059, 0.0
        %v4101 = vmax.f32 %v4061, 0.0
        %v4102 = vmax.f32 %v4063, 0.0
        %v4103 = vmax.f32 %v4067, 0.0
        %v4104 = vmax.f32 %v4069, 0.0
        %v4105 = vmax.f32 %v4071, 0.0
        %v4106 = vmax.f32 %v4073, 0.0
        %v4107 = vadd.f32 %v4075, %v3429
        %v4108 = vadd.f32 %v4076, %v3430
        %v4109 = vadd.f32 %v4077, %v3431
        %v4110 = vadd.f32 %v4078, %v3432
        %v4111 = vadd.f32 %v4079, %v3433
        %v4112 = vadd.f32 %v4080, %v3434
        %v4113 = vadd.f32 %v4081, %v3435
        %v4114 = vadd.f32 %v4082, %v3436
        %v4115 = vadd.f32 %v4083, %v3437
        %v4116 = vadd.f32 %v4084, %v3438
        %v4117 = vadd.f32 %v4085, %v3439
        %v4118 = vadd.f32 %v4086, %v3440
        %v4119 = vadd.f32 %v4087, %v3441
        %v4120 = vadd.f32 %v4088, %v3442
        %v4121 = vadd.f32 %v4089, %v3443
        %v4122 = vadd.f32 %v4090, %v3444
        %v4123 = vadd.f32 %v4091, %v3445
        %v4124 = vadd.f32 %v4092, %v3446
        %v4125 = vadd.f32 %v4093, %v3447
        %v4126 = vadd.f32 %v4094, %v3448
        %v4127 = vadd.f32 %v4095, %v3449
        %v4128 = vadd.f32 %v4096, %v3450
        %v4129 = vadd.f32 %v4097, %v3451
        %v4130 = vadd.f32 %v4098, %v3452
        %v4131 = vadd.f32 %v4099, %v3453
        %v4132 = vadd.f32 %v4100, %v3454
        %v4133 = vadd.f32 %v4101, %v3455
        %v4134 = vadd.f32 %v4102, %v3456
        %v4135 = vadd.f32 %v4103, %v3457
        %v4136 = vadd.f32 %v4104, %v3458
        %v4137 = vadd.f32 %v4105, %v3459
        %v4138 = vadd.f32 %v4106, %v3460
        %s4139 = scalar_lea.vmem %s1, 256
        %v4140 = vld [vmem:[%s4139] sm:$0xf]
        %v4141 = vld [vmem:[%s4139 + $0x4] sm:$0xf]
        %v4142 = vld [vmem:[%s4139 + $0x8] sm:$0xf]
        %v4143 = vld [vmem:[%s4139 + $0xc] sm:$0xf]
        %v4144 = vld [vmem:[%s4139 + $0x10] sm:$0xf]
        %v4145 = vld [vmem:[%s4139 + $0x14] sm:$0xf]
        %v4146 = vld [vmem:[%s4139 + $0x18] sm:$0xf]
        %v4147 = vld [vmem:[%s4139 + $0x1c] sm:$0xf]
        %v4148 = vld [vmem:[%s4139 + $0x20] sm:$0xf]
        %v4149 = vld [vmem:[%s4139 + $0x24] sm:$0xf]
        %v4150 = vld [vmem:[%s4139 + $0x28] sm:$0xf]
        %v4151 = vld [vmem:[%s4139 + $0x2c] sm:$0xf]
        %v4152 = vld [vmem:[%s4139 + $0x30] sm:$0xf]
        %v4153 = vld [vmem:[%s4139 + $0x34] sm:$0xf]
        %v4154 = vld [vmem:[%s4139 + $0x38] sm:$0xf]
        %v4155 = vld [vmem:[%s4139 + $0x3c] sm:$0xf]
        %s4156 = scalar_lea.vmem %s3, 2048
        %v4157 = vld [vmem:[%s4156] sm:$0xff]
        %v4158 = vld [vmem:[%s4156 + $0x8] sm:$0xff]
        %v4159 = vld [vmem:[%s4156 + $0x10] sm:$0xff]
        %v4160 = vld [vmem:[%s4156 + $0x18] sm:$0xff]
        %v4161 = vld [vmem:[%s4156 + $0x20] sm:$0xff]
        %v4162 = vld [vmem:[%s4156 + $0x28] sm:$0xff]
        %v4163 = vld [vmem:[%s4156 + $0x30] sm:$0xff]
        %v4164 = vld [vmem:[%s4156 + $0x38] sm:$0xff]
        %v4165 = vld [vmem:[%s4156 + $0x40] sm:$0xff]
        %v4166 = vld [vmem:[%s4156 + $0x48] sm:$0xff]
        %v4167 = vld [vmem:[%s4156 + $0x50] sm:$0xff]
        %v4168 = vld [vmem:[%s4156 + $0x58] sm:$0xff]
        %v4169 = vld [vmem:[%s4156 + $0x60] sm:$0xff]
        %v4170 = vld [vmem:[%s4156 + $0x68] sm:$0xff]
        %v4171 = vld [vmem:[%s4156 + $0x70] sm:$0xff]
        %v4172 = vld [vmem:[%s4156 + $0x78] sm:$0xff]
        %v4173 = vpack.c.bf16 %v4109, %v4107
        %v4174 = vpack.c.bf16 %v4110, %v4108
        %v4175 = vpack.c.bf16 %v4113, %v4111
        %v4176 = vpack.c.bf16 %v4114, %v4112
        %v4177 = vpack.c.bf16 %v4117, %v4115
        %v4178 = vpack.c.bf16 %v4118, %v4116
        %v4179 = vpack.c.bf16 %v4121, %v4119
        %v4180 = vpack.c.bf16 %v4122, %v4120
        %v4181 = vpack.c.bf16 %v4125, %v4123
        %v4182 = vpack.c.bf16 %v4126, %v4124
        %v4183 = vpack.c.bf16 %v4129, %v4127
        %v4184 = vpack.c.bf16 %v4130, %v4128
        %v4185 = vpack.c.bf16 %v4133, %v4131
        %v4186 = vpack.c.bf16 %v4134, %v4132
        %v4187 = vpack.c.bf16 %v4137, %v4135
        %v4188 = vpack.c.bf16 %v4138, %v4136
        %4190 = vset.pattern.permute.xlu0 0
        %4191 = vperm.xlu0 %4190, %v4157
        %v4192 = vpop.permute.xlu0 %4191
        %4195 = vset.pattern.permute.xlu0 0
        %4196 = vperm.xlu0 %4195, %v4158
        %v4197 = vpop.permute.xlu0 %4196
        %4200 = vset.pattern.permute.xlu0 0
        %4201 = vperm.xlu0 %4200, %v4159
        %v4202 = vpop.permute.xlu0 %4201
        %4205 = vset.pattern.permute.xlu0 0
        %4206 = vperm.xlu0 %4205, %v4160
        %v4207 = vpop.permute.xlu0 %4206
        %4210 = vset.pattern.permute.xlu0 0
        %4211 = vperm.xlu0 %4210, %v4161
        %v4212 = vpop.permute.xlu0 %4211
        %4215 = vset.pattern.permute.xlu0 0
        %4216 = vperm.xlu0 %4215, %v4162
        %v4217 = vpop.permute.xlu0 %4216
        %4220 = vset.pattern.permute.xlu0 0
        %4221 = vperm.xlu0 %4220, %v4163
        %v4222 = vpop.permute.xlu0 %4221
        %4225 = vset.pattern.permute.xlu0 0
        %4226 = vperm.xlu0 %4225, %v4164
        %v4227 = vpop.permute.xlu0 %4226
        %4230 = vset.pattern.permute.xlu0 0
        %4231 = vperm.xlu0 %4230, %v4165
        %v4232 = vpop.permute.xlu0 %4231
        %4235 = vset.pattern.permute.xlu0 0
        %4236 = vperm.xlu0 %4235, %v4166
        %v4237 = vpop.permute.xlu0 %4236
        %4240 = vset.pattern.permute.xlu0 0
        %4241 = vperm.xlu0 %4240, %v4167
        %v4242 = vpop.permute.xlu0 %4241
        %4245 = vset.pattern.permute.xlu0 0
        %4246 = vperm.xlu0 %4245, %v4168
        %v4247 = vpop.permute.xlu0 %4246
        %4250 = vset.pattern.permute.xlu0 0
        %4251 = vperm.xlu0 %4250, %v4169
        %v4252 = vpop.permute.xlu0 %4251
        %4255 = vset.pattern.permute.xlu0 0
        %4256 = vperm.xlu0 %4255, %v4170
        %v4257 = vpop.permute.xlu0 %4256
        %4260 = vset.pattern.permute.xlu0 0
        %4261 = vperm.xlu0 %4260, %v4171
        %v4262 = vpop.permute.xlu0 %4261
        %4265 = vset.pattern.permute.xlu0 0
        %4266 = vperm.xlu0 %4265, %v4172
        %v4267 = vpop.permute.xlu0 %4266
        %v4285 = vunpack.c.l.b16 %v4140
        %v4286 = vunpack.c.l.b16 %v4141
        %v4287 = vunpack.c.l.b16 %v4142
        %v4288 = vunpack.c.l.b16 %v4143
        %v4289 = vunpack.c.l.b16 %v4144
        %v4290 = vunpack.c.l.b16 %v4145
        %v4291 = vunpack.c.l.b16 %v4146
        %v4292 = vunpack.c.l.b16 %v4147
        %v4293 = vunpack.c.l.b16 %v4148
        %v4294 = vunpack.c.l.b16 %v4149
        %v4295 = vunpack.c.l.b16 %v4150
        %v4296 = vunpack.c.l.b16 %v4151
        %v4297 = vunpack.c.l.b16 %v4152
        %v4298 = vunpack.c.l.b16 %v4153
        %v4299 = vunpack.c.l.b16 %v4154
        %v4300 = vunpack.c.l.b16 %v4155
        %v4301 = vpack.c.b16 %v4286, %v4285
        %v4302 = vpack.c.b16 %v4288, %v4287
        %v4303 = vpack.c.b16 %v4290, %v4289
        %v4304 = vpack.c.b16 %v4292, %v4291
        %v4305 = vpack.c.b16 %v4294, %v4293
        %v4306 = vpack.c.b16 %v4296, %v4295
        %v4307 = vpack.c.b16 %v4298, %v4297
        %v4308 = vpack.c.b16 %v4300, %v4299
        %4317 = vmatprep.subr.bf16.mxu0 %v4174
        %4318 = vmatpush1.bf16.msra.mxu0 %v4173
        %4319 = vmatprep.subr.bf16.mxu0 %v4176
        %4320 = vmatpush1.bf16.msra.mxu0 %v4175
        %4321 = vmatprep.subr.bf16.mxu0 %v4178
        %4322 = vmatpush1.bf16.msra.mxu0 %v4177
        %4323 = vmatprep.subr.bf16.mxu0 %v4180
        %4324 = vmatpush1.bf16.msra.mxu0 %v4179
        %4325 = vmatprep.subr.bf16.mxu0 %v4182
        %4326 = vmatpush1.bf16.msra.mxu0 %v4181
        %4327 = vmatprep.subr.bf16.mxu0 %v4184
        %4328 = vmatpush1.bf16.msra.mxu0 %v4183
        %4329 = vmatprep.subr.bf16.mxu0 %v4186
        %4330 = vmatpush1.bf16.msra.mxu0 %v4185
        %4331 = vmatprep.subr.bf16.mxu0 %v4188
        %4332 = vmatpush1.bf16.msra.mxu0 %v4187
        %4333 = vmatprep.subr.bf16.mxu0 0
        %4334 = vmatpush1.bf16.msra.mxu0 0
        %4335 = vmatprep.subr.bf16.mxu0 0
        %4336 = vmatpush1.bf16.msra.mxu0 0
        %4337 = vmatprep.subr.bf16.mxu0 0
        %4338 = vmatpush1.bf16.msra.mxu0 0
        %4339 = vmatprep.subr.bf16.mxu0 0
        %4340 = vmatpush1.bf16.msra.mxu0 0
        %4341 = vmatprep.subr.bf16.mxu0 0
        %4342 = vmatpush1.bf16.msra.mxu0 0
        %4343 = vmatprep.subr.bf16.mxu0 0
        %4344 = vmatpush1.bf16.msra.mxu0 0
        %4345 = vmatprep.subr.bf16.mxu0 0
        %4346 = vmatpush1.bf16.msra.mxu0 0
        %4347 = vmatprep.subr.bf16.mxu0 0
        %4348 = vmatpush1.bf16.msra.mxu0 0
        %4349 = vmatprep.mubr.bf16.mxu0 0
        %4350 = vmatmul.mubr.bf16.gmra.mrb[0].mxu0 %v4301
        %v4351 = vpop.f32.mrb[0].mxu0
        %v4352 = vadd.f32 %v4192, %v4351
        %v4353 = vpop.f32.mrb[0].mxu0
        %v4354 = vadd.f32 %v4192, %v4353
        %v4355 = vpop.f32.mrb[0].mxu0
        %v4356 = vadd.f32 %v4197, %v4355
        %v4357 = vpop.f32.mrb[0].mxu0
        %v4358 = vadd.f32 %v4197, %v4357
        %4359 = vmatprep.mubr.bf16.mxu0 0
        %4360 = vmatmul.mubr.bf16.gmra.mrb[0].mxu0 %v4302
        %v4361 = vpop.f32.mrb[0].mxu0
        %v4362 = vadd.f32 %v4202, %v4361
        %v4363 = vpop.f32.mrb[0].mxu0
        %v4364 = vadd.f32 %v4202, %v4363
        %v4365 = vpop.f32.mrb[0].mxu0
        %v4366 = vadd.f32 %v4207, %v4365
        %v4367 = vpop.f32.mrb[0].mxu0
        %v4368 = vadd.f32 %v4207, %v4367
        %4369 = vmatprep.mubr.bf16.mxu0 0
        %4370 = vmatmul.mubr.bf16.gmra.mrb[0].mxu0 %v4303
        %v4371 = vpop.f32.mrb[0].mxu0
        %v4372 = vadd.f32 %v4212, %v4371
        %v4373 = vpop.f32.mrb[0].mxu0
        %v4374 = vadd.f32 %v4212, %v4373
        %v4375 = vpop.f32.mrb[0].mxu0
        %v4376 = vadd.f32 %v4217, %v4375
        %v4377 = vpop.f32.mrb[0].mxu0
        %v4378 = vadd.f32 %v4217, %v4377
        %4379 = vmatprep.mubr.bf16.mxu0 0
        %4380 = vmatmul.mubr.bf16.gmra.mrb[0].mxu0 %v4304
        %v4381 = vpop.f32.mrb[0].mxu0
        %v4382 = vadd.f32 %v4222, %v4381
        %v4383 = vpop.f32.mrb[0].mxu0
        %v4384 = vadd.f32 %v4222, %v4383
        %v4385 = vpop.f32.mrb[0].mxu0
        %v4386 = vadd.f32 %v4227, %v4385
        %v4387 = vpop.f32.mrb[0].mxu0
        %v4388 = vadd.f32 %v4227, %v4387
        %4389 = vmatprep.mubr.bf16.mxu0 0
        %4390 = vmatmul.mubr.bf16.gmra.mrb[0].mxu0 %v4305
        %v4391 = vpop.f32.mrb[0].mxu0
        %v4392 = vadd.f32 %v4232, %v4391
        %v4393 = vpop.f32.mrb[0].mxu0
        %v4394 = vadd.f32 %v4232, %v4393
        %v4395 = vpop.f32.mrb[0].mxu0
        %v4396 = vadd.f32 %v4237, %v4395
        %v4397 = vpop.f32.mrb[0].mxu0
        %v4398 = vadd.f32 %v4237, %v4397
        %4399 = vmatprep.mubr.bf16.mxu0 0
        %4400 = vmatmul.mubr.bf16.gmra.mrb[0].mxu0 %v4306
        %v4401 = vpop.f32.mrb[0].mxu0
        %v4402 = vadd.f32 %v4242, %v4401
        %v4403 = vpop.f32.mrb[0].mxu0
        %v4404 = vadd.f32 %v4242, %v4403
        %v4405 = vpop.f32.mrb[0].mxu0
        %v4406 = vadd.f32 %v4247, %v4405
        %v4407 = vpop.f32.mrb[0].mxu0
        %v4408 = vadd.f32 %v4247, %v4407
        %4409 = vmatprep.mubr.bf16.mxu0 0
        %4410 = vmatmul.mubr.bf16.gmra.mrb[0].mxu0 %v4307
        %v4411 = vpop.f32.mrb[0].mxu0
        %v4412 = vadd.f32 %v4252, %v4411
        %v4413 = vpop.f32.mrb[0].mxu0
        %v4414 = vadd.f32 %v4252, %v4413
        %v4415 = vpop.f32.mrb[0].mxu0
        %v4416 = vadd.f32 %v4257, %v4415
        %v4417 = vpop.f32.mrb[0].mxu0
        %v4418 = vadd.f32 %v4257, %v4417
        %4419 = vmatprep.mubr.bf16.mxu0 0
        %4420 = vmatmul.mubr.bf16.gmra.mrb[0].mxu0 %v4308
        %v4421 = vpop.f32.mrb[0].mxu0
        %v4422 = vadd.f32 %v4262, %v4421
        %v4423 = vpop.f32.mrb[0].mxu0
        %v4424 = vadd.f32 %v4262, %v4423
        %v4425 = vpop.f32.mrb[0].mxu0
        %v4426 = vadd.f32 %v4267, %v4425
        %v4427 = vpop.f32.mrb[0].mxu0
        %v4428 = vadd.f32 %v4267, %v4427
        %4429 = vdwg.mxu0
        %v4430 = vmax.f32 %v4352, 0.0
        %v4431 = vmax.f32 %v4354, 0.0
        %v4432 = vmax.f32 %v4356, 0.0
        %v4433 = vmax.f32 %v4358, 0.0
        %v4434 = vmax.f32 %v4362, 0.0
        %v4435 = vmax.f32 %v4364, 0.0
        %v4436 = vmax.f32 %v4366, 0.0
        %v4437 = vmax.f32 %v4368, 0.0
        %v4438 = vmax.f32 %v4372, 0.0
        %v4439 = vmax.f32 %v4374, 0.0
        %v4440 = vmax.f32 %v4376, 0.0
        %v4441 = vmax.f32 %v4378, 0.0
        %v4442 = vmax.f32 %v4382, 0.0
        %v4443 = vmax.f32 %v4384, 0.0
        %v4444 = vmax.f32 %v4386, 0.0
        %v4445 = vmax.f32 %v4388, 0.0
        %v4446 = vmax.f32 %v4392, 0.0
        %v4447 = vmax.f32 %v4394, 0.0
        %v4448 = vmax.f32 %v4396, 0.0
        %v4449 = vmax.f32 %v4398, 0.0
        %v4450 = vmax.f32 %v4402, 0.0
        %v4451 = vmax.f32 %v4404, 0.0
        %v4452 = vmax.f32 %v4406, 0.0
        %v4453 = vmax.f32 %v4408, 0.0
        %v4454 = vmax.f32 %v4412, 0.0
        %v4455 = vmax.f32 %v4414, 0.0
        %v4456 = vmax.f32 %v4416, 0.0
        %v4457 = vmax.f32 %v4418, 0.0
        %v4458 = vmax.f32 %v4422, 0.0
        %v4459 = vmax.f32 %v4424, 0.0
        %v4460 = vmax.f32 %v4426, 0.0
        %v4461 = vmax.f32 %v4428, 0.0
        %s4462 = scalar_lea.vmem %s1, 320
        %v4463 = vld [vmem:[%s4462] sm:$0xf]
        %v4464 = vld [vmem:[%s4462 + $0x4] sm:$0xf]
        %v4465 = vld [vmem:[%s4462 + $0x8] sm:$0xf]
        %v4466 = vld [vmem:[%s4462 + $0xc] sm:$0xf]
        %v4467 = vld [vmem:[%s4462 + $0x10] sm:$0xf]
        %v4468 = vld [vmem:[%s4462 + $0x14] sm:$0xf]
        %v4469 = vld [vmem:[%s4462 + $0x18] sm:$0xf]
        %v4470 = vld [vmem:[%s4462 + $0x1c] sm:$0xf]
        %v4471 = vld [vmem:[%s4462 + $0x20] sm:$0xf]
        %v4472 = vld [vmem:[%s4462 + $0x24] sm:$0xf]
        %v4473 = vld [vmem:[%s4462 + $0x28] sm:$0xf]
        %v4474 = vld [vmem:[%s4462 + $0x2c] sm:$0xf]
        %v4475 = vld [vmem:[%s4462 + $0x30] sm:$0xf]
        %v4476 = vld [vmem:[%s4462 + $0x34] sm:$0xf]
        %v4477 = vld [vmem:[%s4462 + $0x38] sm:$0xf]
        %v4478 = vld [vmem:[%s4462 + $0x3c] sm:$0xf]
        %s4479 = scalar_lea.vmem %s3, 2304
        %v4480 = vld [vmem:[%s4479] sm:$0xff]
        %v4481 = vld [vmem:[%s4479 + $0x8] sm:$0xff]
        %v4482 = vld [vmem:[%s4479 + $0x10] sm:$0xff]
        %v4483 = vld [vmem:[%s4479 + $0x18] sm:$0xff]
        %v4484 = vld [vmem:[%s4479 + $0x20] sm:$0xff]
        %v4485 = vld [vmem:[%s4479 + $0x28] sm:$0xff]
        %v4486 = vld [vmem:[%s4479 + $0x30] sm:$0xff]
        %v4487 = vld [vmem:[%s4479 + $0x38] sm:$0xff]
        %v4488 = vld [vmem:[%s4479 + $0x40] sm:$0xff]
        %v4489 = vld [vmem:[%s4479 + $0x48] sm:$0xff]
        %v4490 = vld [vmem:[%s4479 + $0x50] sm:$0xff]
        %v4491 = vld [vmem:[%s4479 + $0x58] sm:$0xff]
        %v4492 = vld [vmem:[%s4479 + $0x60] sm:$0xff]
        %v4493 = vld [vmem:[%s4479 + $0x68] sm:$0xff]
        %v4494 = vld [vmem:[%s4479 + $0x70] sm:$0xff]
        %v4495 = vld [vmem:[%s4479 + $0x78] sm:$0xff]
        %v4496 = vpack.c.bf16 %v4432, %v4430
        %v4497 = vpack.c.bf16 %v4433, %v4431
        %v4498 = vpack.c.bf16 %v4436, %v4434
        %v4499 = vpack.c.bf16 %v4437, %v4435
        %v4500 = vpack.c.bf16 %v4440, %v4438
        %v4501 = vpack.c.bf16 %v4441, %v4439
        %v4502 = vpack.c.bf16 %v4444, %v4442
        %v4503 = vpack.c.bf16 %v4445, %v4443
        %v4504 = vpack.c.bf16 %v4448, %v4446
        %v4505 = vpack.c.bf16 %v4449, %v4447
        %v4506 = vpack.c.bf16 %v4452, %v4450
        %v4507 = vpack.c.bf16 %v4453, %v4451
        %v4508 = vpack.c.bf16 %v4456, %v4454
        %v4509 = vpack.c.bf16 %v4457, %v4455
        %v4510 = vpack.c.bf16 %v4460, %v4458
        %v4511 = vpack.c.bf16 %v4461, %v4459
        %4513 = vset.pattern.permute.xlu0 0
        %4514 = vperm.xlu0 %4513, %v4480
        %v4515 = vpop.permute.xlu0 %4514
        %4518 = vset.pattern.permute.xlu0 0
        %4519 = vperm.xlu0 %4518, %v4481
        %v4520 = vpop.permute.xlu0 %4519
        %4523 = vset.pattern.permute.xlu0 0
        %4524 = vperm.xlu0 %4523, %v4482
        %v4525 = vpop.permute.xlu0 %4524
        %4528 = vset.pattern.permute.xlu0 0
        %4529 = vperm.xlu0 %4528, %v4483
        %v4530 = vpop.permute.xlu0 %4529
        %4533 = vset.pattern.permute.xlu0 0
        %4534 = vperm.xlu0 %4533, %v4484
        %v4535 = vpop.permute.xlu0 %4534
        %4538 = vset.pattern.permute.xlu0 0
        %4539 = vperm.xlu0 %4538, %v4485
        %v4540 = vpop.permute.xlu0 %4539
        %4543 = vset.pattern.permute.xlu0 0
        %4544 = vperm.xlu0 %4543, %v4486
        %v4545 = vpop.permute.xlu0 %4544
        %4548 = vset.pattern.permute.xlu0 0
        %4549 = vperm.xlu0 %4548, %v4487
        %v4550 = vpop.permute.xlu0 %4549
        %4553 = vset.pattern.permute.xlu0 0
        %4554 = vperm.xlu0 %4553, %v4488
        %v4555 = vpop.permute.xlu0 %4554
        %4558 = vset.pattern.permute.xlu0 0
        %4559 = vperm.xlu0 %4558, %v4489
        %v4560 = vpop.permute.xlu0 %4559
        %4563 = vset.pattern.permute.xlu0 0
        %4564 = vperm.xlu0 %4563, %v4490
        %v4565 = vpop.permute.xlu0 %4564
        %4568 = vset.pattern.permute.xlu0 0
        %4569 = vperm.xlu0 %4568, %v4491
        %v4570 = vpop.permute.xlu0 %4569
        %4573 = vset.pattern.permute.xlu0 0
        %4574 = vperm.xlu0 %4573, %v4492
        %v4575 = vpop.permute.xlu0 %4574
        %4578 = vset.pattern.permute.xlu0 0
        %4579 = vperm.xlu0 %4578, %v4493
        %v4580 = vpop.permute.xlu0 %4579
        %4583 = vset.pattern.permute.xlu0 0
        %4584 = vperm.xlu0 %4583, %v4494
        %v4585 = vpop.permute.xlu0 %4584
        %4588 = vset.pattern.permute.xlu0 0
        %4589 = vperm.xlu0 %4588, %v4495
        %v4590 = vpop.permute.xlu0 %4589
        %v4608 = vunpack.c.l.b16 %v4463
        %v4609 = vunpack.c.l.b16 %v4464
        %v4610 = vunpack.c.l.b16 %v4465
        %v4611 = vunpack.c.l.b16 %v4466
        %v4612 = vunpack.c.l.b16 %v4467
        %v4613 = vunpack.c.l.b16 %v4468
        %v4614 = vunpack.c.l.b16 %v4469
        %v4615 = vunpack.c.l.b16 %v4470
        %v4616 = vunpack.c.l.b16 %v4471
        %v4617 = vunpack.c.l.b16 %v4472
        %v4618 = vunpack.c.l.b16 %v4473
        %v4619 = vunpack.c.l.b16 %v4474
        %v4620 = vunpack.c.l.b16 %v4475
        %v4621 = vunpack.c.l.b16 %v4476
        %v4622 = vunpack.c.l.b16 %v4477
        %v4623 = vunpack.c.l.b16 %v4478
        %v4624 = vpack.c.b16 %v4609, %v4608
        %v4625 = vpack.c.b16 %v4611, %v4610
        %v4626 = vpack.c.b16 %v4613, %v4612
        %v4627 = vpack.c.b16 %v4615, %v4614
        %v4628 = vpack.c.b16 %v4617, %v4616
        %v4629 = vpack.c.b16 %v4619, %v4618
        %v4630 = vpack.c.b16 %v4621, %v4620
        %v4631 = vpack.c.b16 %v4623, %v4622
        %4640 = vmatprep.subr.bf16.mxu0 %v4497
        %4641 = vmatpush1.bf16.msra.mxu0 %v4496
        %4642 = vmatprep.subr.bf16.mxu0 %v4499
        %4643 = vmatpush1.bf16.msra.mxu0 %v4498
        %4644 = vmatprep.subr.bf16.mxu0 %v4501
        %4645 = vmatpush1.bf16.msra.mxu0 %v4500
        %4646 = vmatprep.subr.bf16.mxu0 %v4503
        %4647 = vmatpush1.bf16.msra.mxu0 %v4502
        %4648 = vmatprep.subr.bf16.mxu0 %v4505
        %4649 = vmatpush1.bf16.msra.mxu0 %v4504
        %4650 = vmatprep.subr.bf16.mxu0 %v4507
        %4651 = vmatpush1.bf16.msra.mxu0 %v4506
        %4652 = vmatprep.subr.bf16.mxu0 %v4509
        %4653 = vmatpush1.bf16.msra.mxu0 %v4508
        %4654 = vmatprep.subr.bf16.mxu0 %v4511
        %4655 = vmatpush1.bf16.msra.mxu0 %v4510
        %4656 = vmatprep.subr.bf16.mxu0 0
        %4657 = vmatpush1.bf16.msra.mxu0 0
        %4658 = vmatprep.subr.bf16.mxu0 0
        %4659 = vmatpush1.bf16.msra.mxu0 0
        %4660 = vmatprep.subr.bf16.mxu0 0
        %4661 = vmatpush1.bf16.msra.mxu0 0
        %4662 = vmatprep.subr.bf16.mxu0 0
        %4663 = vmatpush1.bf16.msra.mxu0 0
        %4664 = vmatprep.subr.bf16.mxu0 0
        %4665 = vmatpush1.bf16.msra.mxu0 0
        %4666 = vmatprep.subr.bf16.mxu0 0
        %4667 = vmatpush1.bf16.msra.mxu0 0
        %4668 = vmatprep.subr.bf16.mxu0 0
        %4669 = vmatpush1.bf16.msra.mxu0 0
        %4670 = vmatprep.subr.bf16.mxu0 0
        %4671 = vmatpush1.bf16.msra.mxu0 0
        %4672 = vmatprep.mubr.bf16.mxu0 0
        %4673 = vmatmul.mubr.bf16.gmra.mrb[0].mxu0 %v4624
        %v4674 = vpop.f32.mrb[0].mxu0
        %v4675 = vadd.f32 %v4515, %v4674
        %v4676 = vpop.f32.mrb[0].mxu0
        %v4677 = vadd.f32 %v4515, %v4676
        %v4678 = vpop.f32.mrb[0].mxu0
        %v4679 = vadd.f32 %v4520, %v4678
        %v4680 = vpop.f32.mrb[0].mxu0
        %v4681 = vadd.f32 %v4520, %v4680
        %4682 = vmatprep.mubr.bf16.mxu0 0
        %4683 = vmatmul.mubr.bf16.gmra.mrb[0].mxu0 %v4625
        %v4684 = vpop.f32.mrb[0].mxu0
        %v4685 = vadd.f32 %v4525, %v4684
        %v4686 = vpop.f32.mrb[0].mxu0
        %v4687 = vadd.f32 %v4525, %v4686
        %v4688 = vpop.f32.mrb[0].mxu0
        %v4689 = vadd.f32 %v4530, %v4688
        %v4690 = vpop.f32.mrb[0].mxu0
        %v4691 = vadd.f32 %v4530, %v4690
        %4692 = vmatprep.mubr.bf16.mxu0 0
        %4693 = vmatmul.mubr.bf16.gmra.mrb[0].mxu0 %v4626
        %v4694 = vpop.f32.mrb[0].mxu0
        %v4695 = vadd.f32 %v4535, %v4694
        %v4696 = vpop.f32.mrb[0].mxu0
        %v4697 = vadd.f32 %v4535, %v4696
        %v4698 = vpop.f32.mrb[0].mxu0
        %v4699 = vadd.f32 %v4540, %v4698
        %v4700 = vpop.f32.mrb[0].mxu0
        %v4701 = vadd.f32 %v4540, %v4700
        %4702 = vmatprep.mubr.bf16.mxu0 0
        %4703 = vmatmul.mubr.bf16.gmra.mrb[0].mxu0 %v4627
        %v4704 = vpop.f32.mrb[0].mxu0
        %v4705 = vadd.f32 %v4545, %v4704
        %v4706 = vpop.f32.mrb[0].mxu0
        %v4707 = vadd.f32 %v4545, %v4706
        %v4708 = vpop.f32.mrb[0].mxu0
        %v4709 = vadd.f32 %v4550, %v4708
        %v4710 = vpop.f32.mrb[0].mxu0
        %v4711 = vadd.f32 %v4550, %v4710
        %4712 = vmatprep.mubr.bf16.mxu0 0
        %4713 = vmatmul.mubr.bf16.gmra.mrb[0].mxu0 %v4628
        %v4714 = vpop.f32.mrb[0].mxu0
        %v4715 = vadd.f32 %v4555, %v4714
        %v4716 = vpop.f32.mrb[0].mxu0
        %v4717 = vadd.f32 %v4555, %v4716
        %v4718 = vpop.f32.mrb[0].mxu0
        %v4719 = vadd.f32 %v4560, %v4718
        %v4720 = vpop.f32.mrb[0].mxu0
        %v4721 = vadd.f32 %v4560, %v4720
        %4722 = vmatprep.mubr.bf16.mxu0 0
        %4723 = vmatmul.mubr.bf16.gmra.mrb[0].mxu0 %v4629
        %v4724 = vpop.f32.mrb[0].mxu0
        %v4725 = vadd.f32 %v4565, %v4724
        %v4726 = vpop.f32.mrb[0].mxu0
        %v4727 = vadd.f32 %v4565, %v4726
        %v4728 = vpop.f32.mrb[0].mxu0
        %v4729 = vadd.f32 %v4570, %v4728
        %v4730 = vpop.f32.mrb[0].mxu0
        %v4731 = vadd.f32 %v4570, %v4730
        %4732 = vmatprep.mubr.bf16.mxu0 0
        %4733 = vmatmul.mubr.bf16.gmra.mrb[0].mxu0 %v4630
        %v4734 = vpop.f32.mrb[0].mxu0
        %v4735 = vadd.f32 %v4575, %v4734
        %v4736 = vpop.f32.mrb[0].mxu0
        %v4737 = vadd.f32 %v4575, %v4736
        %v4738 = vpop.f32.mrb[0].mxu0
        %v4739 = vadd.f32 %v4580, %v4738
        %v4740 = vpop.f32.mrb[0].mxu0
        %v4741 = vadd.f32 %v4580, %v4740
        %4742 = vmatprep.mubr.bf16.mxu0 0
        %4743 = vmatmul.mubr.bf16.gmra.mrb[0].mxu0 %v4631
        %v4744 = vpop.f32.mrb[0].mxu0
        %v4745 = vadd.f32 %v4585, %v4744
        %v4746 = vpop.f32.mrb[0].mxu0
        %v4747 = vadd.f32 %v4585, %v4746
        %v4748 = vpop.f32.mrb[0].mxu0
        %v4749 = vadd.f32 %v4590, %v4748
        %v4750 = vpop.f32.mrb[0].mxu0
        %v4751 = vadd.f32 %v4590, %v4750
        %4752 = vdwg.mxu0
        %s4753 = scalar_lea.vmem %s1, 384
        %v4754 = vld [vmem:[%s4753] sm:$0xf]
        %v4755 = vld [vmem:[%s4753 + $0x4] sm:$0xf]
        %v4756 = vld [vmem:[%s4753 + $0x8] sm:$0xf]
        %v4757 = vld [vmem:[%s4753 + $0xc] sm:$0xf]
        %v4758 = vld [vmem:[%s4753 + $0x10] sm:$0xf]
        %v4759 = vld [vmem:[%s4753 + $0x14] sm:$0xf]
        %v4760 = vld [vmem:[%s4753 + $0x18] sm:$0xf]
        %v4761 = vld [vmem:[%s4753 + $0x1c] sm:$0xf]
        %v4762 = vld [vmem:[%s4753 + $0x20] sm:$0xf]
        %v4763 = vld [vmem:[%s4753 + $0x24] sm:$0xf]
        %v4764 = vld [vmem:[%s4753 + $0x28] sm:$0xf]
        %v4765 = vld [vmem:[%s4753 + $0x2c] sm:$0xf]
        %v4766 = vld [vmem:[%s4753 + $0x30] sm:$0xf]
        %v4767 = vld [vmem:[%s4753 + $0x34] sm:$0xf]
        %v4768 = vld [vmem:[%s4753 + $0x38] sm:$0xf]
        %v4769 = vld [vmem:[%s4753 + $0x3c] sm:$0xf]
        %s4770 = scalar_lea.vmem %s3, 2560
        %v4771 = vld [vmem:[%s4770] sm:$0xff]
        %v4772 = vld [vmem:[%s4770 + $0x8] sm:$0xff]
        %v4773 = vld [vmem:[%s4770 + $0x10] sm:$0xff]
        %v4774 = vld [vmem:[%s4770 + $0x18] sm:$0xff]
        %v4775 = vld [vmem:[%s4770 + $0x20] sm:$0xff]
        %v4776 = vld [vmem:[%s4770 + $0x28] sm:$0xff]
        %v4777 = vld [vmem:[%s4770 + $0x30] sm:$0xff]
        %v4778 = vld [vmem:[%s4770 + $0x38] sm:$0xff]
        %v4779 = vld [vmem:[%s4770 + $0x40] sm:$0xff]
        %v4780 = vld [vmem:[%s4770 + $0x48] sm:$0xff]
        %v4781 = vld [vmem:[%s4770 + $0x50] sm:$0xff]
        %v4782 = vld [vmem:[%s4770 + $0x58] sm:$0xff]
        %v4783 = vld [vmem:[%s4770 + $0x60] sm:$0xff]
        %v4784 = vld [vmem:[%s4770 + $0x68] sm:$0xff]
        %v4785 = vld [vmem:[%s4770 + $0x70] sm:$0xff]
        %v4786 = vld [vmem:[%s4770 + $0x78] sm:$0xff]
        %v4787 = vpack.c.bf16 %v4679, %v4675
        %v4788 = vpack.c.bf16 %v4681, %v4677
        %v4789 = vpack.c.bf16 %v4689, %v4685
        %v4790 = vpack.c.bf16 %v4691, %v4687
        %v4791 = vpack.c.bf16 %v4699, %v4695
        %v4792 = vpack.c.bf16 %v4701, %v4697
        %v4793 = vpack.c.bf16 %v4709, %v4705
        %v4794 = vpack.c.bf16 %v4711, %v4707
        %v4795 = vpack.c.bf16 %v4719, %v4715
        %v4796 = vpack.c.bf16 %v4721, %v4717
        %v4797 = vpack.c.bf16 %v4729, %v4725
        %v4798 = vpack.c.bf16 %v4731, %v4727
        %v4799 = vpack.c.bf16 %v4739, %v4735
        %v4800 = vpack.c.bf16 %v4741, %v4737
        %v4801 = vpack.c.bf16 %v4749, %v4745
        %v4802 = vpack.c.bf16 %v4751, %v4747
        %4804 = vset.pattern.permute.xlu0 0
        %4805 = vperm.xlu0 %4804, %v4771
        %v4806 = vpop.permute.xlu0 %4805
        %4809 = vset.pattern.permute.xlu0 0
        %4810 = vperm.xlu0 %4809, %v4772
        %v4811 = vpop.permute.xlu0 %4810
        %4814 = vset.pattern.permute.xlu0 0
        %4815 = vperm.xlu0 %4814, %v4773
        %v4816 = vpop.permute.xlu0 %4815
        %4819 = vset.pattern.permute.xlu0 0
        %4820 = vperm.xlu0 %4819, %v4774
        %v4821 = vpop.permute.xlu0 %4820
        %4824 = vset.pattern.permute.xlu0 0
        %4825 = vperm.xlu0 %4824, %v4775
        %v4826 = vpop.permute.xlu0 %4825
        %4829 = vset.pattern.permute.xlu0 0
        %4830 = vperm.xlu0 %4829, %v4776
        %v4831 = vpop.permute.xlu0 %4830
        %4834 = vset.pattern.permute.xlu0 0
        %4835 = vperm.xlu0 %4834, %v4777
        %v4836 = vpop.permute.xlu0 %4835
        %4839 = vset.pattern.permute.xlu0 0
        %4840 = vperm.xlu0 %4839, %v4778
        %v4841 = vpop.permute.xlu0 %4840
        %4844 = vset.pattern.permute.xlu0 0
        %4845 = vperm.xlu0 %4844, %v4779
        %v4846 = vpop.permute.xlu0 %4845
        %4849 = vset.pattern.permute.xlu0 0
        %4850 = vperm.xlu0 %4849, %v4780
        %v4851 = vpop.permute.xlu0 %4850
        %4854 = vset.pattern.permute.xlu0 0
        %4855 = vperm.xlu0 %4854, %v4781
        %v4856 = vpop.permute.xlu0 %4855
        %4859 = vset.pattern.permute.xlu0 0
        %4860 = vperm.xlu0 %4859, %v4782
        %v4861 = vpop.permute.xlu0 %4860
        %4864 = vset.pattern.permute.xlu0 0
        %4865 = vperm.xlu0 %4864, %v4783
        %v4866 = vpop.permute.xlu0 %4865
        %4869 = vset.pattern.permute.xlu0 0
        %4870 = vperm.xlu0 %4869, %v4784
        %v4871 = vpop.permute.xlu0 %4870
        %4874 = vset.pattern.permute.xlu0 0
        %4875 = vperm.xlu0 %4874, %v4785
        %v4876 = vpop.permute.xlu0 %4875
        %4879 = vset.pattern.permute.xlu0 0
        %4880 = vperm.xlu0 %4879, %v4786
        %v4881 = vpop.permute.xlu0 %4880
        %v4899 = vunpack.c.l.b16 %v4754
        %v4900 = vunpack.c.l.b16 %v4755
        %v4901 = vunpack.c.l.b16 %v4756
        %v4902 = vunpack.c.l.b16 %v4757
        %v4903 = vunpack.c.l.b16 %v4758
        %v4904 = vunpack.c.l.b16 %v4759
        %v4905 = vunpack.c.l.b16 %v4760
        %v4906 = vunpack.c.l.b16 %v4761
        %v4907 = vunpack.c.l.b16 %v4762
        %v4908 = vunpack.c.l.b16 %v4763
        %v4909 = vunpack.c.l.b16 %v4764
        %v4910 = vunpack.c.l.b16 %v4765
        %v4911 = vunpack.c.l.b16 %v4766
        %v4912 = vunpack.c.l.b16 %v4767
        %v4913 = vunpack.c.l.b16 %v4768
        %v4914 = vunpack.c.l.b16 %v4769
        %v4915 = vpack.c.b16 %v4900, %v4899
        %v4916 = vpack.c.b16 %v4902, %v4901
        %v4917 = vpack.c.b16 %v4904, %v4903
        %v4918 = vpack.c.b16 %v4906, %v4905
        %v4919 = vpack.c.b16 %v4908, %v4907
        %v4920 = vpack.c.b16 %v4910, %v4909
        %v4921 = vpack.c.b16 %v4912, %v4911
        %v4922 = vpack.c.b16 %v4914, %v4913
        %4931 = vmatprep.subr.bf16.mxu0 %v4788
        %4932 = vmatpush1.bf16.msra.mxu0 %v4787
        %4933 = vmatprep.subr.bf16.mxu0 %v4790
        %4934 = vmatpush1.bf16.msra.mxu0 %v4789
        %4935 = vmatprep.subr.bf16.mxu0 %v4792
        %4936 = vmatpush1.bf16.msra.mxu0 %v4791
        %4937 = vmatprep.subr.bf16.mxu0 %v4794
        %4938 = vmatpush1.bf16.msra.mxu0 %v4793
        %4939 = vmatprep.subr.bf16.mxu0 %v4796
        %4940 = vmatpush1.bf16.msra.mxu0 %v4795
        %4941 = vmatprep.subr.bf16.mxu0 %v4798
        %4942 = vmatpush1.bf16.msra.mxu0 %v4797
        %4943 = vmatprep.subr.bf16.mxu0 %v4800
        %4944 = vmatpush1.bf16.msra.mxu0 %v4799
        %4945 = vmatprep.subr.bf16.mxu0 %v4802
        %4946 = vmatpush1.bf16.msra.mxu0 %v4801
        %4947 = vmatprep.subr.bf16.mxu0 0
        %4948 = vmatpush1.bf16.msra.mxu0 0
        %4949 = vmatprep.subr.bf16.mxu0 0
        %4950 = vmatpush1.bf16.msra.mxu0 0
        %4951 = vmatprep.subr.bf16.mxu0 0
        %4952 = vmatpush1.bf16.msra.mxu0 0
        %4953 = vmatprep.subr.bf16.mxu0 0
        %4954 = vmatpush1.bf16.msra.mxu0 0
        %4955 = vmatprep.subr.bf16.mxu0 0
        %4956 = vmatpush1.bf16.msra.mxu0 0
        %4957 = vmatprep.subr.bf16.mxu0 0
        %4958 = vmatpush1.bf16.msra.mxu0 0
        %4959 = vmatprep.subr.bf16.mxu0 0
        %4960 = vmatpush1.bf16.msra.mxu0 0
        %4961 = vmatprep.subr.bf16.mxu0 0
        %4962 = vmatpush1.bf16.msra.mxu0 0
        %4963 = vmatprep.mubr.bf16.mxu0 0
        %4964 = vmatmul.mubr.bf16.gmra.mrb[0].mxu0 %v4915
        %v4965 = vpop.f32.mrb[0].mxu0
        %v4966 = vadd.f32 %v4806, %v4965
        %v4967 = vpop.f32.mrb[0].mxu0
        %v4968 = vadd.f32 %v4806, %v4967
        %v4969 = vpop.f32.mrb[0].mxu0
        %v4970 = vadd.f32 %v4811, %v4969
        %v4971 = vpop.f32.mrb[0].mxu0
        %v4972 = vadd.f32 %v4811, %v4971
        %4973 = vmatprep.mubr.bf16.mxu0 0
        %4974 = vmatmul.mubr.bf16.gmra.mrb[0].mxu0 %v4916
        %v4975 = vpop.f32.mrb[0].mxu0
        %v4976 = vadd.f32 %v4816, %v4975
        %v4977 = vpop.f32.mrb[0].mxu0
        %v4978 = vadd.f32 %v4816, %v4977
        %v4979 = vpop.f32.mrb[0].mxu0
        %v4980 = vadd.f32 %v4821, %v4979
        %v4981 = vpop.f32.mrb[0].mxu0
        %v4982 = vadd.f32 %v4821, %v4981
        %4983 = vmatprep.mubr.bf16.mxu0 0
        %4984 = vmatmul.mubr.bf16.gmra.mrb[0].mxu0 %v4917
        %v4985 = vpop.f32.mrb[0].mxu0
        %v4986 = vadd.f32 %v4826, %v4985
        %v4987 = vpop.f32.mrb[0].mxu0
        %v4988 = vadd.f32 %v4826, %v4987
        %v4989 = vpop.f32.mrb[0].mxu0
        %v4990 = vadd.f32 %v4831, %v4989
        %v4991 = vpop.f32.mrb[0].mxu0
        %v4992 = vadd.f32 %v4831, %v4991
        %4993 = vmatprep.mubr.bf16.mxu0 0
        %4994 = vmatmul.mubr.bf16.gmra.mrb[0].mxu0 %v4918
        %v4995 = vpop.f32.mrb[0].mxu0
        %v4996 = vadd.f32 %v4836, %v4995
        %v4997 = vpop.f32.mrb[0].mxu0
        %v4998 = vadd.f32 %v4836, %v4997
        %v4999 = vpop.f32.mrb[0].mxu0
        %v5000 = vadd.f32 %v4841, %v4999
        %v5001 = vpop.f32.mrb[0].mxu0
        %v5002 = vadd.f32 %v4841, %v5001
        %5003 = vmatprep.mubr.bf16.mxu0 0
        %5004 = vmatmul.mubr.bf16.gmra.mrb[0].mxu0 %v4919
        %v5005 = vpop.f32.mrb[0].mxu0
        %v5006 = vadd.f32 %v4846, %v5005
        %v5007 = vpop.f32.mrb[0].mxu0
        %v5008 = vadd.f32 %v4846, %v5007
        %v5009 = vpop.f32.mrb[0].mxu0
        %v5010 = vadd.f32 %v4851, %v5009
        %v5011 = vpop.f32.mrb[0].mxu0
        %v5012 = vadd.f32 %v4851, %v5011
        %5013 = vmatprep.mubr.bf16.mxu0 0
        %5014 = vmatmul.mubr.bf16.gmra.mrb[0].mxu0 %v4920
        %v5015 = vpop.f32.mrb[0].mxu0
        %v5016 = vadd.f32 %v4856, %v5015
        %v5017 = vpop.f32.mrb[0].mxu0
        %v5018 = vadd.f32 %v4856, %v5017
        %v5019 = vpop.f32.mrb[0].mxu0
        %v5020 = vadd.f32 %v4861, %v5019
        %v5021 = vpop.f32.mrb[0].mxu0
        %v5022 = vadd.f32 %v4861, %v5021
        %5023 = vmatprep.mubr.bf16.mxu0 0
        %5024 = vmatmul.mubr.bf16.gmra.mrb[0].mxu0 %v4921
        %v5025 = vpop.f32.mrb[0].mxu0
        %v5026 = vadd.f32 %v4866, %v5025
        %v5027 = vpop.f32.mrb[0].mxu0
        %v5028 = vadd.f32 %v4866, %v5027
        %v5029 = vpop.f32.mrb[0].mxu0
        %v5030 = vadd.f32 %v4871, %v5029
        %v5031 = vpop.f32.mrb[0].mxu0
        %v5032 = vadd.f32 %v4871, %v5031
        %5033 = vmatprep.mubr.bf16.mxu0 0
        %5034 = vmatmul.mubr.bf16.gmra.mrb[0].mxu0 %v4922
        %v5035 = vpop.f32.mrb[0].mxu0
        %v5036 = vadd.f32 %v4876, %v5035
        %v5037 = vpop.f32.mrb[0].mxu0
        %v5038 = vadd.f32 %v4876, %v5037
        %v5039 = vpop.f32.mrb[0].mxu0
        %v5040 = vadd.f32 %v4881, %v5039
        %v5041 = vpop.f32.mrb[0].mxu0
        %v5042 = vadd.f32 %v4881, %v5041
        %5043 = vdwg.mxu0
        %v5044 = vadd.f32 %v4966, %v4430
        %v5045 = vadd.f32 %v4968, %v4431
        %v5046 = vadd.f32 %v4970, %v4432
        %v5047 = vadd.f32 %v4972, %v4433
        %v5048 = vadd.f32 %v4976, %v4434
        %v5049 = vadd.f32 %v4978, %v4435
        %v5050 = vadd.f32 %v4980, %v4436
        %v5051 = vadd.f32 %v4982, %v4437
        %v5052 = vadd.f32 %v4986, %v4438
        %v5053 = vadd.f32 %v4988, %v4439
        %v5054 = vadd.f32 %v4990, %v4440
        %v5055 = vadd.f32 %v4992, %v4441
        %v5056 = vadd.f32 %v4996, %v4442
        %v5057 = vadd.f32 %v4998, %v4443
        %v5058 = vadd.f32 %v5000, %v4444
        %v5059 = vadd.f32 %v5002, %v4445
        %v5060 = vadd.f32 %v5006, %v4446
        %v5061 = vadd.f32 %v5008, %v4447
        %v5062 = vadd.f32 %v5010, %v4448
        %v5063 = vadd.f32 %v5012, %v4449
        %v5064 = vadd.f32 %v5016, %v4450
        %v5065 = vadd.f32 %v5018, %v4451
        %v5066 = vadd.f32 %v5020, %v4452
        %v5067 = vadd.f32 %v5022, %v4453
        %v5068 = vadd.f32 %v5026, %v4454
        %v5069 = vadd.f32 %v5028, %v4455
        %v5070 = vadd.f32 %v5030, %v4456
        %v5071 = vadd.f32 %v5032, %v4457
        %v5072 = vadd.f32 %v5036, %v4458
        %v5073 = vadd.f32 %v5038, %v4459
        %v5074 = vadd.f32 %v5040, %v4460
        %v5075 = vadd.f32 %v5042, %v4461
        %s5076 = scalar_lea.vmem %s1, 448
        %v5077 = vld [vmem:[%s5076] sm:$0xf]
        %v5078 = vld [vmem:[%s5076 + $0x4] sm:$0xf]
        %v5079 = vld [vmem:[%s5076 + $0x8] sm:$0xf]
        %v5080 = vld [vmem:[%s5076 + $0xc] sm:$0xf]
        %v5081 = vld [vmem:[%s5076 + $0x10] sm:$0xf]
        %v5082 = vld [vmem:[%s5076 + $0x14] sm:$0xf]
        %v5083 = vld [vmem:[%s5076 + $0x18] sm:$0xf]
        %v5084 = vld [vmem:[%s5076 + $0x1c] sm:$0xf]
        %v5085 = vld [vmem:[%s5076 + $0x20] sm:$0xf]
        %v5086 = vld [vmem:[%s5076 + $0x24] sm:$0xf]
        %v5087 = vld [vmem:[%s5076 + $0x28] sm:$0xf]
        %v5088 = vld [vmem:[%s5076 + $0x2c] sm:$0xf]
        %v5089 = vld [vmem:[%s5076 + $0x30] sm:$0xf]
        %v5090 = vld [vmem:[%s5076 + $0x34] sm:$0xf]
        %v5091 = vld [vmem:[%s5076 + $0x38] sm:$0xf]
        %v5092 = vld [vmem:[%s5076 + $0x3c] sm:$0xf]
        %s5093 = scalar_lea.vmem %s3, 2816
        %v5094 = vld [vmem:[%s5093] sm:$0xff]
        %v5095 = vld [vmem:[%s5093 + $0x8] sm:$0xff]
        %v5096 = vld [vmem:[%s5093 + $0x10] sm:$0xff]
        %v5097 = vld [vmem:[%s5093 + $0x18] sm:$0xff]
        %v5098 = vld [vmem:[%s5093 + $0x20] sm:$0xff]
        %v5099 = vld [vmem:[%s5093 + $0x28] sm:$0xff]
        %v5100 = vld [vmem:[%s5093 + $0x30] sm:$0xff]
        %v5101 = vld [vmem:[%s5093 + $0x38] sm:$0xff]
        %v5102 = vld [vmem:[%s5093 + $0x40] sm:$0xff]
        %v5103 = vld [vmem:[%s5093 + $0x48] sm:$0xff]
        %v5104 = vld [vmem:[%s5093 + $0x50] sm:$0xff]
        %v5105 = vld [vmem:[%s5093 + $0x58] sm:$0xff]
        %v5106 = vld [vmem:[%s5093 + $0x60] sm:$0xff]
        %v5107 = vld [vmem:[%s5093 + $0x68] sm:$0xff]
        %v5108 = vld [vmem:[%s5093 + $0x70] sm:$0xff]
        %v5109 = vld [vmem:[%s5093 + $0x78] sm:$0xff]
        %v5110 = vpack.c.bf16 %v5046, %v5044
        %v5111 = vpack.c.bf16 %v5047, %v5045
        %v5112 = vpack.c.bf16 %v5050, %v5048
        %v5113 = vpack.c.bf16 %v5051, %v5049
        %v5114 = vpack.c.bf16 %v5054, %v5052
        %v5115 = vpack.c.bf16 %v5055, %v5053
        %v5116 = vpack.c.bf16 %v5058, %v5056
        %v5117 = vpack.c.bf16 %v5059, %v5057
        %v5118 = vpack.c.bf16 %v5062, %v5060
        %v5119 = vpack.c.bf16 %v5063, %v5061
        %v5120 = vpack.c.bf16 %v5066, %v5064
        %v5121 = vpack.c.bf16 %v5067, %v5065
        %v5122 = vpack.c.bf16 %v5070, %v5068
        %v5123 = vpack.c.bf16 %v5071, %v5069
        %v5124 = vpack.c.bf16 %v5074, %v5072
        %v5125 = vpack.c.bf16 %v5075, %v5073
        %5127 = vset.pattern.permute.xlu0 0
        %5128 = vperm.xlu0 %5127, %v5094
        %v5129 = vpop.permute.xlu0 %5128
        %5132 = vset.pattern.permute.xlu0 0
        %5133 = vperm.xlu0 %5132, %v5095
        %v5134 = vpop.permute.xlu0 %5133
        %5136 = vset.pattern.permute.xlu0 0
        %5137 = vperm.xlu0 %5136, %v5096
        %v5138 = vpop.permute.xlu0 %5137
        %5140 = vset.pattern.permute.xlu0 0
        %5141 = vperm.xlu0 %5140, %v5097
        %v5142 = vpop.permute.xlu0 %5141
        %5144 = vset.pattern.permute.xlu0 0
        %5145 = vperm.xlu0 %5144, %v5098
        %v5146 = vpop.permute.xlu0 %5145
        %5148 = vset.pattern.permute.xlu0 0
        %5149 = vperm.xlu0 %5148, %v5099
        %v5150 = vpop.permute.xlu0 %5149
        %5152 = vset.pattern.permute.xlu0 0
        %5153 = vperm.xlu0 %5152, %v5100
        %v5154 = vpop.permute.xlu0 %5153
        %5156 = vset.pattern.permute.xlu0 0
        %5157 = vperm.xlu0 %5156, %v5101
        %v5158 = vpop.permute.xlu0 %5157
        %5160 = vset.pattern.permute.xlu0 0
        %5161 = vperm.xlu0 %5160, %v5102
        %v5162 = vpop.permute.xlu0 %5161
        %5164 = vset.pattern.permute.xlu0 0
        %5165 = vperm.xlu0 %5164, %v5103
        %v5166 = vpop.permute.xlu0 %5165
        %5168 = vset.pattern.permute.xlu0 0
        %5169 = vperm.xlu0 %5168, %v5104
        %v5170 = vpop.permute.xlu0 %5169
        %5172 = vset.pattern.permute.xlu0 0
        %5173 = vperm.xlu0 %5172, %v5105
        %v5174 = vpop.permute.xlu0 %5173
        %5176 = vset.pattern.permute.xlu0 0
        %5177 = vperm.xlu0 %5176, %v5106
        %v5178 = vpop.permute.xlu0 %5177
        %5180 = vset.pattern.permute.xlu0 0
        %5181 = vperm.xlu0 %5180, %v5107
        %v5182 = vpop.permute.xlu0 %5181
        %5184 = vset.pattern.permute.xlu0 0
        %5185 = vperm.xlu0 %5184, %v5108
        %v5186 = vpop.permute.xlu0 %5185
        %5188 = vset.pattern.permute.xlu0 0
        %5189 = vperm.xlu0 %5188, %v5109
        %v5190 = vpop.permute.xlu0 %5189
        %v5207 = vunpack.c.l.b16 %v5077
        %v5208 = vunpack.c.l.b16 %v5078
        %v5209 = vunpack.c.l.b16 %v5079
        %v5210 = vunpack.c.l.b16 %v5080
        %v5211 = vunpack.c.l.b16 %v5081
        %v5212 = vunpack.c.l.b16 %v5082
        %v5213 = vunpack.c.l.b16 %v5083
        %v5214 = vunpack.c.l.b16 %v5084
        %v5215 = vunpack.c.l.b16 %v5085
        %v5216 = vunpack.c.l.b16 %v5086
        %v5217 = vunpack.c.l.b16 %v5087
        %v5218 = vunpack.c.l.b16 %v5088
        %v5219 = vunpack.c.l.b16 %v5089
        %v5220 = vunpack.c.l.b16 %v5090
        %v5221 = vunpack.c.l.b16 %v5091
        %v5222 = vunpack.c.l.b16 %v5092
        %v5223 = vpack.c.b16 %v5208, %v5207
        %v5224 = vpack.c.b16 %v5210, %v5209
        %v5225 = vpack.c.b16 %v5212, %v5211
        %v5226 = vpack.c.b16 %v5214, %v5213
        %v5227 = vpack.c.b16 %v5216, %v5215
        %v5228 = vpack.c.b16 %v5218, %v5217
        %v5229 = vpack.c.b16 %v5220, %v5219
        %v5230 = vpack.c.b16 %v5222, %v5221
        %5239 = vmatprep.subr.bf16.mxu0 %v5111
        %5240 = vmatpush1.bf16.msra.mxu0 %v5110
        %5241 = vmatprep.subr.bf16.mxu0 %v5113
        %5242 = vmatpush1.bf16.msra.mxu0 %v5112
        %5243 = vmatprep.subr.bf16.mxu0 %v5115
        %5244 = vmatpush1.bf16.msra.mxu0 %v5114
        %5245 = vmatprep.subr.bf16.mxu0 %v5117
        %5246 = vmatpush1.bf16.msra.mxu0 %v5116
        %5247 = vmatprep.subr.bf16.mxu0 %v5119
        %5248 = vmatpush1.bf16.msra.mxu0 %v5118
        %5249 = vmatprep.subr.bf16.mxu0 %v5121
        %5250 = vmatpush1.bf16.msra.mxu0 %v5120
        %5251 = vmatprep.subr.bf16.mxu0 %v5123
        %5252 = vmatpush1.bf16.msra.mxu0 %v5122
        %5253 = vmatprep.subr.bf16.mxu0 %v5125
        %5254 = vmatpush1.bf16.msra.mxu0 %v5124
        %5255 = vmatprep.subr.bf16.mxu0 0
        %5256 = vmatpush1.bf16.msra.mxu0 0
        %5257 = vmatprep.subr.bf16.mxu0 0
        %5258 = vmatpush1.bf16.msra.mxu0 0
        %5259 = vmatprep.subr.bf16.mxu0 0
        %5260 = vmatpush1.bf16.msra.mxu0 0
        %5261 = vmatprep.subr.bf16.mxu0 0
        %5262 = vmatpush1.bf16.msra.mxu0 0
        %5263 = vmatprep.subr.bf16.mxu0 0
        %5264 = vmatpush1.bf16.msra.mxu0 0
        %5265 = vmatprep.subr.bf16.mxu0 0
        %5266 = vmatpush1.bf16.msra.mxu0 0
        %5267 = vmatprep.subr.bf16.mxu0 0
        %5268 = vmatpush1.bf16.msra.mxu0 0
        %5269 = vmatprep.subr.bf16.mxu0 0
        %5270 = vmatpush1.bf16.msra.mxu0 0
        %5271 = vmatprep.mubr.bf16.mxu0 0
        %5272 = vmatmul.mubr.bf16.gmra.mrb[0].mxu0 %v5223
        %v5273 = vpop.f32.mrb[0].mxu0
        %v5274 = vadd.f32 %v5129, %v5273
        %v5275 = vpop.f32.mrb[0].mxu0
        %v5276 = vadd.f32 %v5129, %v5275
        %v5277 = vpop.f32.mrb[0].mxu0
        %v5278 = vpop.f32.mrb[0].mxu0
        %5279 = vmatprep.mubr.bf16.mxu0 0
        %5280 = vmatmul.mubr.bf16.gmra.mrb[0].mxu0 %v5224
        %v5281 = vpop.f32.mrb[0].mxu0
        %v5282 = vpop.f32.mrb[0].mxu0
        %v5283 = vpop.f32.mrb[0].mxu0
        %v5284 = vpop.f32.mrb[0].mxu0
        %5285 = vmatprep.mubr.bf16.mxu0 0
        %5286 = vmatmul.mubr.bf16.gmra.mrb[0].mxu0 %v5225
        %v5287 = vpop.f32.mrb[0].mxu0
        %v5288 = vpop.f32.mrb[0].mxu0
        %v5289 = vpop.f32.mrb[0].mxu0
        %v5290 = vpop.f32.mrb[0].mxu0
        %5291 = vmatprep.mubr.bf16.mxu0 0
        %5292 = vmatmul.mubr.bf16.gmra.mrb[0].mxu0 %v5226
        %v5293 = vpop.f32.mrb[0].mxu0
        %v5294 = vpop.f32.mrb[0].mxu0
        %v5295 = vpop.f32.mrb[0].mxu0
        %v5296 = vpop.f32.mrb[0].mxu0
        %5297 = vmatprep.mubr.bf16.mxu0 0
        %5298 = vmatmul.mubr.bf16.gmra.mrb[0].mxu0 %v5227
        %v5299 = vpop.f32.mrb[0].mxu0
        %v5300 = vpop.f32.mrb[0].mxu0
        %v5301 = vpop.f32.mrb[0].mxu0
        %v5302 = vpop.f32.mrb[0].mxu0
        %5303 = vmatprep.mubr.bf16.mxu0 0
        %5304 = vmatmul.mubr.bf16.gmra.mrb[0].mxu0 %v5228
        %v5305 = vpop.f32.mrb[0].mxu0
        %v5306 = vpop.f32.mrb[0].mxu0
        %v5307 = vpop.f32.mrb[0].mxu0
        %v5308 = vpop.f32.mrb[0].mxu0
        %5309 = vmatprep.mubr.bf16.mxu0 0
        %5310 = vmatmul.mubr.bf16.gmra.mrb[0].mxu0 %v5229
        %v5311 = vpop.f32.mrb[0].mxu0
        %v5312 = vpop.f32.mrb[0].mxu0
        %v5313 = vpop.f32.mrb[0].mxu0
        %v5314 = vpop.f32.mrb[0].mxu0
        %5315 = vmatprep.mubr.bf16.mxu0 0
        %5316 = vmatmul.mubr.bf16.gmra.mrb[0].mxu0 %v5230
        %v5317 = vpop.f32.mrb[0].mxu0
        %v5318 = vpop.f32.mrb[0].mxu0
        %v5319 = vpop.f32.mrb[0].mxu0
        %v5320 = vpop.f32.mrb[0].mxu0
        %5321 = vdwg.mxu0
        %v5322 = vsub.f32 0.0, %v5274
        %v5323 = vsub.f32 0.0, %v5276
        %v5324 = vmul.f32 %v5322, 1.442695
        %v5325 = vpow.pop %v5324
        %v5326 = vmul.f32 %v5323, 1.442695
        %v5327 = vpow.pop %v5326
        %v5328 = vadd.f32 %v5325, 1.0
        %v5329 = vadd.f32 %v5327, 1.0
        %v5330 = vrcp.pop %v5328
        %v5331 = vmul.f32 1.0, %v5330
        %v5332 = vrcp.pop %v5329
        %v5333 = vmul.f32 1.0, %v5332
        %v5336 = vcombine.low %v5331, %v5333
        %v5338 = vunpack.c.l.s4 1966171168
        %v5339 = vunpack.c.0.s8 %v5338
        %v5340 = vlaneseq
        %v5341 = vshrl.u32 %v5340, 7
        %v5342 = vsub.s32 %v5339, %v5341
        %v5343 = vrot.slane %v5336, %v5342
        %v5345 = vunpack.c.l.s4 1966171168
        %v5346 = vunpack.c.0.s8 %v5345
        %v5347 = vlaneseq
        %v5348 = vshrl.u32 %v5347, 7
        %v5349 = vsub.s32 %v5346, %v5348
        %v5350 = vrot.slane %v5343, %v5349
        %v5352 = vlaneseq
        %vm5353 = vcmp.ge.s32.totalorder %v5352, 0
        %vm5354 = vcmp.lt.s32.totalorder %v5352, 256
        %vm5355 = vmand %vm5353, %vm5354
        %5356 = vst.msk [vmem:[%s290] sm:$0x3] %vm5355, %v5350
        %s5357 = sand.u32 %s115, 1
        %s5358 = scalar_lea.sflag [#allocation4], %s5357
        %s5359 = sand.u32 %s115, 1
        %s5360 = smul.addr %s5359, 2
        %s5361 = scalar_lea.vmem [#allocation3], %s5360
        // Predicated region
        $region75: #{tpu_custom_call.1} parent=69 // pred_check
          %p5362 = pneg %p125
        $region76: #{tpu_custom_call.1} parent=69 // pred_check_branch
          %5364 = sbr.rel (%p5362) target = $region78
        $region77: #{tpu_custom_call.1} parent=69 // pred_region
          %s5365 = smul.u32 2, %s18
          %s5367 = ssub.s32 32, 32
          %5368 = vsyncadd %s5358, %s5367
          %s5369 = smul.addr %s5365, 16
          %s5370 = scalar_lea.hbm %s4, %s5369
          %s5372 = sshll.u32 %s5361, 4
          %s5373 = int_to_ptr.vmem [resolvable:$true] %s5372
          %5375 = dma.vmem_to_hbm [thread:$0]  %s5373, 32, %s5370, %s5358
        $region78: #{tpu_custom_call.1} parent=69 // pred_fallthru
          _
      $region70: #{tpu_custom_call.1} parent=5 // pred_fallthru
        _
      %p5376 = scmp.le.s32.totalorder 2, %s13
      // Predicated region
      $region79: #{tpu_custom_call.1} parent=5 // pred_check
        %p5377 = pneg %p5376
      $region80: #{tpu_custom_call.1} parent=5 // pred_check_branch
        %5379 = sbr.rel (%p5377) target = $region82
      $region81: #{tpu_custom_call.1} parent=5 // pred_region
        %s5380 = ssub.s32 %s13, 2
        // Predicated region
        $region83: #{tpu_custom_call.1} parent=81 // pred_check
          %p5381 = pneg %p131
        $region84: #{tpu_custom_call.1} parent=81 // pred_check_branch
          %5383 = sbr.rel (%p5381) target = $region86
        $region85: #{tpu_custom_call.1} parent=81 // pred_region
          %s5384 = sand.u32 %s116, 1
          %s5385 = scalar_lea.sflag [#allocation4], %s5384
          %s5386 = sand.u32 %s116, 1
          %s5387 = smul.addr %s5386, 2
          %s5388 = scalar_lea.vmem [#allocation3], %s5387
          %5389 = dma.done %s5385, 32
        $region86: #{tpu_custom_call.1} parent=81 // pred_fallthru
          _
      $region82: #{tpu_custom_call.1} parent=5 // pred_fallthru
        _
    $region6: #{tpu_custom_call.1} parent=1 // loop_footer
      %s17 = sadd.s32 1, %s13
    $region7: #{tpu_custom_call.1} parent=1 // loop_footer_branch
      %12 = sbr.rel target = $region3
    $region8: #{tpu_custom_call.1} parent=1 // loop_exit
      _
    %5390 = vsyncpa [#allocation4], 1
    %s5391 = scalar_lea.sflag [#allocation4], 1
    %5392 = vsyncpa %s5391, 1

</llo_original>
